<compile_context>
chip_gen: v7x
topology: tpu7x:2x2x1
jax: 0.10.0
libtpu: 0.0.40
codegen_flags: <defaults>
</compile_context>

<pallas_src>
import functools

import jax
import jax.numpy as jnp
from jax.experimental import pallas as pl
from jax.experimental.pallas import tpu as pltpu

BN_EPS = 1e-5


def _pick_tile(dim, preferred):
    for t in preferred:
        if dim % t == 0:
            return t
    return dim  # full extent (always a legal block size)


# ---------------------------------------------------------------------------
# Fused encoder kernel: per-point MLP (conv1 + conv2, BN folded) + max pool
# ---------------------------------------------------------------------------
def _encoder_kernel(x_ref,
                    w1a_ref, b1a_ref, w1b_ref, b1b_ref,
                    w2a_ref, b2a_ref, w2b_ref, b2b_ref, w2c_ref, b2c_ref,
                    out_ref):
    n = pl.program_id(1)

    @pl.when(n == 0)
    def _init():
        out_ref[...] = jnp.full(out_ref.shape, -jnp.inf, dtype=out_ref.dtype)

    x = x_ref[0]                                                # (TILE_N, 3) f32

    # conv1 block: Conv(3,64) -> Conv(64,64)+BN -> ReLU
    h = jnp.dot(x, w1a_ref[...], preferred_element_type=jnp.float32) + b1a_ref[...]
    h = jnp.dot(h.astype(jnp.bfloat16), w1b_ref[...],
                preferred_element_type=jnp.float32) + b1b_ref[...]
    h = jnp.maximum(h, 0.0)

    # conv2 block: Conv(64,64) -> Conv(64,128) -> Conv(128,1024)+BN -> ReLU
    h = jnp.dot(h.astype(jnp.bfloat16), w2a_ref[...],
                preferred_element_type=jnp.float32) + b2a_ref[...]
    h = jnp.dot(h.astype(jnp.bfloat16), w2b_ref[...],
                preferred_element_type=jnp.float32) + b2b_ref[...]
    h = jnp.dot(h.astype(jnp.bfloat16), w2c_ref[...],
                preferred_element_type=jnp.float32) + b2c_ref[...]
    h = jnp.maximum(h, 0.0)                                     # (TILE_N, 1024)

    # fused torch.max(x, 2)[0]: running max across point tiles
    tile_max = jnp.max(h, axis=0, keepdims=True)[None]          # (1, 1, 1024)
    out_ref[...] = jnp.maximum(out_ref[...], tile_max)


def encode(params, pointcloud):
    """pointcloud [B, N, 3] -> global feature [B, 1024]."""
    B, N, _ = pointcloud.shape
    tile_n = _pick_tile(N, (512, 256, 128))
    assert N % tile_n == 0
    grid = (B, N // tile_n)

    enc = params["enc"]
    weights = [enc["w1a"], enc["b1a"], enc["w1b"], enc["b1b"],
               enc["w2a"], enc["b2a"], enc["w2b"], enc["b2b"],
               enc["w2c"], enc["b2c"]]

    def const_spec(arr):
        return pl.BlockSpec(arr.shape, lambda b, n: (0, 0))

    flops = 2 * B * N * (3 * 64 + 64 * 64 + 64 * 64 + 64 * 128 + 128 * 1024)
    bytes_accessed = (int(pointcloud.size) * 4
                      + sum(int(w.size) * w.dtype.itemsize for w in weights)
                      + B * 1024 * 4)

    lat3 = pl.pallas_call(
        _encoder_kernel,
        out_shape=jax.ShapeDtypeStruct((B, 1, 1024), jnp.float32),
        grid=grid,
        in_specs=[pl.BlockSpec((1, tile_n, 3), lambda b, n: (b, n, 0))]
                 + [const_spec(w) for w in weights],
        out_specs=pl.BlockSpec((1, 1, 1024), lambda b, n: (b, 0, 0)),
        compiler_params=pltpu.CompilerParams(
            dimension_semantics=("parallel", "arbitrary"),
            vmem_limit_bytes=32 * 1024 * 1024),
        cost_estimate=pl.CostEstimate(
            flops=int(flops), transcendentals=0,
            bytes_accessed=int(bytes_accessed)),
    )(pointcloud, *weights)
    return lat3.reshape(B, 1024)


# ---------------------------------------------------------------------------
# Decoder dense layers (column-tiled, weights resident, lane-dense stores)
# ---------------------------------------------------------------------------
def _dense_kernel(x_ref, w_ref, b_ref, o_ref, *, relu):
    y = jnp.dot(x_ref[...].astype(w_ref.dtype), w_ref[...],
                preferred_element_type=jnp.float32)
    y = y + b_ref[...]
    if relu:
        y = jnp.maximum(y, 0.0)
    o_ref[...] = y.astype(o_ref.dtype)


def dense(x, w, b, relu=False):
    """y = act(x @ w + b).  x: [B, K] f32, w: [K, C] bf16, b: [1, C] f32."""
    B, K = x.shape
    Kw, C = w.shape
    assert K == Kw
    tile_c = _pick_tile(C, (1024, 512, 256, 128))
    grid = (C // tile_c,)

    flops = 2 * B * K * C
    bytes_accessed = (int(x.size) * x.dtype.itemsize
                      + int(w.size) * w.dtype.itemsize
                      + int(b.size) * 4 + B * C * 4)

    return pl.pallas_call(
        functools.partial(_dense_kernel, relu=relu),
        out_shape=jax.ShapeDtypeStruct((B, C), jnp.float32),
        grid=grid,
        in_specs=[
            pl.BlockSpec((B, K), lambda j: (0, 0)),
            pl.BlockSpec((K, tile_c), lambda j: (0, j)),
            pl.BlockSpec((1, tile_c), lambda j: (0, j)),
        ],
        out_specs=pl.BlockSpec((B, tile_c), lambda j: (0, j)),
        compiler_params=pltpu.CompilerParams(
            dimension_semantics=("parallel",),
            vmem_limit_bytes=32 * 1024 * 1024),
        cost_estimate=pl.CostEstimate(
            flops=int(flops), transcendentals=0,
            bytes_accessed=int(bytes_accessed)),
    )(x, w, b)


# ---------------------------------------------------------------------------
# Parameter construction (deterministic, synthetic; PyTorch default init)
# ---------------------------------------------------------------------------
def _init_affine(key, cin, cout):
    kw, kb = jax.random.split(key)
    bound = 1.0 / float(cin) ** 0.5
    w = jax.random.uniform(kw, (cin, cout), jnp.float32, -bound, bound)
    b = jax.random.uniform(kb, (cout,), jnp.float32, -bound, bound)
    return w, b


def _fold_bn(w, b, gamma, beta, mean, var):
    scale = gamma / jnp.sqrt(var + BN_EPS)
    return w * scale[None, :], (b - mean) * scale + beta


def _default_bn(c):
    return (jnp.ones((c,), jnp.float32), jnp.zeros((c,), jnp.float32),
            jnp.zeros((c,), jnp.float32), jnp.ones((c,), jnp.float32))


def init_pointnet_autoencoder(key, num_points):
    ks = jax.random.split(key, 7)

    def pack(w, b, wdtype=jnp.bfloat16):
        return w.astype(wdtype), b.reshape(1, -1).astype(jnp.float32)

    w1a, b1a = _init_affine(ks[0], 3, 64)                                   # K=3: keep f32
    w1b, b1b = _fold_bn(*_init_affine(ks[1], 64, 64), *_default_bn(64))
    w2a, b2a = _init_affine(ks[2], 64, 64)
    w2b, b2b = _init_affine(ks[3], 64, 128)
    w2c, b2c = _fold_bn(*_init_affine(ks[4], 128, 1024), *_default_bn(1024))
    fc1_w, fc1_b = _fold_bn(*_init_affine(ks[5], 1024, num_points),
                            *_default_bn(num_points))
    fc2_w, fc2_b = _init_affine(ks[6], num_points, num_points * 3)

    enc = {}
    enc["w1a"], enc["b1a"] = pack(w1a, b1a, wdtype=jnp.float32)
    enc["w1b"], enc["b1b"] = pack(w1b, b1b)
    enc["w2a"], enc["b2a"] = pack(w2a, b2a)
    enc["w2b"], enc["b2b"] = pack(w2b, b2b)
    enc["w2c"], enc["b2c"] = pack(w2c, b2c)

    fc1_wp, fc1_bp = pack(fc1_w, fc1_b)
    fc2_wp, fc2_bp = pack(fc2_w, fc2_b)
    return {"enc": enc, "fc1_w": fc1_wp, "fc1_b": fc1_bp,
            "fc2_w": fc2_wp, "fc2_b": fc2_bp}


# ---------------------------------------------------------------------------
# Forward pass
# ---------------------------------------------------------------------------
@jax.jit
def pointnet_autoencoder(params, pointcloud):
    """pointcloud [B, N, 3] -> reconstructed pointcloud [B, N, 3]."""
    B, N, _ = pointcloud.shape
    lat = encode(params, pointcloud)                                  # [B, 1024]
    z = dense(lat, params["fc1_w"], params["fc1_b"], relu=True)      # [B, N]
    y = dense(z, params["fc2_w"], params["fc2_b"], relu=False)       # [B, 3N]
    return y.reshape(B, N, 3)                                        # free reshape


# ---------------------------------------------------------------------------
if __name__ == "__main__":
    B, N = 2, 256          # num_points = N (small demo shape, multiple of 128)

    key = jax.random.PRNGKey(0)
    k_data, k_params = jax.random.split(key)
    pointcloud = jax.random.normal(k_data, (B, N, 3), dtype=jnp.float32)
    params = init_pointnet_autoencoder(k_params, num_points=N)

    recon = pointnet_autoencoder(params, pointcloud)
    recon = jax.block_until_ready(recon)

    assert recon.shape == (B, N, 3), recon.shape
    assert recon.dtype == jnp.float32
    assert bool(jnp.all(jnp.isfinite(recon)))
    print("KERNEL_OK")
</pallas_src>

<mosaic_0001>
module attributes {stable_mosaic.version = 11 : i64} {
  func.func @_dense_kernel(%arg0: i32, %arg1: memref<2x1024xf32, #tpu.memory_space<vmem>>, %arg2: memref<1024x256xbf16, #tpu.memory_space<vmem>>, %arg3: memref<1x256xf32, #tpu.memory_space<vmem>>, %arg4: memref<2x256xf32, #tpu.memory_space<vmem>>) attributes {dimension_semantics = [#tpu.dimension_semantics<parallel>], iteration_bounds = array<i64: 1>, scalar_prefetch = 0 : i64, scratch_operands = 0 : i64, tpu.core_type = #tpu.core_type<tc>, window_params = [{pipeline_mode = #tpu.pipeline_mode<synchronous>, transform_indices = @transform_0, window_bounds = array<i64: 2, 1024>}, {transform_indices = @transform_1, window_bounds = array<i64: 1024, 256>}, {transform_indices = @transform_2, window_bounds = array<i64: 1, 256>}, {transform_indices = @transform_3, window_bounds = array<i64: 2, 256>}]} {
    %c0 = arith.constant 0 : index
    %c0_0 = arith.constant 0 : index
    %0 = vector.load %arg1[%c0, %c0_0] : memref<2x1024xf32, #tpu.memory_space<vmem>>, vector<2x1024xf32>
    %1 = arith.truncf %0 : vector<2x1024xf32> to vector<2x1024xbf16>
    %c0_1 = arith.constant 0 : index
    %c0_2 = arith.constant 0 : index
    %2 = vector.load %arg2[%c0_1, %c0_2] : memref<1024x256xbf16, #tpu.memory_space<vmem>>, vector<1024x256xbf16>
    %cst = arith.constant dense<0.000000e+00> : vector<2x256xf32>
    %3 = tpu.matmul %1, %2, %cst {dimension_numbers = #tpu.dot_dimension_numbers<[1], [0], [0], [1], [0, 0, 1, 1], [], []>} : vector<2x1024xbf16>, vector<1024x256xbf16>, vector<2x256xf32> -> vector<2x256xf32>
    %c0_3 = arith.constant 0 : index
    %c0_4 = arith.constant 0 : index
    %4 = vector.load %arg3[%c0_3, %c0_4] : memref<1x256xf32, #tpu.memory_space<vmem>>, vector<1x256xf32>
    %5 = vector.broadcast %4 : vector<1x256xf32> to vector<2x256xf32>
    %6 = arith.addf %3, %5 : vector<2x256xf32>
    %cst_5 = arith.constant 0.000000e+00 : f32
    %7 = vector.broadcast %cst_5 : f32 to vector<2x256xf32>
    %8 = arith.maximumf %6, %7 : vector<2x256xf32>
    %c0_6 = arith.constant 0 : index
    %c0_7 = arith.constant 0 : index
    %9 = vector.load %arg4[%c0_6, %c0_7] : memref<2x256xf32, #tpu.memory_space<vmem>>, vector<2x256xf32>
    tpu.vector_store %arg4[%c0_6, %c0_7], %8 {strides = array<i32>} : memref<2x256xf32, #tpu.memory_space<vmem>>, vector<2x256xf32>,
    return
  }
  func.func @transform_0(%arg0: i32) -> (i32, i32) {
    %c0_i32 = arith.constant 0 : i32
    %c0_i32_0 = arith.constant 0 : i32
    %c0_i32_1 = arith.constant 0 : i32
    return %c0_i32, %c0_i32_0 : i32, i32
  }
  func.func @transform_1(%arg0: i32) -> (i32, i32) {
    %c0_i32 = arith.constant 0 : i32
    %c0_i32_0 = arith.constant 0 : i32
    return %c0_i32, %arg0 : i32, i32
  }
  func.func @transform_2(%arg0: i32) -> (i32, i32) {
    %c0_i32 = arith.constant 0 : i32
    %c0_i32_0 = arith.constant 0 : i32
    return %c0_i32, %arg0 : i32, i32
  }
  func.func @transform_3(%arg0: i32) -> (i32, i32) {
    %c0_i32 = arith.constant 0 : i32
    %c0_i32_0 = arith.constant 0 : i32
    return %c0_i32, %arg0 : i32, i32
  }
}

module attributes {stable_mosaic.version = 11 : i64} {
  func.func @_encoder_kernel(%arg0: i32, %arg1: i32, %arg2: memref<1x256x3xf32, #tpu.memory_space<vmem>>, %arg3: memref<3x64xf32, #tpu.memory_space<vmem>>, %arg4: memref<1x64xf32, #tpu.memory_space<vmem>>, %arg5: memref<64x64xbf16, #tpu.memory_space<vmem>>, %arg6: memref<1x64xf32, #tpu.memory_space<vmem>>, %arg7: memref<64x64xbf16, #tpu.memory_space<vmem>>, %arg8: memref<1x64xf32, #tpu.memory_space<vmem>>, %arg9: memref<64x128xbf16, #tpu.memory_space<vmem>>, %arg10: memref<1x128xf32, #tpu.memory_space<vmem>>, %arg11: memref<128x1024xbf16, #tpu.memory_space<vmem>>, %arg12: memref<1x1024xf32, #tpu.memory_space<vmem>>, %arg13: memref<1x1x1024xf32, #tpu.memory_space<vmem>>) attributes {dimension_semantics = [#tpu.dimension_semantics<parallel>, #tpu.dimension_semantics<arbitrary>], iteration_bounds = array<i64: 2, 1>, scalar_prefetch = 0 : i64, scratch_operands = 0 : i64, tpu.core_type = #tpu.core_type<tc>, window_params = [{transform_indices = @transform_0, window_bounds = array<i64: 1, 256, 3>}, {pipeline_mode = #tpu.pipeline_mode<synchronous>, transform_indices = @transform_1, window_bounds = array<i64: 3, 64>}, {pipeline_mode = #tpu.pipeline_mode<synchronous>, transform_indices = @transform_2, window_bounds = array<i64: 1, 64>}, {pipeline_mode = #tpu.pipeline_mode<synchronous>, transform_indices = @transform_3, window_bounds = array<i64: 64, 64>}, {pipeline_mode = #tpu.pipeline_mode<synchronous>, transform_indices = @transform_4, window_bounds = array<i64: 1, 64>}, {pipeline_mode = #tpu.pipeline_mode<synchronous>, transform_indices = @transform_5, window_bounds = array<i64: 64, 64>}, {pipeline_mode = #tpu.pipeline_mode<synchronous>, transform_indices = @transform_6, window_bounds = array<i64: 1, 64>}, {pipeline_mode = #tpu.pipeline_mode<synchronous>, transform_indices = @transform_7, window_bounds = array<i64: 64, 128>}, {pipeline_mode = #tpu.pipeline_mode<synchronous>, transform_indices = @transform_8, window_bounds = array<i64: 1, 128>}, {pipeline_mode = #tpu.pipeline_mode<synchronous>, transform_indices = @transform_9, window_bounds = array<i64: 128, 1024>}, {pipeline_mode = #tpu.pipeline_mode<synchronous>, transform_indices = @transform_10, window_bounds = array<i64: 1, 1024>}, {transform_indices = @transform_11, window_bounds = array<i64: 1, 1, 1024>}]} {
    %c0_i32 = arith.constant 0 : i32
    %0 = arith.cmpi eq, %arg1, %c0_i32 : i32
    %1 = arith.extui %0 : i1 to i32
    %c0_i32_0 = arith.constant 0 : i32
    %2 = arith.cmpi ne, %1, %c0_i32_0 : i32
    scf.if %2 {
      %cst_36 = arith.constant 0xFF800000 : f32
      %44 = vector.broadcast %cst_36 : f32 to vector<1x1x1024xf32>
      %c0_37 = arith.constant 0 : index
      %c0_38 = arith.constant 0 : index
      %c0_39 = arith.constant 0 : index
      %45 = vector.load %arg13[%c0_37, %c0_38, %c0_39] : memref<1x1x1024xf32, #tpu.memory_space<vmem>>, vector<1x1x1024xf32>
      tpu.vector_store %arg13[%c0_37, %c0_38, %c0_39], %44 {strides = array<i32>} : memref<1x1x1024xf32, #tpu.memory_space<vmem>>, vector<1x1x1024xf32>,
    } else {
    }
    %c0 = arith.constant 0 : index
    %c0_1 = arith.constant 0 : index
    %c0_2 = arith.constant 0 : index
    %3 = vector.load %arg2[%c0, %c0_1, %c0_2] : memref<1x256x3xf32, #tpu.memory_space<vmem>>, vector<1x256x3xf32>
    %4 = vector.shape_cast %3 : vector<1x256x3xf32> to vector<256x3xf32>
    %c0_3 = arith.constant 0 : index
    %c0_4 = arith.constant 0 : index
    %5 = vector.load %arg3[%c0_3, %c0_4] : memref<3x64xf32, #tpu.memory_space<vmem>>, vector<3x64xf32>
    %cst = arith.constant dense<0.000000e+00> : vector<256x64xf32>
    %6 = tpu.matmul %4, %5, %cst {dimension_numbers = #tpu.dot_dimension_numbers<[1], [0], [0], [1], [0, 0, 1, 1], [], []>} : vector<256x3xf32>, vector<3x64xf32>, vector<256x64xf32> -> vector<256x64xf32>
    %c0_5 = arith.constant 0 : index
    %c0_6 = arith.constant 0 : index
    %7 = vector.load %arg4[%c0_5, %c0_6] : memref<1x64xf32, #tpu.memory_space<vmem>>, vector<1x64xf32>
    %8 = vector.broadcast %7 : vector<1x64xf32> to vector<256x64xf32>
    %9 = arith.addf %6, %8 : vector<256x64xf32>
    %10 = arith.truncf %9 : vector<256x64xf32> to vector<256x64xbf16>
    %c0_7 = arith.constant 0 : index
    %c0_8 = arith.constant 0 : index
    %11 = vector.load %arg5[%c0_7, %c0_8] : memref<64x64xbf16, #tpu.memory_space<vmem>>, vector<64x64xbf16>
    %cst_9 = arith.constant dense<0.000000e+00> : vector<256x64xf32>
    %12 = tpu.matmul %10, %11, %cst_9 {dimension_numbers = #tpu.dot_dimension_numbers<[1], [0], [0], [1], [0, 0, 1, 1], [], []>} : vector<256x64xbf16>, vector<64x64xbf16>, vector<256x64xf32> -> vector<256x64xf32>
    %c0_10 = arith.constant 0 : index
    %c0_11 = arith.constant 0 : index
    %13 = vector.load %arg6[%c0_10, %c0_11] : memref<1x64xf32, #tpu.memory_space<vmem>>, vector<1x64xf32>
    %14 = vector.broadcast %13 : vector<1x64xf32> to vector<256x64xf32>
    %15 = arith.addf %12, %14 : vector<256x64xf32>
    %cst_12 = arith.constant 0.000000e+00 : f32
    %16 = vector.broadcast %cst_12 : f32 to vector<256x64xf32>
    %17 = arith.maximumf %15, %16 : vector<256x64xf32>
    %18 = arith.truncf %17 : vector<256x64xf32> to vector<256x64xbf16>
    %c0_13 = arith.constant 0 : index
    %c0_14 = arith.constant 0 : index
    %19 = vector.load %arg7[%c0_13, %c0_14] : memref<64x64xbf16, #tpu.memory_space<vmem>>, vector<64x64xbf16>
    %cst_15 = arith.constant dense<0.000000e+00> : vector<256x64xf32>
    %20 = tpu.matmul %18, %19, %cst_15 {dimension_numbers = #tpu.dot_dimension_numbers<[1], [0], [0], [1], [0, 0, 1, 1], [], []>} : vector<256x64xbf16>, vector<64x64xbf16>, vector<256x64xf32> -> vector<256x64xf32>
    %c0_16 = arith.constant 0 : index
    %c0_17 = arith.constant 0 : index
    %21 = vector.load %arg8[%c0_16, %c0_17] : memref<1x64xf32, #tpu.memory_space<vmem>>, vector<1x64xf32>
    %22 = vector.broadcast %21 : vector<1x64xf32> to vector<256x64xf32>
    %23 = arith.addf %20, %22 : vector<256x64xf32>
    %24 = arith.truncf %23 : vector<256x64xf32> to vector<256x64xbf16>
    %c0_18 = arith.constant 0 : index
    %c0_19 = arith.constant 0 : index
    %25 = vector.load %arg9[%c0_18, %c0_19] : memref<64x128xbf16, #tpu.memory_space<vmem>>, vector<64x128xbf16>
    %cst_20 = arith.constant dense<0.000000e+00> : vector<256x128xf32>
    %26 = tpu.matmul %24, %25, %cst_20 {dimension_numbers = #tpu.dot_dimension_numbers<[1], [0], [0], [1], [0, 0, 1, 1], [], []>} : vector<256x64xbf16>, vector<64x128xbf16>, vector<256x128xf32> -> vector<256x128xf32>
    %c0_21 = arith.constant 0 : index
    %c0_22 = arith.constant 0 : index
    %27 = vector.load %arg10[%c0_21, %c0_22] : memref<1x128xf32, #tpu.memory_space<vmem>>, vector<1x128xf32>
    %28 = vector.broadcast %27 : vector<1x128xf32> to vector<256x128xf32>
    %29 = arith.addf %26, %28 : vector<256x128xf32>
    %30 = arith.truncf %29 : vector<256x128xf32> to vector<256x128xbf16>
    %c0_23 = arith.constant 0 : index
    %c0_24 = arith.constant 0 : index
    %31 = vector.load %arg11[%c0_23, %c0_24] : memref<128x1024xbf16, #tpu.memory_space<vmem>>, vector<128x1024xbf16>
    %cst_25 = arith.constant dense<0.000000e+00> : vector<256x1024xf32>
    %32 = tpu.matmul %30, %31, %cst_25 {dimension_numbers = #tpu.dot_dimension_numbers<[1], [0], [0], [1], [0, 0, 1, 1], [], []>} : vector<256x128xbf16>, vector<128x1024xbf16>, vector<256x1024xf32> -> vector<256x1024xf32>
    %c0_26 = arith.constant 0 : index
    %c0_27 = arith.constant 0 : index
    %33 = vector.load %arg12[%c0_26, %c0_27] : memref<1x1024xf32, #tpu.memory_space<vmem>>, vector<1x1024xf32>
    %34 = vector.broadcast %33 : vector<1x1024xf32> to vector<256x1024xf32>
    %35 = arith.addf %32, %34 : vector<256x1024xf32>
    %cst_28 = arith.constant 0.000000e+00 : f32
    %36 = vector.broadcast %cst_28 : f32 to vector<256x1024xf32>
    %37 = arith.maximumf %35, %36 : vector<256x1024xf32>
    %cst_29 = arith.constant dense<0xFF800000> : vector<1024xf32>
    %38 = vector.multi_reduction <maximumf>, %37, %cst_29 [0] : vector<256x1024xf32> to vector<1024xf32>
    %39 = vector.shape_cast %38 : vector<1024xf32> to vector<1x1024xf32>
    %40 = vector.shape_cast %39 : vector<1x1024xf32> to vector<1x1x1024xf32>
    %c0_30 = arith.constant 0 : index
    %c0_31 = arith.constant 0 : index
    %c0_32 = arith.constant 0 : index
    %41 = vector.load %arg13[%c0_30, %c0_31, %c0_32] : memref<1x1x1024xf32, #tpu.memory_space<vmem>>, vector<1x1x1024xf32>
    %42 = arith.maximumf %41, %40 : vector<1x1x1024xf32>
    %c0_33 = arith.constant 0 : index
    %c0_34 = arith.constant 0 : index
    %c0_35 = arith.constant 0 : index
    %43 = vector.load %arg13[%c0_33, %c0_34, %c0_35] : memref<1x1x1024xf32, #tpu.memory_space<vmem>>, vector<1x1x1024xf32>
    tpu.vector_store %arg13[%c0_33, %c0_34, %c0_35], %42 {strides = array<i32>} : memref<1x1x1024xf32, #tpu.memory_space<vmem>>, vector<1x1x1024xf32>,
    return
  }
  func.func @transform_0(%arg0: i32, %arg1: i32) -> (i32, i32, i32) {
    %c0_i32 = arith.constant 0 : i32
    %c0_i32_0 = arith.constant 0 : i32
    return %arg0, %arg1, %c0_i32 : i32, i32, i32
  }
  func.func @transform_1(%arg0: i32, %arg1: i32) -> (i32, i32) {
    %c0_i32 = arith.constant 0 : i32
    %c0_i32_0 = arith.constant 0 : i32
    %c0_i32_1 = arith.constant 0 : i32
    return %c0_i32, %c0_i32_0 : i32, i32
  }
  func.func @transform_2(%arg0: i32, %arg1: i32) -> (i32, i32) {
    %c0_i32 = arith.constant 0 : i32
    %c0_i32_0 = arith.constant 0 : i32
    %c0_i32_1 = arith.constant 0 : i32
    return %c0_i32, %c0_i32_0 : i32, i32
  }
  func.func @transform_3(%arg0: i32, %arg1: i32) -> (i32, i32) {
    %c0_i32 = arith.constant 0 : i32
    %c0_i32_0 = arith.constant 0 : i32
    %c0_i32_1 = arith.constant 0 : i32
    return %c0_i32, %c0_i32_0 : i32, i32
  }
  func.func @transform_4(%arg0: i32, %arg1: i32) -> (i32, i32) {
    %c0_i32 = arith.constant 0 : i32
    %c0_i32_0 = arith.constant 0 : i32
    %c0_i32_1 = arith.constant 0 : i32
    return %c0_i32, %c0_i32_0 : i32, i32
  }
  func.func @transform_5(%arg0: i32, %arg1: i32) -> (i32, i32) {
    %c0_i32 = arith.constant 0 : i32
    %c0_i32_0 = arith.constant 0 : i32
    %c0_i32_1 = arith.constant 0 : i32
    return %c0_i32, %c0_i32_0 : i32, i32
  }
  func.func @transform_6(%arg0: i32, %arg1: i32) -> (i32, i32) {
    %c0_i32 = arith.constant 0 : i32
    %c0_i32_0 = arith.constant 0 : i32
    %c0_i32_1 = arith.constant 0 : i32
    return %c0_i32, %c0_i32_0 : i32, i32
  }
  func.func @transform_7(%arg0: i32, %arg1: i32) -> (i32, i32) {
    %c0_i32 = arith.constant 0 : i32
    %c0_i32_0 = arith.constant 0 : i32
    %c0_i32_1 = arith.constant 0 : i32
    return %c0_i32, %c0_i32_0 : i32, i32
  }
  func.func @transform_8(%arg0: i32, %arg1: i32) -> (i32, i32) {
    %c0_i32 = arith.constant 0 : i32
    %c0_i32_0 = arith.constant 0 : i32
    %c0_i32_1 = arith.constant 0 : i32
    return %c0_i32, %c0_i32_0 : i32, i32
  }
  func.func @transform_9(%arg0: i32, %arg1: i32) -> (i32, i32) {
    %c0_i32 = arith.constant 0 : i32
    %c0_i32_0 = arith.constant 0 : i32
    %c0_i32_1 = arith.constant 0 : i32
    return %c0_i32, %c0_i32_0 : i32, i32
  }
  func.func @transform_10(%arg0: i32, %arg1: i32) -> (i32, i32) {
    %c0_i32 = arith.constant 0 : i32
    %c0_i32_0 = arith.constant 0 : i32
    %c0_i32_1 = arith.constant 0 : i32
    return %c0_i32, %c0_i32_0 : i32, i32
  }
  func.func @transform_11(%arg0: i32, %arg1: i32) -> (i32, i32, i32) {
    %c0_i32 = arith.constant 0 : i32
    %c0_i32_0 = arith.constant 0 : i32
    %c0_i32_1 = arith.constant 0 : i32
    return %arg0, %c0_i32, %c0_i32_0 : i32, i32, i32
  }
}

module attributes {stable_mosaic.version = 11 : i64} {
  func.func @_dense_kernel(%arg0: i32, %arg1: memref<2x256xf32, #tpu.memory_space<vmem>>, %arg2: memref<256x256xbf16, #tpu.memory_space<vmem>>, %arg3: memref<1x256xf32, #tpu.memory_space<vmem>>, %arg4: memref<2x256xf32, #tpu.memory_space<vmem>>) attributes {dimension_semantics = [#tpu.dimension_semantics<parallel>], iteration_bounds = array<i64: 3>, scalar_prefetch = 0 : i64, scratch_operands = 0 : i64, tpu.core_type = #tpu.core_type<tc>, window_params = [{pipeline_mode = #tpu.pipeline_mode<synchronous>, transform_indices = @transform_0, window_bounds = array<i64: 2, 256>}, {transform_indices = @transform_1, window_bounds = array<i64: 256, 256>}, {transform_indices = @transform_2, window_bounds = array<i64: 1, 256>}, {transform_indices = @transform_3, window_bounds = array<i64: 2, 256>}]} {
    %c0 = arith.constant 0 : index
    %c0_0 = arith.constant 0 : index
    %0 = vector.load %arg1[%c0, %c0_0] : memref<2x256xf32, #tpu.memory_space<vmem>>, vector<2x256xf32>
    %1 = arith.truncf %0 : vector<2x256xf32> to vector<2x256xbf16>
    %c0_1 = arith.constant 0 : index
    %c0_2 = arith.constant 0 : index
    %2 = vector.load %arg2[%c0_1, %c0_2] : memref<256x256xbf16, #tpu.memory_space<vmem>>, vector<256x256xbf16>
    %cst = arith.constant dense<0.000000e+00> : vector<2x256xf32>
    %3 = tpu.matmul %1, %2, %cst {dimension_numbers = #tpu.dot_dimension_numbers<[1], [0], [0], [1], [0, 0, 1, 1], [], []>} : vector<2x256xbf16>, vector<256x256xbf16>, vector<2x256xf32> -> vector<2x256xf32>
    %c0_3 = arith.constant 0 : index
    %c0_4 = arith.constant 0 : index
    %4 = vector.load %arg3[%c0_3, %c0_4] : memref<1x256xf32, #tpu.memory_space<vmem>>, vector<1x256xf32>
    %5 = vector.broadcast %4 : vector<1x256xf32> to vector<2x256xf32>
    %6 = arith.addf %3, %5 : vector<2x256xf32>
    %c0_5 = arith.constant 0 : index
    %c0_6 = arith.constant 0 : index
    %7 = vector.load %arg4[%c0_5, %c0_6] : memref<2x256xf32, #tpu.memory_space<vmem>>, vector<2x256xf32>
    tpu.vector_store %arg4[%c0_5, %c0_6], %6 {strides = array<i32>} : memref<2x256xf32, #tpu.memory_space<vmem>>, vector<2x256xf32>,
    return
  }
  func.func @transform_0(%arg0: i32) -> (i32, i32) {
    %c0_i32 = arith.constant 0 : i32
    %c0_i32_0 = arith.constant 0 : i32
    %c0_i32_1 = arith.constant 0 : i32
    return %c0_i32, %c0_i32_0 : i32, i32
  }
  func.func @transform_1(%arg0: i32) -> (i32, i32) {
    %c0_i32 = arith.constant 0 : i32
    %c0_i32_0 = arith.constant 0 : i32
    return %c0_i32, %arg0 : i32, i32
  }
  func.func @transform_2(%arg0: i32) -> (i32, i32) {
    %c0_i32 = arith.constant 0 : i32
    %c0_i32_0 = arith.constant 0 : i32
    return %c0_i32, %arg0 : i32, i32
  }
  func.func @transform_3(%arg0: i32) -> (i32, i32) {
    %c0_i32 = arith.constant 0 : i32
    %c0_i32_0 = arith.constant 0 : i32
    return %c0_i32, %arg0 : i32, i32
  }
}

</mosaic_0001>

<llo_original>
// kernel: pointnet_autoencoder.4
$region0: #{pointnet_autoencoder.4}
  #allocation0 [shape = 'u32[]', space=smem, size = 0x4, offset = 0x4, fixed_abs, tag = 'smem constant byte address 0x4 - core index']
  #allocation1 [shape = 'u32[144,128]{1,0:T(1,128)}', space=vmem, size = 0x12000, scoped, tag = 'internal scratch']
  %s0 = inlined_call_operand.vmem [shape: f32[2,1024], index: 0, kind: input, shape index: {}]
  %s1 = inlined_call_operand.vmem [shape: bf16[1024,256], index: 1, kind: input, shape index: {}]
  %s2 = inlined_call_operand.vmem [shape: f32[1,256], index: 2, kind: input, shape index: {}]
  %s3 = inlined_call_operand.vmem [shape: f32[2,256], index: 3, kind: output, shape index: {}]
  %s4 = sld [smem:[#allocation0]]
  $region22: #{pointnet_autoencoder.4} parent=0
    _
  %s6 = ssub.s32 1, %s4
  %s7 = scalar_select 0, %s6, %s4
  // Predicated region
  $region2: #{pointnet_autoencoder.4} parent=0 // pred_check
    _
  $region3: #{pointnet_autoencoder.4} parent=0 // pred_check_branch
    %9 = sbr.rel (0) target = $region5
  $region4: #{pointnet_autoencoder.4} parent=0 // pred_region
    _
  $region5: #{pointnet_autoencoder.4} parent=0 // pred_fallthru
    _
  // Predicated region
  $region6: #{pointnet_autoencoder.4} parent=0 // pred_check
    _
  $region7: #{pointnet_autoencoder.4} parent=0 // pred_check_branch
    %11 = sbr.rel (0) target = $region9
  $region8: #{pointnet_autoencoder.4} parent=0 // pred_region
    _
  $region9: #{pointnet_autoencoder.4} parent=0 // pred_fallthru
    _
  // Predicated region
  $region10: #{pointnet_autoencoder.4} parent=0 // pred_check
    _
  $region11: #{pointnet_autoencoder.4} parent=0 // pred_check_branch
    %13 = sbr.rel (0) target = $region13
  $region12: #{pointnet_autoencoder.4} parent=0 // pred_region
    _
  $region13: #{pointnet_autoencoder.4} parent=0 // pred_fallthru
    _
  %v14 = vld [vmem:[%s0] sm:$0xff]
  %v15 = vld [vmem:[%s0 + $0x8] sm:$0xff]
  %v18 = vcombine.high %v14, %v14
  %v20 = vunpack.c.l.s4 1983009808
  %v21 = vunpack.c.0.s8 %v20
  %v22 = vlaneseq
  %v23 = vshrl.u32 %v22, 7
  %v24 = vsub.s32 %v21, %v23
  %v25 = vrot.slane %v14, %v24
  %v27 = vunpack.c.l.s4 1983009808
  %v28 = vunpack.c.0.s8 %v27
  %v29 = vlaneseq
  %v30 = vshrl.u32 %v29, 7
  %v31 = vsub.s32 %v28, %v30
  %v32 = vrot.slane %v18, %v31
  %v33 = vcombine.high %v25, %v25
  %v34 = vcombine.high %v32, %v32
  %v35 = vcombine.high %v15, %v15
  %v37 = vunpack.c.l.s4 1983009808
  %v38 = vunpack.c.0.s8 %v37
  %v39 = vlaneseq
  %v40 = vshrl.u32 %v39, 7
  %v41 = vsub.s32 %v38, %v40
  %v42 = vrot.slane %v15, %v41
  %v44 = vunpack.c.l.s4 1983009808
  %v45 = vunpack.c.0.s8 %v44
  %v46 = vlaneseq
  %v47 = vshrl.u32 %v46, 7
  %v48 = vsub.s32 %v45, %v47
  %v49 = vrot.slane %v35, %v48
  %v50 = vcombine.high %v42, %v42
  %v51 = vcombine.high %v49, %v49
  %v60 = vpack.c.bf16 %v25, %v25
  %v61 = vpack.c.bf16 %v33, %v33
  %v62 = vpack.c.bf16 %v32, %v32
  %v63 = vpack.c.bf16 %v34, %v34
  %v64 = vpack.c.bf16 %v42, %v42
  %v65 = vpack.c.bf16 %v50, %v50
  %v66 = vpack.c.bf16 %v49, %v49
  %v67 = vpack.c.bf16 %v51, %v51
  %v68 = vld [vmem:[%s1] sm:$0xff]
  %v69 = vld [vmem:[%s1 + $0x8] sm:$0xff]
  %v70 = vld [vmem:[%s1 + $0x10] sm:$0xff]
  %v71 = vld [vmem:[%s1 + $0x18] sm:$0xff]
  %v72 = vld [vmem:[%s1 + $0x20] sm:$0xff]
  %v73 = vld [vmem:[%s1 + $0x28] sm:$0xff]
  %v74 = vld [vmem:[%s1 + $0x30] sm:$0xff]
  %v75 = vld [vmem:[%s1 + $0x38] sm:$0xff]
  %v76 = vld [vmem:[%s1 + $0x40] sm:$0xff]
  %v77 = vld [vmem:[%s1 + $0x48] sm:$0xff]
  %v78 = vld [vmem:[%s1 + $0x50] sm:$0xff]
  %v79 = vld [vmem:[%s1 + $0x58] sm:$0xff]
  %v80 = vld [vmem:[%s1 + $0x60] sm:$0xff]
  %v81 = vld [vmem:[%s1 + $0x68] sm:$0xff]
  %v82 = vld [vmem:[%s1 + $0x70] sm:$0xff]
  %v83 = vld [vmem:[%s1 + $0x78] sm:$0xff]
  %v84 = vld [vmem:[%s1 + $0x80] sm:$0xff]
  %v85 = vld [vmem:[%s1 + $0x88] sm:$0xff]
  %v86 = vld [vmem:[%s1 + $0x90] sm:$0xff]
  %v87 = vld [vmem:[%s1 + $0x98] sm:$0xff]
  %v88 = vld [vmem:[%s1 + $0xa0] sm:$0xff]
  %v89 = vld [vmem:[%s1 + $0xa8] sm:$0xff]
  %v90 = vld [vmem:[%s1 + $0xb0] sm:$0xff]
  %v91 = vld [vmem:[%s1 + $0xb8] sm:$0xff]
  %v92 = vld [vmem:[%s1 + $0xc0] sm:$0xff]
  %v93 = vld [vmem:[%s1 + $0xc8] sm:$0xff]
  %v94 = vld [vmem:[%s1 + $0xd0] sm:$0xff]
  %v95 = vld [vmem:[%s1 + $0xd8] sm:$0xff]
  %v96 = vld [vmem:[%s1 + $0xe0] sm:$0xff]
  %v97 = vld [vmem:[%s1 + $0xe8] sm:$0xff]
  %v98 = vld [vmem:[%s1 + $0xf0] sm:$0xff]
  %v99 = vld [vmem:[%s1 + $0xf8] sm:$0xff]
  %v100 = vld [vmem:[%s1 + $0x100] sm:$0xff]
  %v101 = vld [vmem:[%s1 + $0x108] sm:$0xff]
  %v102 = vld [vmem:[%s1 + $0x110] sm:$0xff]
  %v103 = vld [vmem:[%s1 + $0x118] sm:$0xff]
  %v104 = vld [vmem:[%s1 + $0x120] sm:$0xff]
  %v105 = vld [vmem:[%s1 + $0x128] sm:$0xff]
  %v106 = vld [vmem:[%s1 + $0x130] sm:$0xff]
  %v107 = vld [vmem:[%s1 + $0x138] sm:$0xff]
  %v108 = vld [vmem:[%s1 + $0x140] sm:$0xff]
  %v109 = vld [vmem:[%s1 + $0x148] sm:$0xff]
  %v110 = vld [vmem:[%s1 + $0x150] sm:$0xff]
  %v111 = vld [vmem:[%s1 + $0x158] sm:$0xff]
  %v112 = vld [vmem:[%s1 + $0x160] sm:$0xff]
  %v113 = vld [vmem:[%s1 + $0x168] sm:$0xff]
  %v114 = vld [vmem:[%s1 + $0x170] sm:$0xff]
  %v115 = vld [vmem:[%s1 + $0x178] sm:$0xff]
  %v116 = vld [vmem:[%s1 + $0x180] sm:$0xff]
  %v117 = vld [vmem:[%s1 + $0x188] sm:$0xff]
  %v118 = vld [vmem:[%s1 + $0x190] sm:$0xff]
  %v119 = vld [vmem:[%s1 + $0x198] sm:$0xff]
  %v120 = vld [vmem:[%s1 + $0x1a0] sm:$0xff]
  %v121 = vld [vmem:[%s1 + $0x1a8] sm:$0xff]
  %v122 = vld [vmem:[%s1 + $0x1b0] sm:$0xff]
  %v123 = vld [vmem:[%s1 + $0x1b8] sm:$0xff]
  %v124 = vld [vmem:[%s1 + $0x1c0] sm:$0xff]
  %v125 = vld [vmem:[%s1 + $0x1c8] sm:$0xff]
  %v126 = vld [vmem:[%s1 + $0x1d0] sm:$0xff]
  %v127 = vld [vmem:[%s1 + $0x1d8] sm:$0xff]
  %v128 = vld [vmem:[%s1 + $0x1e0] sm:$0xff]
  %v129 = vld [vmem:[%s1 + $0x1e8] sm:$0xff]
  %v130 = vld [vmem:[%s1 + $0x1f0] sm:$0xff]
  %v131 = vld [vmem:[%s1 + $0x1f8] sm:$0xff]
  %v132 = vld [vmem:[%s1 + $0x200] sm:$0xff]
  %v133 = vld [vmem:[%s1 + $0x208] sm:$0xff]
  %v134 = vld [vmem:[%s1 + $0x210] sm:$0xff]
  %v135 = vld [vmem:[%s1 + $0x218] sm:$0xff]
  %v136 = vld [vmem:[%s1 + $0x220] sm:$0xff]
  %v137 = vld [vmem:[%s1 + $0x228] sm:$0xff]
  %v138 = vld [vmem:[%s1 + $0x230] sm:$0xff]
  %v139 = vld [vmem:[%s1 + $0x238] sm:$0xff]
  %v140 = vld [vmem:[%s1 + $0x240] sm:$0xff]
  %v141 = vld [vmem:[%s1 + $0x248] sm:$0xff]
  %v142 = vld [vmem:[%s1 + $0x250] sm:$0xff]
  %v143 = vld [vmem:[%s1 + $0x258] sm:$0xff]
  %v144 = vld [vmem:[%s1 + $0x260] sm:$0xff]
  %v145 = vld [vmem:[%s1 + $0x268] sm:$0xff]
  %v146 = vld [vmem:[%s1 + $0x270] sm:$0xff]
  %v147 = vld [vmem:[%s1 + $0x278] sm:$0xff]
  %v148 = vld [vmem:[%s1 + $0x280] sm:$0xff]
  %v149 = vld [vmem:[%s1 + $0x288] sm:$0xff]
  %v150 = vld [vmem:[%s1 + $0x290] sm:$0xff]
  %v151 = vld [vmem:[%s1 + $0x298] sm:$0xff]
  %v152 = vld [vmem:[%s1 + $0x2a0] sm:$0xff]
  %v153 = vld [vmem:[%s1 + $0x2a8] sm:$0xff]
  %v154 = vld [vmem:[%s1 + $0x2b0] sm:$0xff]
  %v155 = vld [vmem:[%s1 + $0x2b8] sm:$0xff]
  %v156 = vld [vmem:[%s1 + $0x2c0] sm:$0xff]
  %v157 = vld [vmem:[%s1 + $0x2c8] sm:$0xff]
  %v158 = vld [vmem:[%s1 + $0x2d0] sm:$0xff]
  %v159 = vld [vmem:[%s1 + $0x2d8] sm:$0xff]
  %v160 = vld [vmem:[%s1 + $0x2e0] sm:$0xff]
  %v161 = vld [vmem:[%s1 + $0x2e8] sm:$0xff]
  %v162 = vld [vmem:[%s1 + $0x2f0] sm:$0xff]
  %v163 = vld [vmem:[%s1 + $0x2f8] sm:$0xff]
  %v164 = vld [vmem:[%s1 + $0x300] sm:$0xff]
  %v165 = vld [vmem:[%s1 + $0x308] sm:$0xff]
  %v166 = vld [vmem:[%s1 + $0x310] sm:$0xff]
  %v167 = vld [vmem:[%s1 + $0x318] sm:$0xff]
  %v168 = vld [vmem:[%s1 + $0x320] sm:$0xff]
  %v169 = vld [vmem:[%s1 + $0x328] sm:$0xff]
  %v170 = vld [vmem:[%s1 + $0x330] sm:$0xff]
  %v171 = vld [vmem:[%s1 + $0x338] sm:$0xff]
  %v172 = vld [vmem:[%s1 + $0x340] sm:$0xff]
  %v173 = vld [vmem:[%s1 + $0x348] sm:$0xff]
  %v174 = vld [vmem:[%s1 + $0x350] sm:$0xff]
  %v175 = vld [vmem:[%s1 + $0x358] sm:$0xff]
  %v176 = vld [vmem:[%s1 + $0x360] sm:$0xff]
  %v177 = vld [vmem:[%s1 + $0x368] sm:$0xff]
  %v178 = vld [vmem:[%s1 + $0x370] sm:$0xff]
  %v179 = vld [vmem:[%s1 + $0x378] sm:$0xff]
  %v180 = vld [vmem:[%s1 + $0x380] sm:$0xff]
  %v181 = vld [vmem:[%s1 + $0x388] sm:$0xff]
  %v182 = vld [vmem:[%s1 + $0x390] sm:$0xff]
  %v183 = vld [vmem:[%s1 + $0x398] sm:$0xff]
  %v184 = vld [vmem:[%s1 + $0x3a0] sm:$0xff]
  %v185 = vld [vmem:[%s1 + $0x3a8] sm:$0xff]
  %v186 = vld [vmem:[%s1 + $0x3b0] sm:$0xff]
  %v187 = vld [vmem:[%s1 + $0x3b8] sm:$0xff]
  %v188 = vld [vmem:[%s1 + $0x3c0] sm:$0xff]
  %v189 = vld [vmem:[%s1 + $0x3c8] sm:$0xff]
  %v190 = vld [vmem:[%s1 + $0x3d0] sm:$0xff]
  %v191 = vld [vmem:[%s1 + $0x3d8] sm:$0xff]
  %v192 = vld [vmem:[%s1 + $0x3e0] sm:$0xff]
  %v193 = vld [vmem:[%s1 + $0x3e8] sm:$0xff]
  %v194 = vld [vmem:[%s1 + $0x3f0] sm:$0xff]
  %v195 = vld [vmem:[%s1 + $0x3f8] sm:$0xff]
  %v196 = vld [vmem:[%s2] sm:$0x3]
  %v198 = vlaneseq
  %v199 = vshrl.u32 %v198, 7
  %v200 = vsub.s32 0, %v199
  %v201 = vrot.slane %v196, %v200
  %v202 = vlaneseq
  %v203 = vshrl.u32 %v202, 7
  %v204 = vsub.s32 1, %v203
  %v205 = vrot.slane %v196, %v204
  %v336 = vunpack.c.l.b16 %v68
  %v337 = vunpack.c.h.b16 %v68
  %v338 = vunpack.c.l.b16 %v69
  %v339 = vunpack.c.h.b16 %v69
  %v340 = vunpack.c.l.b16 %v70
  %v341 = vunpack.c.h.b16 %v70
  %v342 = vunpack.c.l.b16 %v71
  %v343 = vunpack.c.h.b16 %v71
  %v344 = vunpack.c.l.b16 %v72
  %v345 = vunpack.c.h.b16 %v72
  %v346 = vunpack.c.l.b16 %v73
  %v347 = vunpack.c.h.b16 %v73
  %v348 = vunpack.c.l.b16 %v74
  %v349 = vunpack.c.h.b16 %v74
  %v350 = vunpack.c.l.b16 %v75
  %v351 = vunpack.c.h.b16 %v75
  %v352 = vunpack.c.l.b16 %v76
  %v353 = vunpack.c.h.b16 %v76
  %v354 = vunpack.c.l.b16 %v77
  %v355 = vunpack.c.h.b16 %v77
  %v356 = vunpack.c.l.b16 %v78
  %v357 = vunpack.c.h.b16 %v78
  %v358 = vunpack.c.l.b16 %v79
  %v359 = vunpack.c.h.b16 %v79
  %v360 = vunpack.c.l.b16 %v80
  %v361 = vunpack.c.h.b16 %v80
  %v362 = vunpack.c.l.b16 %v81
  %v363 = vunpack.c.h.b16 %v81
  %v364 = vunpack.c.l.b16 %v82
  %v365 = vunpack.c.h.b16 %v82
  %v366 = vunpack.c.l.b16 %v83
  %v367 = vunpack.c.h.b16 %v83
  %v368 = vunpack.c.l.b16 %v84
  %v369 = vunpack.c.h.b16 %v84
  %v370 = vunpack.c.l.b16 %v85
  %v371 = vunpack.c.h.b16 %v85
  %v372 = vunpack.c.l.b16 %v86
  %v373 = vunpack.c.h.b16 %v86
  %v374 = vunpack.c.l.b16 %v87
  %v375 = vunpack.c.h.b16 %v87
  %v376 = vunpack.c.l.b16 %v88
  %v377 = vunpack.c.h.b16 %v88
  %v378 = vunpack.c.l.b16 %v89
  %v379 = vunpack.c.h.b16 %v89
  %v380 = vunpack.c.l.b16 %v90
  %v381 = vunpack.c.h.b16 %v90
  %v382 = vunpack.c.l.b16 %v91
  %v383 = vunpack.c.h.b16 %v91
  %v384 = vunpack.c.l.b16 %v92
  %v385 = vunpack.c.h.b16 %v92
  %v386 = vunpack.c.l.b16 %v93
  %v387 = vunpack.c.h.b16 %v93
  %v388 = vunpack.c.l.b16 %v94
  %v389 = vunpack.c.h.b16 %v94
  %v390 = vunpack.c.l.b16 %v95
  %v391 = vunpack.c.h.b16 %v95
  %v392 = vunpack.c.l.b16 %v96
  %v393 = vunpack.c.h.b16 %v96
  %v394 = vunpack.c.l.b16 %v97
  %v395 = vunpack.c.h.b16 %v97
  %v396 = vunpack.c.l.b16 %v98
  %v397 = vunpack.c.h.b16 %v98
  %v398 = vunpack.c.l.b16 %v99
  %v399 = vunpack.c.h.b16 %v99
  %v400 = vunpack.c.l.b16 %v100
  %v401 = vunpack.c.h.b16 %v100
  %v402 = vunpack.c.l.b16 %v101
  %v403 = vunpack.c.h.b16 %v101
  %v404 = vunpack.c.l.b16 %v102
  %v405 = vunpack.c.h.b16 %v102
  %v406 = vunpack.c.l.b16 %v103
  %v407 = vunpack.c.h.b16 %v103
  %v408 = vunpack.c.l.b16 %v104
  %v409 = vunpack.c.h.b16 %v104
  %v410 = vunpack.c.l.b16 %v105
  %v411 = vunpack.c.h.b16 %v105
  %v412 = vunpack.c.l.b16 %v106
  %v413 = vunpack.c.h.b16 %v106
  %v414 = vunpack.c.l.b16 %v107
  %v415 = vunpack.c.h.b16 %v107
  %v416 = vunpack.c.l.b16 %v108
  %v417 = vunpack.c.h.b16 %v108
  %v418 = vunpack.c.l.b16 %v109
  %v419 = vunpack.c.h.b16 %v109
  %v420 = vunpack.c.l.b16 %v110
  %v421 = vunpack.c.h.b16 %v110
  %v422 = vunpack.c.l.b16 %v111
  %v423 = vunpack.c.h.b16 %v111
  %v424 = vunpack.c.l.b16 %v112
  %v425 = vunpack.c.h.b16 %v112
  %v426 = vunpack.c.l.b16 %v113
  %v427 = vunpack.c.h.b16 %v113
  %v428 = vunpack.c.l.b16 %v114
  %v429 = vunpack.c.h.b16 %v114
  %v430 = vunpack.c.l.b16 %v115
  %v431 = vunpack.c.h.b16 %v115
  %v432 = vunpack.c.l.b16 %v116
  %v433 = vunpack.c.h.b16 %v116
  %v434 = vunpack.c.l.b16 %v117
  %v435 = vunpack.c.h.b16 %v117
  %v436 = vunpack.c.l.b16 %v118
  %v437 = vunpack.c.h.b16 %v118
  %v438 = vunpack.c.l.b16 %v119
  %v439 = vunpack.c.h.b16 %v119
  %v440 = vunpack.c.l.b16 %v120
  %v441 = vunpack.c.h.b16 %v120
  %v442 = vunpack.c.l.b16 %v121
  %v443 = vunpack.c.h.b16 %v121
  %v444 = vunpack.c.l.b16 %v122
  %v445 = vunpack.c.h.b16 %v122
  %v446 = vunpack.c.l.b16 %v123
  %v447 = vunpack.c.h.b16 %v123
  %v448 = vunpack.c.l.b16 %v124
  %v449 = vunpack.c.h.b16 %v124
  %v450 = vunpack.c.l.b16 %v125
  %v451 = vunpack.c.h.b16 %v125
  %v452 = vunpack.c.l.b16 %v126
  %v453 = vunpack.c.h.b16 %v126
  %v454 = vunpack.c.l.b16 %v127
  %v455 = vunpack.c.h.b16 %v127
  %v456 = vunpack.c.l.b16 %v128
  %v457 = vunpack.c.h.b16 %v128
  %v458 = vunpack.c.l.b16 %v129
  %v459 = vunpack.c.h.b16 %v129
  %v460 = vunpack.c.l.b16 %v130
  %v461 = vunpack.c.h.b16 %v130
  %v462 = vunpack.c.l.b16 %v131
  %v463 = vunpack.c.h.b16 %v131
  %v464 = vunpack.c.l.b16 %v132
  %v465 = vunpack.c.h.b16 %v132
  %v466 = vunpack.c.l.b16 %v133
  %v467 = vunpack.c.h.b16 %v133
  %v468 = vunpack.c.l.b16 %v134
  %v469 = vunpack.c.h.b16 %v134
  %v470 = vunpack.c.l.b16 %v135
  %v471 = vunpack.c.h.b16 %v135
  %v472 = vunpack.c.l.b16 %v136
  %v473 = vunpack.c.h.b16 %v136
  %v474 = vunpack.c.l.b16 %v137
  %v475 = vunpack.c.h.b16 %v137
  %v476 = vunpack.c.l.b16 %v138
  %v477 = vunpack.c.h.b16 %v138
  %v478 = vunpack.c.l.b16 %v139
  %v479 = vunpack.c.h.b16 %v139
  %v480 = vunpack.c.l.b16 %v140
  %v481 = vunpack.c.h.b16 %v140
  %v482 = vunpack.c.l.b16 %v141
  %v483 = vunpack.c.h.b16 %v141
  %v484 = vunpack.c.l.b16 %v142
  %v485 = vunpack.c.h.b16 %v142
  %v486 = vunpack.c.l.b16 %v143
  %v487 = vunpack.c.h.b16 %v143
  %v488 = vunpack.c.l.b16 %v144
  %v489 = vunpack.c.h.b16 %v144
  %v490 = vunpack.c.l.b16 %v145
  %v491 = vunpack.c.h.b16 %v145
  %v492 = vunpack.c.l.b16 %v146
  %v493 = vunpack.c.h.b16 %v146
  %v494 = vunpack.c.l.b16 %v147
  %v495 = vunpack.c.h.b16 %v147
  %v496 = vunpack.c.l.b16 %v148
  %v497 = vunpack.c.h.b16 %v148
  %v498 = vunpack.c.l.b16 %v149
  %v499 = vunpack.c.h.b16 %v149
  %v500 = vunpack.c.l.b16 %v150
  %v501 = vunpack.c.h.b16 %v150
  %v502 = vunpack.c.l.b16 %v151
  %v503 = vunpack.c.h.b16 %v151
  %v504 = vunpack.c.l.b16 %v152
  %v505 = vunpack.c.h.b16 %v152
  %v506 = vunpack.c.l.b16 %v153
  %v507 = vunpack.c.h.b16 %v153
  %v508 = vunpack.c.l.b16 %v154
  %v509 = vunpack.c.h.b16 %v154
  %v510 = vunpack.c.l.b16 %v155
  %v511 = vunpack.c.h.b16 %v155
  %v512 = vunpack.c.l.b16 %v156
  %v513 = vunpack.c.h.b16 %v156
  %v514 = vunpack.c.l.b16 %v157
  %v515 = vunpack.c.h.b16 %v157
  %v516 = vunpack.c.l.b16 %v158
  %v517 = vunpack.c.h.b16 %v158
  %v518 = vunpack.c.l.b16 %v159
  %v519 = vunpack.c.h.b16 %v159
  %v520 = vunpack.c.l.b16 %v160
  %v521 = vunpack.c.h.b16 %v160
  %v522 = vunpack.c.l.b16 %v161
  %v523 = vunpack.c.h.b16 %v161
  %v524 = vunpack.c.l.b16 %v162
  %v525 = vunpack.c.h.b16 %v162
  %v526 = vunpack.c.l.b16 %v163
  %v527 = vunpack.c.h.b16 %v163
  %v528 = vunpack.c.l.b16 %v164
  %v529 = vunpack.c.h.b16 %v164
  %v530 = vunpack.c.l.b16 %v165
  %v531 = vunpack.c.h.b16 %v165
  %v532 = vunpack.c.l.b16 %v166
  %v533 = vunpack.c.h.b16 %v166
  %v534 = vunpack.c.l.b16 %v167
  %v535 = vunpack.c.h.b16 %v167
  %v536 = vunpack.c.l.b16 %v168
  %v537 = vunpack.c.h.b16 %v168
  %v538 = vunpack.c.l.b16 %v169
  %v539 = vunpack.c.h.b16 %v169
  %v540 = vunpack.c.l.b16 %v170
  %v541 = vunpack.c.h.b16 %v170
  %v542 = vunpack.c.l.b16 %v171
  %v543 = vunpack.c.h.b16 %v171
  %v544 = vunpack.c.l.b16 %v172
  %v545 = vunpack.c.h.b16 %v172
  %v546 = vunpack.c.l.b16 %v173
  %v547 = vunpack.c.h.b16 %v173
  %v548 = vunpack.c.l.b16 %v174
  %v549 = vunpack.c.h.b16 %v174
  %v550 = vunpack.c.l.b16 %v175
  %v551 = vunpack.c.h.b16 %v175
  %v552 = vunpack.c.l.b16 %v176
  %v553 = vunpack.c.h.b16 %v176
  %v554 = vunpack.c.l.b16 %v177
  %v555 = vunpack.c.h.b16 %v177
  %v556 = vunpack.c.l.b16 %v178
  %v557 = vunpack.c.h.b16 %v178
  %v558 = vunpack.c.l.b16 %v179
  %v559 = vunpack.c.h.b16 %v179
  %v560 = vunpack.c.l.b16 %v180
  %v561 = vunpack.c.h.b16 %v180
  %v562 = vunpack.c.l.b16 %v181
  %v563 = vunpack.c.h.b16 %v181
  %v564 = vunpack.c.l.b16 %v182
  %v565 = vunpack.c.h.b16 %v182
  %v566 = vunpack.c.l.b16 %v183
  %v567 = vunpack.c.h.b16 %v183
  %v568 = vunpack.c.l.b16 %v184
  %v569 = vunpack.c.h.b16 %v184
  %v570 = vunpack.c.l.b16 %v185
  %v571 = vunpack.c.h.b16 %v185
  %v572 = vunpack.c.l.b16 %v186
  %v573 = vunpack.c.h.b16 %v186
  %v574 = vunpack.c.l.b16 %v187
  %v575 = vunpack.c.h.b16 %v187
  %v576 = vunpack.c.l.b16 %v188
  %v577 = vunpack.c.h.b16 %v188
  %v578 = vunpack.c.l.b16 %v189
  %v579 = vunpack.c.h.b16 %v189
  %v580 = vunpack.c.l.b16 %v190
  %v581 = vunpack.c.h.b16 %v190
  %v582 = vunpack.c.l.b16 %v191
  %v583 = vunpack.c.h.b16 %v191
  %v584 = vunpack.c.l.b16 %v192
  %v585 = vunpack.c.h.b16 %v192
  %v586 = vunpack.c.l.b16 %v193
  %v587 = vunpack.c.h.b16 %v193
  %v588 = vunpack.c.l.b16 %v194
  %v589 = vunpack.c.h.b16 %v194
  %v590 = vunpack.c.l.b16 %v195
  %v591 = vunpack.c.h.b16 %v195
  %v592 = vpack.c.b16 %v338, %v336
  %v593 = vpack.c.b16 %v339, %v337
  %v594 = vpack.c.b16 %v342, %v340
  %v595 = vpack.c.b16 %v343, %v341
  %v596 = vpack.c.b16 %v346, %v344
  %v597 = vpack.c.b16 %v347, %v345
  %v598 = vpack.c.b16 %v350, %v348
  %v599 = vpack.c.b16 %v351, %v349
  %v600 = vpack.c.b16 %v354, %v352
  %v601 = vpack.c.b16 %v355, %v353
  %v602 = vpack.c.b16 %v358, %v356
  %v603 = vpack.c.b16 %v359, %v357
  %v604 = vpack.c.b16 %v362, %v360
  %v605 = vpack.c.b16 %v363, %v361
  %v606 = vpack.c.b16 %v366, %v364
  %v607 = vpack.c.b16 %v367, %v365
  %v608 = vpack.c.b16 %v370, %v368
  %v609 = vpack.c.b16 %v371, %v369
  %v610 = vpack.c.b16 %v374, %v372
  %v611 = vpack.c.b16 %v375, %v373
  %v612 = vpack.c.b16 %v378, %v376
  %v613 = vpack.c.b16 %v379, %v377
  %v614 = vpack.c.b16 %v382, %v380
  %v615 = vpack.c.b16 %v383, %v381
  %v616 = vpack.c.b16 %v386, %v384
  %v617 = vpack.c.b16 %v387, %v385
  %v618 = vpack.c.b16 %v390, %v388
  %v619 = vpack.c.b16 %v391, %v389
  %v620 = vpack.c.b16 %v394, %v392
  %v621 = vpack.c.b16 %v395, %v393
  %v622 = vpack.c.b16 %v398, %v396
  %v623 = vpack.c.b16 %v399, %v397
  %v624 = vpack.c.b16 %v402, %v400
  %v625 = vpack.c.b16 %v403, %v401
  %v626 = vpack.c.b16 %v406, %v404
  %v627 = vpack.c.b16 %v407, %v405
  %v628 = vpack.c.b16 %v410, %v408
  %v629 = vpack.c.b16 %v411, %v409
  %v630 = vpack.c.b16 %v414, %v412
  %v631 = vpack.c.b16 %v415, %v413
  %v632 = vpack.c.b16 %v418, %v416
  %v633 = vpack.c.b16 %v419, %v417
  %v634 = vpack.c.b16 %v422, %v420
  %v635 = vpack.c.b16 %v423, %v421
  %v636 = vpack.c.b16 %v426, %v424
  %v637 = vpack.c.b16 %v427, %v425
  %v638 = vpack.c.b16 %v430, %v428
  %v639 = vpack.c.b16 %v431, %v429
  %v640 = vpack.c.b16 %v434, %v432
  %v641 = vpack.c.b16 %v435, %v433
  %v642 = vpack.c.b16 %v438, %v436
  %v643 = vpack.c.b16 %v439, %v437
  %v644 = vpack.c.b16 %v442, %v440
  %v645 = vpack.c.b16 %v443, %v441
  %v646 = vpack.c.b16 %v446, %v444
  %v647 = vpack.c.b16 %v447, %v445
  %v648 = vpack.c.b16 %v450, %v448
  %v649 = vpack.c.b16 %v451, %v449
  %v650 = vpack.c.b16 %v454, %v452
  %v651 = vpack.c.b16 %v455, %v453
  %v652 = vpack.c.b16 %v458, %v456
  %v653 = vpack.c.b16 %v459, %v457
  %v654 = vpack.c.b16 %v462, %v460
  %v655 = vpack.c.b16 %v463, %v461
  %v656 = vpack.c.b16 %v466, %v464
  %v657 = vpack.c.b16 %v467, %v465
  %v658 = vpack.c.b16 %v470, %v468
  %v659 = vpack.c.b16 %v471, %v469
  %v660 = vpack.c.b16 %v474, %v472
  %v661 = vpack.c.b16 %v475, %v473
  %v662 = vpack.c.b16 %v478, %v476
  %v663 = vpack.c.b16 %v479, %v477
  %v664 = vpack.c.b16 %v482, %v480
  %v665 = vpack.c.b16 %v483, %v481
  %v666 = vpack.c.b16 %v486, %v484
  %v667 = vpack.c.b16 %v487, %v485
  %v668 = vpack.c.b16 %v490, %v488
  %v669 = vpack.c.b16 %v491, %v489
  %v670 = vpack.c.b16 %v494, %v492
  %v671 = vpack.c.b16 %v495, %v493
  %v672 = vpack.c.b16 %v498, %v496
  %v673 = vpack.c.b16 %v499, %v497
  %v674 = vpack.c.b16 %v502, %v500
  %v675 = vpack.c.b16 %v503, %v501
  %v676 = vpack.c.b16 %v506, %v504
  %v677 = vpack.c.b16 %v507, %v505
  %v678 = vpack.c.b16 %v510, %v508
  %v679 = vpack.c.b16 %v511, %v509
  %v680 = vpack.c.b16 %v514, %v512
  %v681 = vpack.c.b16 %v515, %v513
  %v682 = vpack.c.b16 %v518, %v516
  %v683 = vpack.c.b16 %v519, %v517
  %v684 = vpack.c.b16 %v522, %v520
  %v685 = vpack.c.b16 %v523, %v521
  %v686 = vpack.c.b16 %v526, %v524
  %v687 = vpack.c.b16 %v527, %v525
  %v688 = vpack.c.b16 %v530, %v528
  %v689 = vpack.c.b16 %v531, %v529
  %v690 = vpack.c.b16 %v534, %v532
  %v691 = vpack.c.b16 %v535, %v533
  %v692 = vpack.c.b16 %v538, %v536
  %v693 = vpack.c.b16 %v539, %v537
  %v694 = vpack.c.b16 %v542, %v540
  %v695 = vpack.c.b16 %v543, %v541
  %v696 = vpack.c.b16 %v546, %v544
  %v697 = vpack.c.b16 %v547, %v545
  %v698 = vpack.c.b16 %v550, %v548
  %v699 = vpack.c.b16 %v551, %v549
  %v700 = vpack.c.b16 %v554, %v552
  %v701 = vpack.c.b16 %v555, %v553
  %v702 = vpack.c.b16 %v558, %v556
  %v703 = vpack.c.b16 %v559, %v557
  %v704 = vpack.c.b16 %v562, %v560
  %v705 = vpack.c.b16 %v563, %v561
  %v706 = vpack.c.b16 %v566, %v564
  %v707 = vpack.c.b16 %v567, %v565
  %v708 = vpack.c.b16 %v570, %v568
  %v709 = vpack.c.b16 %v571, %v569
  %v710 = vpack.c.b16 %v574, %v572
  %v711 = vpack.c.b16 %v575, %v573
  %v712 = vpack.c.b16 %v578, %v576
  %v713 = vpack.c.b16 %v579, %v577
  %v714 = vpack.c.b16 %v582, %v580
  %v715 = vpack.c.b16 %v583, %v581
  %v716 = vpack.c.b16 %v586, %v584
  %v717 = vpack.c.b16 %v587, %v585
  %v718 = vpack.c.b16 %v590, %v588
  %v719 = vpack.c.b16 %v591, %v589
  %848 = vmatprep.subr.bf16.mxu0 %v593
  %849 = vmatpush1.bf16.msra.mxu0 %v592
  %850 = vmatprep.subr.bf16.mxu0 %v595
  %851 = vmatpush1.bf16.msra.mxu0 %v594
  %852 = vmatprep.subr.bf16.mxu0 %v597
  %853 = vmatpush1.bf16.msra.mxu0 %v596
  %854 = vmatprep.subr.bf16.mxu0 %v599
  %855 = vmatpush1.bf16.msra.mxu0 %v598
  %856 = vmatprep.subr.bf16.mxu0 %v601
  %857 = vmatpush1.bf16.msra.mxu0 %v600
  %858 = vmatprep.subr.bf16.mxu0 %v603
  %859 = vmatpush1.bf16.msra.mxu0 %v602
  %860 = vmatprep.subr.bf16.mxu0 %v605
  %861 = vmatpush1.bf16.msra.mxu0 %v604
  %862 = vmatprep.subr.bf16.mxu0 %v607
  %863 = vmatpush1.bf16.msra.mxu0 %v606
  %864 = vmatprep.subr.bf16.mxu0 %v609
  %865 = vmatpush1.bf16.msra.mxu0 %v608
  %866 = vmatprep.subr.bf16.mxu0 %v611
  %867 = vmatpush1.bf16.msra.mxu0 %v610
  %868 = vmatprep.subr.bf16.mxu0 %v613
  %869 = vmatpush1.bf16.msra.mxu0 %v612
  %870 = vmatprep.subr.bf16.mxu0 %v615
  %871 = vmatpush1.bf16.msra.mxu0 %v614
  %872 = vmatprep.subr.bf16.mxu0 %v617
  %873 = vmatpush1.bf16.msra.mxu0 %v616
  %874 = vmatprep.subr.bf16.mxu0 %v619
  %875 = vmatpush1.bf16.msra.mxu0 %v618
  %876 = vmatprep.subr.bf16.mxu0 %v621
  %877 = vmatpush1.bf16.msra.mxu0 %v620
  %878 = vmatprep.subr.bf16.mxu0 %v623
  %879 = vmatpush1.bf16.msra.mxu0 %v622
  %880 = vmatprep.mubr.bf16.mxu0 %v61
  %881 = vmatmul.mubr.bf16.gmra.mrb[0].mxu0 %v60
  %v882 = vpop.f32.mrb[0].mxu0
  %v883 = vadd.f32 %v201, %v882
  %v884 = vpop.f32.mrb[0].mxu0
  %v885 = vadd.f32 %v205, %v884
  %v886 = vpop.f32.mrb[0].mxu0
  %v887 = vpop.f32.mrb[0].mxu0
  %888 = vdwg.mxu0
  %889 = vmatprep.subr.bf16.mxu0 %v625
  %890 = vmatpush1.bf16.msra.mxu0 %v624
  %891 = vmatprep.subr.bf16.mxu0 %v627
  %892 = vmatpush1.bf16.msra.mxu0 %v626
  %893 = vmatprep.subr.bf16.mxu0 %v629
  %894 = vmatpush1.bf16.msra.mxu0 %v628
  %895 = vmatprep.subr.bf16.mxu0 %v631
  %896 = vmatpush1.bf16.msra.mxu0 %v630
  %897 = vmatprep.subr.bf16.mxu0 %v633
  %898 = vmatpush1.bf16.msra.mxu0 %v632
  %899 = vmatprep.subr.bf16.mxu0 %v635
  %900 = vmatpush1.bf16.msra.mxu0 %v634
  %901 = vmatprep.subr.bf16.mxu0 %v637
  %902 = vmatpush1.bf16.msra.mxu0 %v636
  %903 = vmatprep.subr.bf16.mxu0 %v639
  %904 = vmatpush1.bf16.msra.mxu0 %v638
  %905 = vmatprep.subr.bf16.mxu0 %v641
  %906 = vmatpush1.bf16.msra.mxu0 %v640
  %907 = vmatprep.subr.bf16.mxu0 %v643
  %908 = vmatpush1.bf16.msra.mxu0 %v642
  %909 = vmatprep.subr.bf16.mxu0 %v645
  %910 = vmatpush1.bf16.msra.mxu0 %v644
  %911 = vmatprep.subr.bf16.mxu0 %v647
  %912 = vmatpush1.bf16.msra.mxu0 %v646
  %913 = vmatprep.subr.bf16.mxu0 %v649
  %914 = vmatpush1.bf16.msra.mxu0 %v648
  %915 = vmatprep.subr.bf16.mxu0 %v651
  %916 = vmatpush1.bf16.msra.mxu0 %v650
  %917 = vmatprep.subr.bf16.mxu0 %v653
  %918 = vmatpush1.bf16.msra.mxu0 %v652
  %919 = vmatprep.subr.bf16.mxu0 %v655
  %920 = vmatpush1.bf16.msra.mxu0 %v654
  %921 = vmatprep.mubr.bf16.mxu0 %v63
  %922 = vmatmul.mubr.bf16.gmra.mrb[0].mxu0 %v62
  %v923 = vpop.f32.mrb[0].mxu0
  %v924 = vadd.f32 %v883, %v923
  %v925 = vpop.f32.mrb[0].mxu0
  %v926 = vadd.f32 %v885, %v925
  %v927 = vpop.f32.mrb[0].mxu0
  %v928 = vpop.f32.mrb[0].mxu0
  %929 = vdwg.mxu0
  %930 = vmatprep.subr.bf16.mxu0 %v657
  %931 = vmatpush1.bf16.msra.mxu0 %v656
  %932 = vmatprep.subr.bf16.mxu0 %v659
  %933 = vmatpush1.bf16.msra.mxu0 %v658
  %934 = vmatprep.subr.bf16.mxu0 %v661
  %935 = vmatpush1.bf16.msra.mxu0 %v660
  %936 = vmatprep.subr.bf16.mxu0 %v663
  %937 = vmatpush1.bf16.msra.mxu0 %v662
  %938 = vmatprep.subr.bf16.mxu0 %v665
  %939 = vmatpush1.bf16.msra.mxu0 %v664
  %940 = vmatprep.subr.bf16.mxu0 %v667
  %941 = vmatpush1.bf16.msra.mxu0 %v666
  %942 = vmatprep.subr.bf16.mxu0 %v669
  %943 = vmatpush1.bf16.msra.mxu0 %v668
  %944 = vmatprep.subr.bf16.mxu0 %v671
  %945 = vmatpush1.bf16.msra.mxu0 %v670
  %946 = vmatprep.subr.bf16.mxu0 %v673
  %947 = vmatpush1.bf16.msra.mxu0 %v672
  %948 = vmatprep.subr.bf16.mxu0 %v675
  %949 = vmatpush1.bf16.msra.mxu0 %v674
  %950 = vmatprep.subr.bf16.mxu0 %v677
  %951 = vmatpush1.bf16.msra.mxu0 %v676
  %952 = vmatprep.subr.bf16.mxu0 %v679
  %953 = vmatpush1.bf16.msra.mxu0 %v678
  %954 = vmatprep.subr.bf16.mxu0 %v681
  %955 = vmatpush1.bf16.msra.mxu0 %v680
  %956 = vmatprep.subr.bf16.mxu0 %v683
  %957 = vmatpush1.bf16.msra.mxu0 %v682
  %958 = vmatprep.subr.bf16.mxu0 %v685
  %959 = vmatpush1.bf16.msra.mxu0 %v684
  %960 = vmatprep.subr.bf16.mxu0 %v687
  %961 = vmatpush1.bf16.msra.mxu0 %v686
  %962 = vmatprep.mubr.bf16.mxu0 %v65
  %963 = vmatmul.mubr.bf16.gmra.mrb[0].mxu0 %v64
  %v964 = vpop.f32.mrb[0].mxu0
  %v965 = vadd.f32 %v924, %v964
  %v966 = vpop.f32.mrb[0].mxu0
  %v967 = vadd.f32 %v926, %v966
  %v968 = vpop.f32.mrb[0].mxu0
  %v969 = vpop.f32.mrb[0].mxu0
  %970 = vdwg.mxu0
  %971 = vmatprep.subr.bf16.mxu0 %v689
  %972 = vmatpush1.bf16.msra.mxu0 %v688
  %973 = vmatprep.subr.bf16.mxu0 %v691
  %974 = vmatpush1.bf16.msra.mxu0 %v690
  %975 = vmatprep.subr.bf16.mxu0 %v693
  %976 = vmatpush1.bf16.msra.mxu0 %v692
  %977 = vmatprep.subr.bf16.mxu0 %v695
  %978 = vmatpush1.bf16.msra.mxu0 %v694
  %979 = vmatprep.subr.bf16.mxu0 %v697
  %980 = vmatpush1.bf16.msra.mxu0 %v696
  %981 = vmatprep.subr.bf16.mxu0 %v699
  %982 = vmatpush1.bf16.msra.mxu0 %v698
  %983 = vmatprep.subr.bf16.mxu0 %v701
  %984 = vmatpush1.bf16.msra.mxu0 %v700
  %985 = vmatprep.subr.bf16.mxu0 %v703
  %986 = vmatpush1.bf16.msra.mxu0 %v702
  %987 = vmatprep.subr.bf16.mxu0 %v705
  %988 = vmatpush1.bf16.msra.mxu0 %v704
  %989 = vmatprep.subr.bf16.mxu0 %v707
  %990 = vmatpush1.bf16.msra.mxu0 %v706
  %991 = vmatprep.subr.bf16.mxu0 %v709
  %992 = vmatpush1.bf16.msra.mxu0 %v708
  %993 = vmatprep.subr.bf16.mxu0 %v711
  %994 = vmatpush1.bf16.msra.mxu0 %v710
  %995 = vmatprep.subr.bf16.mxu0 %v713
  %996 = vmatpush1.bf16.msra.mxu0 %v712
  %997 = vmatprep.subr.bf16.mxu0 %v715
  %998 = vmatpush1.bf16.msra.mxu0 %v714
  %999 = vmatprep.subr.bf16.mxu0 %v717
  %1000 = vmatpush1.bf16.msra.mxu0 %v716
  %1001 = vmatprep.subr.bf16.mxu0 %v719
  %1002 = vmatpush1.bf16.msra.mxu0 %v718
  %1003 = vmatprep.mubr.bf16.mxu0 %v67
  %1004 = vmatmul.mubr.bf16.gmra.mrb[0].mxu0 %v66
  %v1005 = vpop.f32.mrb[0].mxu0
  %v1006 = vadd.f32 %v965, %v1005
  %v1007 = vpop.f32.mrb[0].mxu0
  %v1008 = vadd.f32 %v967, %v1007
  %v1009 = vpop.f32.mrb[0].mxu0
  %v1010 = vpop.f32.mrb[0].mxu0
  %1011 = vdwg.mxu0
  %v1012 = vmax.f32 %v1006, 0.0
  %v1013 = vmax.f32 %v1008, 0.0
  %v1016 = vcombine.low %v1012, %v1013
  %v1018 = vunpack.c.l.s4 1983009808
  %v1019 = vunpack.c.0.s8 %v1018
  %v1020 = vlaneseq
  %v1021 = vshrl.u32 %v1020, 7
  %v1022 = vsub.s32 %v1019, %v1021
  %v1023 = vrot.slane %v1016, %v1022
  %1025 = vst [vmem:[%s3] sm:$0xf] %v1023
  // Predicated region
  $region14: #{pointnet_autoencoder.4} parent=0 // pred_check
    _
  $region15: #{pointnet_autoencoder.4} parent=0 // pred_check_branch
    %1027 = sbr.rel (0) target = $region17
  $region16: #{pointnet_autoencoder.4} parent=0 // pred_region
    _
  $region17: #{pointnet_autoencoder.4} parent=0 // pred_fallthru
    _
  // Predicated region
  $region18: #{pointnet_autoencoder.4} parent=0 // pred_check
    _
  $region19: #{pointnet_autoencoder.4} parent=0 // pred_check_branch
    %1029 = sbr.rel (0) target = $region21
  $region20: #{pointnet_autoencoder.4} parent=0 // pred_region
    _
  $region21: #{pointnet_autoencoder.4} parent=0 // pred_fallthru
    _

// kernel: pointnet_autoencoder.5
$region0: #{pointnet_autoencoder.5}
  #allocation0 [shape = 'u32[]', space=smem, size = 0x4, offset = 0x4, fixed_abs, tag = 'smem constant byte address 0x4 - core index']
  #allocation1 [shape = 'u32[144,128]{1,0:T(1,128)}', space=vmem, size = 0x12000, scoped, tag = 'internal scratch']
  %s0 = inlined_call_operand.vmem [shape: f32[2,256], index: 0, kind: input, shape index: {}]
  %s1 = inlined_call_operand.vmem [shape: bf16[256,768], index: 1, kind: input, shape index: {}]
  %s2 = inlined_call_operand.vmem [shape: f32[1,768], index: 2, kind: input, shape index: {}]
  %s3 = inlined_call_operand.vmem [shape: f32[2,768], index: 3, kind: output, shape index: {}]
  %s4 = sld [smem:[#allocation0]]
  $region83: #{pointnet_autoencoder.5} parent=0
    _
  %s6 = ssub.s32 1, %s4
  %s7 = scalar_select 0, %s6, %s4
  $region1: #{pointnet_autoencoder.5} parent=0
    #allocation2 [shape = 'u8[262144]{0}', space=vmem, size = 0x40000, scoped, tag = 'input window, operand 1']
    loop: start=0, step=1, limit=5
    $region2: #{pointnet_autoencoder.5} parent=1 // loop_pre_header
      _
    $region3: #{pointnet_autoencoder.5} parent=1 // loop_header
      %s9 = sphi 0, %s13
      %p10 = scmp.ge.s32.totalorder %s9, 5
      %s17 = sphi 0, %s17
      %s19 = sphi 0, %s17
      %s20 = sphi 0, %s19
      %s34 = sphi 0, %s20
      %s40 = sphi 0, %s42
      %s43 = sphi 0, %s40
      %s44 = sphi 0, %s43
      %s60 = sphi 0, %s44
      %s66 = sphi 0, %s68
      %s69 = sphi 0, %s66
      %s70 = sphi 0, %s69
      %s86 = sphi 0, %s70
      %s92 = sphi 0, %s94
      %s95 = sphi 0, %s92
      %s96 = sphi 0, %s95
      %s112 = sphi 0, %s96
    $region4: #{pointnet_autoencoder.5} parent=1 // loop_header_branch
      %12 = sbr.rel (%p10) target = $region8
    $region5: #{pointnet_autoencoder.5} parent=1 // loop_body
      %s14 = ssub.s32 %s9, 1
      %s15 = ssub.s32 %s9, 2
      %s16 = sadd.s32 %s9, 1
      %s18 = sadd.s32 %s17, 1
      %p21 = scmp.eq.s32.totalorder %s9, 2
      %p22 = scmp.ne.s32.totalorder %s17, %s19
      %p23 = scmp.eq.s32.totalorder %s9, 0
      %p24 = por %p22, %p23
      %p25 = scmp.ne.s32.totalorder %s17, %s19
      %p26 = scmp.eq.s32.totalorder %s14, 2
      %p27 = por %p25, %p26
      %p28 = scmp.ne.s32.totalorder %s19, %s20
      %p29 = scmp.eq.s32.totalorder %s14, 0
      %p30 = por %p28, %p29
      %p31 = scmp.ne.s32.totalorder %s19, %s20
      %p32 = scmp.eq.s32.totalorder %s15, 2
      %p33 = por %p31, %p32
      %p35 = scmp.ne.s32.totalorder %s20, %s34
      %p36 = scmp.eq.s32.totalorder %s15, 0
      %p37 = por %p35, %p36
      %s38 = ssub.s32 %s9, %s16
      %p39 = scmp.eq.s32.totalorder %s38, 0
      %s41 = sadd.s32 %s40, 1
      %s42 = scalar_select %p39, %s40, %s41
      %p45 = pneg %p39
      %p46 = scmp.eq.s32.totalorder %s9, 2
      %p47 = por %p45, %p46
      %p48 = scmp.ne.s32.totalorder %s40, %s43
      %p49 = scmp.eq.s32.totalorder %s9, 0
      %p50 = por %p48, %p49
      %p51 = scmp.ne.s32.totalorder %s40, %s43
      %p52 = scmp.eq.s32.totalorder %s14, 2
      %p53 = por %p51, %p52
      %p54 = scmp.ne.s32.totalorder %s43, %s44
      %p55 = scmp.eq.s32.totalorder %s14, 0
      %p56 = por %p54, %p55
      %p57 = scmp.ne.s32.totalorder %s43, %s44
      %p58 = scmp.eq.s32.totalorder %s15, 2
      %p59 = por %p57, %p58
      %p61 = scmp.ne.s32.totalorder %s44, %s60
      %p62 = scmp.eq.s32.totalorder %s15, 0
      %p63 = por %p61, %p62
      %s64 = ssub.s32 %s9, %s16
      %p65 = scmp.eq.s32.totalorder %s64, 0
      %s67 = sadd.s32 %s66, 1
      %s68 = scalar_select %p65, %s66, %s67
      %p71 = pneg %p65
      %p72 = scmp.eq.s32.totalorder %s9, 2
      %p73 = por %p71, %p72
      %p74 = scmp.ne.s32.totalorder %s66, %s69
      %p75 = scmp.eq.s32.totalorder %s9, 0
      %p76 = por %p74, %p75
      %p77 = scmp.ne.s32.totalorder %s66, %s69
      %p78 = scmp.eq.s32.totalorder %s14, 2
      %p79 = por %p77, %p78
      %p80 = scmp.ne.s32.totalorder %s69, %s70
      %p81 = scmp.eq.s32.totalorder %s14, 0
      %p82 = por %p80, %p81
      %p83 = scmp.ne.s32.totalorder %s69, %s70
      %p84 = scmp.eq.s32.totalorder %s15, 2
      %p85 = por %p83, %p84
      %p87 = scmp.ne.s32.totalorder %s70, %s86
      %p88 = scmp.eq.s32.totalorder %s15, 0
      %p89 = por %p87, %p88
      %s90 = ssub.s32 %s9, %s16
      %p91 = scmp.eq.s32.totalorder %s90, 0
      %s93 = sadd.s32 %s92, 1
      %s94 = scalar_select %p91, %s92, %s93
      %p97 = pneg %p91
      %p98 = scmp.eq.s32.totalorder %s9, 2
      %p99 = por %p97, %p98
      %p100 = scmp.ne.s32.totalorder %s92, %s95
      %p101 = scmp.eq.s32.totalorder %s9, 0
      %p102 = por %p100, %p101
      %p103 = scmp.ne.s32.totalorder %s92, %s95
      %p104 = scmp.eq.s32.totalorder %s14, 2
      %p105 = por %p103, %p104
      %p106 = scmp.ne.s32.totalorder %s95, %s96
      %p107 = scmp.eq.s32.totalorder %s14, 0
      %p108 = por %p106, %p107
      %p109 = scmp.ne.s32.totalorder %s95, %s96
      %p110 = scmp.eq.s32.totalorder %s15, 2
      %p111 = por %p109, %p110
      %p113 = scmp.ne.s32.totalorder %s96, %s112
      %p114 = scmp.eq.s32.totalorder %s15, 0
      %p115 = por %p113, %p114
      %p116 = scmp.le.s32.totalorder 1, %s9
      %p117 = scmp.lt.s32.totalorder %s9, 4
      %p118 = pnand %p116, %p117
      %p119 = pneg %p118
      // Predicated region
      $region9: #{pointnet_autoencoder.5} parent=5 // pred_check
        _
      $region10: #{pointnet_autoencoder.5} parent=5 // pred_check_branch
        %121 = sbr.rel (%p118) target = $region12
      $region11: #{pointnet_autoencoder.5} parent=5 // pred_region
        %s122 = ssub.s32 %s9, 1
        // Predicated region
        $region13: #{pointnet_autoencoder.5} parent=11 // pred_check
          %p123 = pneg %p30
        $region14: #{pointnet_autoencoder.5} parent=11 // pred_check_branch
          %125 = sbr.rel (%p123) target = $region16
        $region15: #{pointnet_autoencoder.5} parent=11 // pred_region
          _
        $region16: #{pointnet_autoencoder.5} parent=11 // pred_fallthru
          _
      $region12: #{pointnet_autoencoder.5} parent=5 // pred_fallthru
        _
      %p126 = scmp.lt.s32.totalorder %s9, 3
      // Predicated region
      $region17: #{pointnet_autoencoder.5} parent=5 // pred_check
        %p127 = pneg %p126
      $region18: #{pointnet_autoencoder.5} parent=5 // pred_check_branch
        %129 = sbr.rel (%p127) target = $region20
      $region19: #{pointnet_autoencoder.5} parent=5 // pred_region
        // Predicated region
        $region21: #{pointnet_autoencoder.5} parent=19 // pred_check
          %p130 = pneg %p50
        $region22: #{pointnet_autoencoder.5} parent=19 // pred_check_branch
          %132 = sbr.rel (%p130) target = $region24
        $region23: #{pointnet_autoencoder.5} parent=19 // pred_region
          %s133 = sand.u32 %s40, 1
          %s134 = sand.u32 %s40, 1
          %s135 = smul.addr %s134, 256
          %s136 = scalar_lea.vmem [#allocation2], %s135
          %s137 = smul.u32 2, %s9
          %s138 = smul.addr %s137, 4
          %s139 = scalar_lea.vmem %s1, %s138
          // Predicated region
          $region25: #{pointnet_autoencoder.5} parent=23 // pred_check
            _
          $region26: #{pointnet_autoencoder.5} parent=23 // pred_check_branch
            %141 = sbr.rel (0) target = $region28
          $region27: #{pointnet_autoencoder.5} parent=23 // pred_region
            // Predicated region
            $region29: #{pointnet_autoencoder.5} parent=27 // pred_check
              _
            $region30: #{pointnet_autoencoder.5} parent=27 // pred_check_branch
              %143 = sbr.rel (0) target = $region32
            $region31: #{pointnet_autoencoder.5} parent=27 // pred_region
              // Predicated region
              $region44: #{pointnet_autoencoder.5} parent=31 // pred_check
                _
              $region45: #{pointnet_autoencoder.5} parent=31 // pred_check_branch
                %220 = sbr.rel (0) target = $region47
              $region46: #{pointnet_autoencoder.5} parent=31 // pred_region
                loop: start=0, step=1, limit=1
                $region48: #{pointnet_autoencoder.5} parent=46 // loop_pre_header
                  _
                $region49: #{pointnet_autoencoder.5} parent=46 // loop_header
                  %s222 = sphi 0, %s226
                  %p223 = scmp.ge.s32.totalorder %s222, 1
                  %s227 = sphi %s139, %s139
                  %s228 = sphi %s136, %s136
                $region50: #{pointnet_autoencoder.5} parent=46 // loop_header_branch
                  %225 = sbr.rel (%p223) target = $region54
                $region51: #{pointnet_autoencoder.5} parent=46 // loop_body
                  %v229 = vld [vmem:[%s227] sm:$0xff]
                  %230 = vst [vmem:[%s228] sm:$0xff] %v229
                  %v231 = vld [vmem:[%s227 + $0x18] sm:$0xff]
                  %232 = vst [vmem:[%s228 + $0x8] sm:$0xff] %v231
                  %v233 = vld [vmem:[%s227 + $0x30] sm:$0xff]
                  %234 = vst [vmem:[%s228 + $0x10] sm:$0xff] %v233
                  %v235 = vld [vmem:[%s227 + $0x48] sm:$0xff]
                  %236 = vst [vmem:[%s228 + $0x18] sm:$0xff] %v235
                  %v237 = vld [vmem:[%s227 + $0x60] sm:$0xff]
                  %238 = vst [vmem:[%s228 + $0x20] sm:$0xff] %v237
                  %v239 = vld [vmem:[%s227 + $0x78] sm:$0xff]
                  %240 = vst [vmem:[%s228 + $0x28] sm:$0xff] %v239
                  %v241 = vld [vmem:[%s227 + $0x90] sm:$0xff]
                  %242 = vst [vmem:[%s228 + $0x30] sm:$0xff] %v241
                  %v243 = vld [vmem:[%s227 + $0xa8] sm:$0xff]
                  %244 = vst [vmem:[%s228 + $0x38] sm:$0xff] %v243
                  %v245 = vld [vmem:[%s227 + $0xc0] sm:$0xff]
                  %246 = vst [vmem:[%s228 + $0x40] sm:$0xff] %v245
                  %v247 = vld [vmem:[%s227 + $0xd8] sm:$0xff]
                  %248 = vst [vmem:[%s228 + $0x48] sm:$0xff] %v247
                  %v249 = vld [vmem:[%s227 + $0xf0] sm:$0xff]
                  %250 = vst [vmem:[%s228 + $0x50] sm:$0xff] %v249
                  %v251 = vld [vmem:[%s227 + $0x108] sm:$0xff]
                  %252 = vst [vmem:[%s228 + $0x58] sm:$0xff] %v251
                  %v253 = vld [vmem:[%s227 + $0x120] sm:$0xff]
                  %254 = vst [vmem:[%s228 + $0x60] sm:$0xff] %v253
                  %v255 = vld [vmem:[%s227 + $0x138] sm:$0xff]
                  %256 = vst [vmem:[%s228 + $0x68] sm:$0xff] %v255
                  %v257 = vld [vmem:[%s227 + $0x150] sm:$0xff]
                  %258 = vst [vmem:[%s228 + $0x70] sm:$0xff] %v257
                  %v259 = vld [vmem:[%s227 + $0x168] sm:$0xff]
                  %260 = vst [vmem:[%s228 + $0x78] sm:$0xff] %v259
                  %v261 = vld [vmem:[%s227 + $0x180] sm:$0xff]
                  %262 = vst [vmem:[%s228 + $0x80] sm:$0xff] %v261
                  %v263 = vld [vmem:[%s227 + $0x198] sm:$0xff]
                  %264 = vst [vmem:[%s228 + $0x88] sm:$0xff] %v263
                  %v265 = vld [vmem:[%s227 + $0x1b0] sm:$0xff]
                  %266 = vst [vmem:[%s228 + $0x90] sm:$0xff] %v265
                  %v267 = vld [vmem:[%s227 + $0x1c8] sm:$0xff]
                  %268 = vst [vmem:[%s228 + $0x98] sm:$0xff] %v267
                  %v269 = vld [vmem:[%s227 + $0x1e0] sm:$0xff]
                  %270 = vst [vmem:[%s228 + $0xa0] sm:$0xff] %v269
                  %v271 = vld [vmem:[%s227 + $0x1f8] sm:$0xff]
                  %272 = vst [vmem:[%s228 + $0xa8] sm:$0xff] %v271
                  %v273 = vld [vmem:[%s227 + $0x210] sm:$0xff]
                  %274 = vst [vmem:[%s228 + $0xb0] sm:$0xff] %v273
                  %v275 = vld [vmem:[%s227 + $0x228] sm:$0xff]
                  %276 = vst [vmem:[%s228 + $0xb8] sm:$0xff] %v275
                  %v277 = vld [vmem:[%s227 + $0x240] sm:$0xff]
                  %278 = vst [vmem:[%s228 + $0xc0] sm:$0xff] %v277
                  %v279 = vld [vmem:[%s227 + $0x258] sm:$0xff]
                  %280 = vst [vmem:[%s228 + $0xc8] sm:$0xff] %v279
                  %v281 = vld [vmem:[%s227 + $0x270] sm:$0xff]
                  %282 = vst [vmem:[%s228 + $0xd0] sm:$0xff] %v281
                  %v283 = vld [vmem:[%s227 + $0x288] sm:$0xff]
                  %284 = vst [vmem:[%s228 + $0xd8] sm:$0xff] %v283
                  %v285 = vld [vmem:[%s227 + $0x2a0] sm:$0xff]
                  %286 = vst [vmem:[%s228 + $0xe0] sm:$0xff] %v285
                  %v287 = vld [vmem:[%s227 + $0x2b8] sm:$0xff]
                  %288 = vst [vmem:[%s228 + $0xe8] sm:$0xff] %v287
                  %v289 = vld [vmem:[%s227 + $0x2d0] sm:$0xff]
                  %290 = vst [vmem:[%s228 + $0xf0] sm:$0xff] %v289
                  %v291 = vld [vmem:[%s227 + $0x2e8] sm:$0xff]
                  %292 = vst [vmem:[%s228 + $0xf8] sm:$0xff] %v291
                $region52: #{pointnet_autoencoder.5} parent=46 // loop_footer
                  %s226 = sadd.s32 1, %s222
                $region53: #{pointnet_autoencoder.5} parent=46 // loop_footer_branch
                  %221 = sbr.rel target = $region49
                $region54: #{pointnet_autoencoder.5} parent=46 // loop_exit
                  _
              $region47: #{pointnet_autoencoder.5} parent=31 // pred_fallthru
                _
              // Predicated region
              $region55: #{pointnet_autoencoder.5} parent=31 // pred_check
                _
              $region56: #{pointnet_autoencoder.5} parent=31 // pred_check_branch
                %294 = sbr.rel target = $region58
              $region57: #{pointnet_autoencoder.5} parent=31 // pred_region
                _
              $region58: #{pointnet_autoencoder.5} parent=31 // pred_fallthru
                _
            $region32: #{pointnet_autoencoder.5} parent=27 // pred_fallthru
              _
            // Predicated region
            $region33: #{pointnet_autoencoder.5} parent=27 // pred_check
              _
            $region34: #{pointnet_autoencoder.5} parent=27 // pred_check_branch
              %145 = sbr.rel target = $region36
            $region35: #{pointnet_autoencoder.5} parent=27 // pred_region
              loop: start=0, step=1, limit=1
              $region37: #{pointnet_autoencoder.5} parent=35 // loop_pre_header
                _
              $region38: #{pointnet_autoencoder.5} parent=35 // loop_header
                %s148 = sphi 0, %s152
                %p149 = scmp.ge.s32.totalorder %s148, 1
                %s153 = sphi %s139, %s139
                %s154 = sphi %s136, %s136
              $region39: #{pointnet_autoencoder.5} parent=35 // loop_header_branch
                %151 = sbr.rel (%p149) target = $region43
              $region40: #{pointnet_autoencoder.5} parent=35 // loop_body
                %v155 = vld [vmem:[%s153] sm:$0xff]
                %156 = vst [vmem:[%s154] sm:$0xff] %v155
                %v157 = vld [vmem:[%s153 + $0x18] sm:$0xff]
                %158 = vst [vmem:[%s154 + $0x8] sm:$0xff] %v157
                %v159 = vld [vmem:[%s153 + $0x30] sm:$0xff]
                %160 = vst [vmem:[%s154 + $0x10] sm:$0xff] %v159
                %v161 = vld [vmem:[%s153 + $0x48] sm:$0xff]
                %162 = vst [vmem:[%s154 + $0x18] sm:$0xff] %v161
                %v163 = vld [vmem:[%s153 + $0x60] sm:$0xff]
                %164 = vst [vmem:[%s154 + $0x20] sm:$0xff] %v163
                %v165 = vld [vmem:[%s153 + $0x78] sm:$0xff]
                %166 = vst [vmem:[%s154 + $0x28] sm:$0xff] %v165
                %v167 = vld [vmem:[%s153 + $0x90] sm:$0xff]
                %168 = vst [vmem:[%s154 + $0x30] sm:$0xff] %v167
                %v169 = vld [vmem:[%s153 + $0xa8] sm:$0xff]
                %170 = vst [vmem:[%s154 + $0x38] sm:$0xff] %v169
                %v171 = vld [vmem:[%s153 + $0xc0] sm:$0xff]
                %172 = vst [vmem:[%s154 + $0x40] sm:$0xff] %v171
                %v173 = vld [vmem:[%s153 + $0xd8] sm:$0xff]
                %174 = vst [vmem:[%s154 + $0x48] sm:$0xff] %v173
                %v175 = vld [vmem:[%s153 + $0xf0] sm:$0xff]
                %176 = vst [vmem:[%s154 + $0x50] sm:$0xff] %v175
                %v177 = vld [vmem:[%s153 + $0x108] sm:$0xff]
                %178 = vst [vmem:[%s154 + $0x58] sm:$0xff] %v177
                %v179 = vld [vmem:[%s153 + $0x120] sm:$0xff]
                %180 = vst [vmem:[%s154 + $0x60] sm:$0xff] %v179
                %v181 = vld [vmem:[%s153 + $0x138] sm:$0xff]
                %182 = vst [vmem:[%s154 + $0x68] sm:$0xff] %v181
                %v183 = vld [vmem:[%s153 + $0x150] sm:$0xff]
                %184 = vst [vmem:[%s154 + $0x70] sm:$0xff] %v183
                %v185 = vld [vmem:[%s153 + $0x168] sm:$0xff]
                %186 = vst [vmem:[%s154 + $0x78] sm:$0xff] %v185
                %v187 = vld [vmem:[%s153 + $0x180] sm:$0xff]
                %188 = vst [vmem:[%s154 + $0x80] sm:$0xff] %v187
                %v189 = vld [vmem:[%s153 + $0x198] sm:$0xff]
                %190 = vst [vmem:[%s154 + $0x88] sm:$0xff] %v189
                %v191 = vld [vmem:[%s153 + $0x1b0] sm:$0xff]
                %192 = vst [vmem:[%s154 + $0x90] sm:$0xff] %v191
                %v193 = vld [vmem:[%s153 + $0x1c8] sm:$0xff]
                %194 = vst [vmem:[%s154 + $0x98] sm:$0xff] %v193
                %v195 = vld [vmem:[%s153 + $0x1e0] sm:$0xff]
                %196 = vst [vmem:[%s154 + $0xa0] sm:$0xff] %v195
                %v197 = vld [vmem:[%s153 + $0x1f8] sm:$0xff]
                %198 = vst [vmem:[%s154 + $0xa8] sm:$0xff] %v197
                %v199 = vld [vmem:[%s153 + $0x210] sm:$0xff]
                %200 = vst [vmem:[%s154 + $0xb0] sm:$0xff] %v199
                %v201 = vld [vmem:[%s153 + $0x228] sm:$0xff]
                %202 = vst [vmem:[%s154 + $0xb8] sm:$0xff] %v201
                %v203 = vld [vmem:[%s153 + $0x240] sm:$0xff]
                %204 = vst [vmem:[%s154 + $0xc0] sm:$0xff] %v203
                %v205 = vld [vmem:[%s153 + $0x258] sm:$0xff]
                %206 = vst [vmem:[%s154 + $0xc8] sm:$0xff] %v205
                %v207 = vld [vmem:[%s153 + $0x270] sm:$0xff]
                %208 = vst [vmem:[%s154 + $0xd0] sm:$0xff] %v207
                %v209 = vld [vmem:[%s153 + $0x288] sm:$0xff]
                %210 = vst [vmem:[%s154 + $0xd8] sm:$0xff] %v209
                %v211 = vld [vmem:[%s153 + $0x2a0] sm:$0xff]
                %212 = vst [vmem:[%s154 + $0xe0] sm:$0xff] %v211
                %v213 = vld [vmem:[%s153 + $0x2b8] sm:$0xff]
                %214 = vst [vmem:[%s154 + $0xe8] sm:$0xff] %v213
                %v215 = vld [vmem:[%s153 + $0x2d0] sm:$0xff]
                %216 = vst [vmem:[%s154 + $0xf0] sm:$0xff] %v215
                %v217 = vld [vmem:[%s153 + $0x2e8] sm:$0xff]
                %218 = vst [vmem:[%s154 + $0xf8] sm:$0xff] %v217
              $region41: #{pointnet_autoencoder.5} parent=35 // loop_footer
                %s152 = sadd.s32 1, %s148
              $region42: #{pointnet_autoencoder.5} parent=35 // loop_footer_branch
                %147 = sbr.rel target = $region38
              $region43: #{pointnet_autoencoder.5} parent=35 // loop_exit
                _
            $region36: #{pointnet_autoencoder.5} parent=27 // pred_fallthru
              _
          $region28: #{pointnet_autoencoder.5} parent=23 // pred_fallthru
            _
          %295 = vnop
        $region24: #{pointnet_autoencoder.5} parent=19 // pred_fallthru
          _
        // Predicated region
        $region59: #{pointnet_autoencoder.5} parent=19 // pred_check
          %p296 = pneg %p76
        $region60: #{pointnet_autoencoder.5} parent=19 // pred_check_branch
          %298 = sbr.rel (%p296) target = $region62
        $region61: #{pointnet_autoencoder.5} parent=19 // pred_region
          %s299 = smul.u32 2, %s9
          %p300 = scmp.lt.s32.totalorder %s299, 5
          %s301 = scalar_select %p300, %s299, 5
          %s302 = scalar_lea.vmem %s2, %s301
          %s303 = smul.u32 2, %s9
        $region62: #{pointnet_autoencoder.5} parent=19 // pred_fallthru
          _
      $region20: #{pointnet_autoencoder.5} parent=5 // pred_fallthru
        _
      %p304 = scmp.le.s32.totalorder 1, %s9
      %p305 = scmp.lt.s32.totalorder %s9, 4
      %p306 = pnand %p304, %p305
      %p307 = pneg %p306
      // Predicated region
      $region63: #{pointnet_autoencoder.5} parent=5 // pred_check
        _
      $region64: #{pointnet_autoencoder.5} parent=5 // pred_check_branch
        %309 = sbr.rel (%p306) target = $region66
      $region65: #{pointnet_autoencoder.5} parent=5 // pred_region
        %s310 = ssub.s32 %s9, 1
        %s311 = sand.u32 %s43, 1
        %s312 = sand.u32 %s43, 1
        %s313 = smul.addr %s312, 256
        %s314 = scalar_lea.vmem [#allocation2], %s313
        // Predicated region
        $region67: #{pointnet_autoencoder.5} parent=65 // pred_check
          %p315 = pneg %p56
        $region68: #{pointnet_autoencoder.5} parent=65 // pred_check_branch
          %317 = sbr.rel (%p315) target = $region70
        $region69: #{pointnet_autoencoder.5} parent=65 // pred_region
          _
        $region70: #{pointnet_autoencoder.5} parent=65 // pred_fallthru
          _
        %p318 = pneg %p30
        %p319 = pneg %p27
        %s320 = sand.u32 %s43, 1
        %s321 = sand.u32 %s43, 1
        %s322 = smul.addr %s321, 256
        %s323 = scalar_lea.vmem [#allocation2], %s322
        %p324 = pneg %p56
        %p325 = pneg %p53
        %s326 = smul.u32 2, %s14
        %p327 = scmp.lt.s32.totalorder %s326, 5
        %s328 = scalar_select %p327, %s326, 5
        %s329 = scalar_lea.vmem %s2, %s328
        %p330 = pneg %p82
        %p331 = pneg %p79
        %p332 = pneg %p108
        %p333 = pneg %p105
        %s334 = smul.u32 2, %s14
        %p335 = scmp.lt.s32.totalorder %s334, 5
        %s336 = scalar_select %p335, %s334, 5
        %s337 = smul.addr %s336, 2
        %s338 = scalar_lea.vmem %s3, %s337
        %s339 = smul.u32 2, %s14
        %s340 = smul.u32 2, %s14
        %p341 = scmp.lt.s32.totalorder %s340, 5
        %s342 = scalar_select %p341, %s340, 5
        %s343 = scalar_lea.vmem %s2, %s342
        %s344 = smul.u32 2, %s14
        %s345 = smul.u32 2, %s14
        %p346 = scmp.lt.s32.totalorder %s345, 5
        %s347 = scalar_select %p346, %s345, 5
        %s348 = smul.addr %s347, 2
        %s349 = scalar_lea.vmem %s3, %s348
        %s350 = smul.u32 2, %s14
        %v351 = vld [vmem:[%s0] sm:$0xf]
        %v354 = vunpack.c.l.s4 1983009808
        %v355 = vunpack.c.0.s8 %v354
        %v356 = vlaneseq
        %v357 = vshrl.u32 %v356, 7
        %v358 = vsub.s32 %v355, %v357
        %v359 = vrot.slane %v351, %v358
        %v360 = vcombine.high %v359, %v359
        %v363 = vpack.c.bf16 %v359, %v359
        %v364 = vpack.c.bf16 %v360, %v360
        %v365 = vld [vmem:[%s314] sm:$0xff]
        %v366 = vld [vmem:[%s314 + $0x8] sm:$0xff]
        %v367 = vld [vmem:[%s314 + $0x10] sm:$0xff]
        %v368 = vld [vmem:[%s314 + $0x18] sm:$0xff]
        %v369 = vld [vmem:[%s314 + $0x20] sm:$0xff]
        %v370 = vld [vmem:[%s314 + $0x28] sm:$0xff]
        %v371 = vld [vmem:[%s314 + $0x30] sm:$0xff]
        %v372 = vld [vmem:[%s314 + $0x38] sm:$0xff]
        %v373 = vld [vmem:[%s314 + $0x40] sm:$0xff]
        %v374 = vld [vmem:[%s314 + $0x48] sm:$0xff]
        %v375 = vld [vmem:[%s314 + $0x50] sm:$0xff]
        %v376 = vld [vmem:[%s314 + $0x58] sm:$0xff]
        %v377 = vld [vmem:[%s314 + $0x60] sm:$0xff]
        %v378 = vld [vmem:[%s314 + $0x68] sm:$0xff]
        %v379 = vld [vmem:[%s314 + $0x70] sm:$0xff]
        %v380 = vld [vmem:[%s314 + $0x78] sm:$0xff]
        %v381 = vld [vmem:[%s314 + $0x80] sm:$0xff]
        %v382 = vld [vmem:[%s314 + $0x88] sm:$0xff]
        %v383 = vld [vmem:[%s314 + $0x90] sm:$0xff]
        %v384 = vld [vmem:[%s314 + $0x98] sm:$0xff]
        %v385 = vld [vmem:[%s314 + $0xa0] sm:$0xff]
        %v386 = vld [vmem:[%s314 + $0xa8] sm:$0xff]
        %v387 = vld [vmem:[%s314 + $0xb0] sm:$0xff]
        %v388 = vld [vmem:[%s314 + $0xb8] sm:$0xff]
        %v389 = vld [vmem:[%s314 + $0xc0] sm:$0xff]
        %v390 = vld [vmem:[%s314 + $0xc8] sm:$0xff]
        %v391 = vld [vmem:[%s314 + $0xd0] sm:$0xff]
        %v392 = vld [vmem:[%s314 + $0xd8] sm:$0xff]
        %v393 = vld [vmem:[%s314 + $0xe0] sm:$0xff]
        %v394 = vld [vmem:[%s314 + $0xe8] sm:$0xff]
        %v395 = vld [vmem:[%s314 + $0xf0] sm:$0xff]
        %v396 = vld [vmem:[%s314 + $0xf8] sm:$0xff]
        %v397 = vld [vmem:[%s343] sm:$0x3]
        %v399 = vlaneseq
        %v400 = vshrl.u32 %v399, 7
        %v401 = vsub.s32 0, %v400
        %v402 = vrot.slane %v397, %v401
        %v403 = vlaneseq
        %v404 = vshrl.u32 %v403, 7
        %v405 = vsub.s32 1, %v404
        %v406 = vrot.slane %v397, %v405
        %v441 = vunpack.c.l.b16 %v365
        %v442 = vunpack.c.h.b16 %v365
        %v443 = vunpack.c.l.b16 %v366
        %v444 = vunpack.c.h.b16 %v366
        %v445 = vunpack.c.l.b16 %v367
        %v446 = vunpack.c.h.b16 %v367
        %v447 = vunpack.c.l.b16 %v368
        %v448 = vunpack.c.h.b16 %v368
        %v449 = vunpack.c.l.b16 %v369
        %v450 = vunpack.c.h.b16 %v369
        %v451 = vunpack.c.l.b16 %v370
        %v452 = vunpack.c.h.b16 %v370
        %v453 = vunpack.c.l.b16 %v371
        %v454 = vunpack.c.h.b16 %v371
        %v455 = vunpack.c.l.b16 %v372
        %v456 = vunpack.c.h.b16 %v372
        %v457 = vunpack.c.l.b16 %v373
        %v458 = vunpack.c.h.b16 %v373
        %v459 = vunpack.c.l.b16 %v374
        %v460 = vunpack.c.h.b16 %v374
        %v461 = vunpack.c.l.b16 %v375
        %v462 = vunpack.c.h.b16 %v375
        %v463 = vunpack.c.l.b16 %v376
        %v464 = vunpack.c.h.b16 %v376
        %v465 = vunpack.c.l.b16 %v377
        %v466 = vunpack.c.h.b16 %v377
        %v467 = vunpack.c.l.b16 %v378
        %v468 = vunpack.c.h.b16 %v378
        %v469 = vunpack.c.l.b16 %v379
        %v470 = vunpack.c.h.b16 %v379
        %v471 = vunpack.c.l.b16 %v380
        %v472 = vunpack.c.h.b16 %v380
        %v473 = vunpack.c.l.b16 %v381
        %v474 = vunpack.c.h.b16 %v381
        %v475 = vunpack.c.l.b16 %v382
        %v476 = vunpack.c.h.b16 %v382
        %v477 = vunpack.c.l.b16 %v383
        %v478 = vunpack.c.h.b16 %v383
        %v479 = vunpack.c.l.b16 %v384
        %v480 = vunpack.c.h.b16 %v384
        %v481 = vunpack.c.l.b16 %v385
        %v482 = vunpack.c.h.b16 %v385
        %v483 = vunpack.c.l.b16 %v386
        %v484 = vunpack.c.h.b16 %v386
        %v485 = vunpack.c.l.b16 %v387
        %v486 = vunpack.c.h.b16 %v387
        %v487 = vunpack.c.l.b16 %v388
        %v488 = vunpack.c.h.b16 %v388
        %v489 = vunpack.c.l.b16 %v389
        %v490 = vunpack.c.h.b16 %v389
        %v491 = vunpack.c.l.b16 %v390
        %v492 = vunpack.c.h.b16 %v390
        %v493 = vunpack.c.l.b16 %v391
        %v494 = vunpack.c.h.b16 %v391
        %v495 = vunpack.c.l.b16 %v392
        %v496 = vunpack.c.h.b16 %v392
        %v497 = vunpack.c.l.b16 %v393
        %v498 = vunpack.c.h.b16 %v393
        %v499 = vunpack.c.l.b16 %v394
        %v500 = vunpack.c.h.b16 %v394
        %v501 = vunpack.c.l.b16 %v395
        %v502 = vunpack.c.h.b16 %v395
        %v503 = vunpack.c.l.b16 %v396
        %v504 = vunpack.c.h.b16 %v396
        %v505 = vpack.c.b16 %v443, %v441
        %v506 = vpack.c.b16 %v444, %v442
        %v507 = vpack.c.b16 %v447, %v445
        %v508 = vpack.c.b16 %v448, %v446
        %v509 = vpack.c.b16 %v451, %v449
        %v510 = vpack.c.b16 %v452, %v450
        %v511 = vpack.c.b16 %v455, %v453
        %v512 = vpack.c.b16 %v456, %v454
        %v513 = vpack.c.b16 %v459, %v457
        %v514 = vpack.c.b16 %v460, %v458
        %v515 = vpack.c.b16 %v463, %v461
        %v516 = vpack.c.b16 %v464, %v462
        %v517 = vpack.c.b16 %v467, %v465
        %v518 = vpack.c.b16 %v468, %v466
        %v519 = vpack.c.b16 %v471, %v469
        %v520 = vpack.c.b16 %v472, %v470
        %v521 = vpack.c.b16 %v475, %v473
        %v522 = vpack.c.b16 %v476, %v474
        %v523 = vpack.c.b16 %v479, %v477
        %v524 = vpack.c.b16 %v480, %v478
        %v525 = vpack.c.b16 %v483, %v481
        %v526 = vpack.c.b16 %v484, %v482
        %v527 = vpack.c.b16 %v487, %v485
        %v528 = vpack.c.b16 %v488, %v486
        %v529 = vpack.c.b16 %v491, %v489
        %v530 = vpack.c.b16 %v492, %v490
        %v531 = vpack.c.b16 %v495, %v493
        %v532 = vpack.c.b16 %v496, %v494
        %v533 = vpack.c.b16 %v499, %v497
        %v534 = vpack.c.b16 %v500, %v498
        %v535 = vpack.c.b16 %v503, %v501
        %v536 = vpack.c.b16 %v504, %v502
        %569 = vmatprep.subr.bf16.mxu0 %v506
        %570 = vmatpush1.bf16.msra.mxu0 %v505
        %571 = vmatprep.subr.bf16.mxu0 %v508
        %572 = vmatpush1.bf16.msra.mxu0 %v507
        %573 = vmatprep.subr.bf16.mxu0 %v510
        %574 = vmatpush1.bf16.msra.mxu0 %v509
        %575 = vmatprep.subr.bf16.mxu0 %v512
        %576 = vmatpush1.bf16.msra.mxu0 %v511
        %577 = vmatprep.subr.bf16.mxu0 %v514
        %578 = vmatpush1.bf16.msra.mxu0 %v513
        %579 = vmatprep.subr.bf16.mxu0 %v516
        %580 = vmatpush1.bf16.msra.mxu0 %v515
        %581 = vmatprep.subr.bf16.mxu0 %v518
        %582 = vmatpush1.bf16.msra.mxu0 %v517
        %583 = vmatprep.subr.bf16.mxu0 %v520
        %584 = vmatpush1.bf16.msra.mxu0 %v519
        %585 = vmatprep.subr.bf16.mxu0 %v522
        %586 = vmatpush1.bf16.msra.mxu0 %v521
        %587 = vmatprep.subr.bf16.mxu0 %v524
        %588 = vmatpush1.bf16.msra.mxu0 %v523
        %589 = vmatprep.subr.bf16.mxu0 %v526
        %590 = vmatpush1.bf16.msra.mxu0 %v525
        %591 = vmatprep.subr.bf16.mxu0 %v528
        %592 = vmatpush1.bf16.msra.mxu0 %v527
        %593 = vmatprep.subr.bf16.mxu0 %v530
        %594 = vmatpush1.bf16.msra.mxu0 %v529
        %595 = vmatprep.subr.bf16.mxu0 %v532
        %596 = vmatpush1.bf16.msra.mxu0 %v531
        %597 = vmatprep.subr.bf16.mxu0 %v534
        %598 = vmatpush1.bf16.msra.mxu0 %v533
        %599 = vmatprep.subr.bf16.mxu0 %v536
        %600 = vmatpush1.bf16.msra.mxu0 %v535
        %601 = vmatprep.mubr.bf16.mxu0 %v364
        %602 = vmatmul.mubr.bf16.gmra.mrb[0].mxu0 %v363
        %v603 = vpop.f32.mrb[0].mxu0
        %v604 = vadd.f32 %v402, %v603
        %v605 = vpop.f32.mrb[0].mxu0
        %v606 = vadd.f32 %v406, %v605
        %v607 = vpop.f32.mrb[0].mxu0
        %v608 = vpop.f32.mrb[0].mxu0
        %609 = vdwg.mxu0
        %v612 = vcombine.low %v604, %v606
        %v614 = vunpack.c.l.s4 1983009808
        %v615 = vunpack.c.0.s8 %v614
        %v616 = vlaneseq
        %v617 = vshrl.u32 %v616, 7
        %v618 = vsub.s32 %v615, %v617
        %v619 = vrot.slane %v612, %v618
        %621 = vst [vmem:[%s349] sm:$0xf] %v619
        %s622 = smul.u32 2, %s14
        %p623 = scmp.lt.s32.totalorder %s622, 5
        %s624 = scalar_select %p623, %s622, 5
        %s625 = smul.addr %s624, 2
        %s626 = scalar_lea.vmem %s3, %s625
        // Predicated region
        $region71: #{pointnet_autoencoder.5} parent=65 // pred_check
          %p627 = pneg %p105
        $region72: #{pointnet_autoencoder.5} parent=65 // pred_check_branch
          %629 = sbr.rel (%p627) target = $region74
        $region73: #{pointnet_autoencoder.5} parent=65 // pred_region
          %s630 = smul.u32 2, %s14
        $region74: #{pointnet_autoencoder.5} parent=65 // pred_fallthru
          _
      $region66: #{pointnet_autoencoder.5} parent=5 // pred_fallthru
        _
      %p631 = scmp.le.s32.totalorder 2, %s9
      // Predicated region
      $region75: #{pointnet_autoencoder.5} parent=5 // pred_check
        %p632 = pneg %p631
      $region76: #{pointnet_autoencoder.5} parent=5 // pred_check_branch
        %634 = sbr.rel (%p632) target = $region78
      $region77: #{pointnet_autoencoder.5} parent=5 // pred_region
        %s635 = ssub.s32 %s9, 2
        // Predicated region
        $region79: #{pointnet_autoencoder.5} parent=77 // pred_check
          %p636 = pneg %p111
        $region80: #{pointnet_autoencoder.5} parent=77 // pred_check_branch
          %638 = sbr.rel (%p636) target = $region82
        $region81: #{pointnet_autoencoder.5} parent=77 // pred_region
          %s639 = smul.u32 2, %s15
          %p640 = scmp.lt.s32.totalorder %s639, 5
          %s641 = scalar_select %p640, %s639, 5
          %s642 = smul.addr %s641, 2
          %s643 = scalar_lea.vmem %s3, %s642
        $region82: #{pointnet_autoencoder.5} parent=77 // pred_fallthru
          _
      $region78: #{pointnet_autoencoder.5} parent=5 // pred_fallthru
        _
    $region6: #{pointnet_autoencoder.5} parent=1 // loop_footer
      %s13 = sadd.s32 1, %s9
    $region7: #{pointnet_autoencoder.5} parent=1 // loop_footer_branch
      %8 = sbr.rel target = $region3
    $region8: #{pointnet_autoencoder.5} parent=1 // loop_exit
      _

// kernel: pointnet_autoencoder.3
$region0: #{pointnet_autoencoder.3}
  #allocation0 [shape = 'u32[]', space=smem, size = 0x4, offset = 0x4, fixed_abs, tag = 'smem constant byte address 0x4 - core index']
  #allocation1 [shape = 'u32[144,128]{1,0:T(1,128)}', space=vmem, size = 0x12000, scoped, tag = 'internal scratch']
  %s0 = inlined_call_operand.vmem [shape: f32[2,256,3], index: 0, kind: input, shape index: {}]
  %s1 = inlined_call_operand.hbm [shape: f32[3,64], index: 1, kind: input, shape index: {}]
  %s2 = inlined_call_operand.hbm [shape: f32[1,64], index: 2, kind: input, shape index: {}]
  %s3 = inlined_call_operand.hbm [shape: bf16[64,64], index: 3, kind: input, shape index: {}]
  %s4 = inlined_call_operand.hbm [shape: f32[1,64], index: 4, kind: input, shape index: {}]
  %s5 = inlined_call_operand.hbm [shape: bf16[64,64], index: 5, kind: input, shape index: {}]
  %s6 = inlined_call_operand.hbm [shape: f32[1,64], index: 6, kind: input, shape index: {}]
  %s7 = inlined_call_operand.hbm [shape: bf16[64,128], index: 7, kind: input, shape index: {}]
  %s8 = inlined_call_operand.hbm [shape: f32[1,128], index: 8, kind: input, shape index: {}]
  %s9 = inlined_call_operand.hbm [shape: bf16[128,1024], index: 9, kind: input, shape index: {}]
  %s10 = inlined_call_operand.hbm [shape: f32[1,1024], index: 10, kind: input, shape index: {}]
  %s11 = inlined_call_operand.vmem [shape: f32[2,1,1024], index: 11, kind: output, shape index: {}]
  %s12 = sld [smem:[#allocation0]]
  $region121: #{pointnet_autoencoder.3} parent=0
    _
  %s14 = ssub.s32 1, %s12
  %s15 = scalar_select 0, %s14, %s12
  $region1: #{pointnet_autoencoder.3} parent=0
    #allocation2 [shape = 'u8[2048]{0}', space=vmem, size = 0x800, scoped, tag = 'input window, operand 1, single buffered']
    #allocation3 [shape = 's32[2]{0}', space=sflag, size = 0x8, scoped, tag = 'scoped memory for pointnet_autoencoder.3']
    #allocation4 [shape = 'u8[512]{0}', space=vmem, size = 0x400, scoped, tag = 'input window, operand 2, single buffered']
    #allocation5 [shape = 's32[1]{0}', space=sflag, size = 0x4, scoped, tag = 'scoped memory for pointnet_autoencoder.3']
    #allocation6 [shape = 'u8[16384]{0}', space=vmem, size = 0x4000, scoped, tag = 'input window, operand 3, single buffered']
    #allocation7 [shape = 'u8[512]{0}', space=vmem, size = 0x400, scoped, tag = 'input window, operand 4, single buffered']
    #allocation8 [shape = 's32[1]{0}', space=sflag, size = 0x4, scoped, tag = 'scoped memory for pointnet_autoencoder.3']
    #allocation9 [shape = 'u8[16384]{0}', space=vmem, size = 0x4000, scoped, tag = 'input window, operand 5, single buffered']
    #allocation10 [shape = 'u8[512]{0}', space=vmem, size = 0x400, scoped, tag = 'input window, operand 6, single buffered']
    #allocation11 [shape = 's32[1]{0}', space=sflag, size = 0x4, scoped, tag = 'scoped memory for pointnet_autoencoder.3']
    #allocation12 [shape = 'u8[16384]{0}', space=vmem, size = 0x4000, scoped, tag = 'input window, operand 7, single buffered']
    #allocation13 [shape = 'u8[512]{0}', space=vmem, size = 0x400, scoped, tag = 'input window, operand 8, single buffered']
    #allocation14 [shape = 's32[1]{0}', space=sflag, size = 0x4, scoped, tag = 'scoped memory for pointnet_autoencoder.3']
    #allocation15 [shape = 'u8[262144]{0}', space=vmem, size = 0x40000, scoped, tag = 'input window, operand 9, single buffered']
    #allocation16 [shape = 'u8[4096]{0}', space=vmem, size = 0x1000, scoped, tag = 'input window, operand 10, single buffered']
    #allocation17 [shape = 's32[1]{0}', space=sflag, size = 0x4, scoped, tag = 'scoped memory for pointnet_autoencoder.3']
    %16 = vsyncpa [#allocation3], 0
    %17 = vsyncpa [#allocation5], 0
    %18 = vsyncpa [#allocation8], 0
    %19 = vsyncpa [#allocation11], 0
    %20 = vsyncpa [#allocation14], 0
    %21 = vsyncpa [#allocation17], 0
    loop: start=0, step=1, limit=4
    $region2: #{pointnet_autoencoder.3} parent=1 // loop_pre_header
      _
    $region3: #{pointnet_autoencoder.3} parent=1 // loop_header
      %s23 = sphi 0, %s27
      %p24 = scmp.ge.s32.totalorder %s23, 4
      %s30 = sphi 0, %s42
      %s31 = sphi 0, %s38
      %s32 = sphi 0, %s30
      %s33 = sphi 0, %s31
      %s34 = sphi 0, %s32
      %s35 = sphi 0, %s33
      %s47 = sphi 0, %s49
      %s50 = sphi 0, %s47
      %s51 = sphi 0, %s50
      %s67 = sphi 0, %s51
      %s71 = sphi 0, %s71
      %s73 = sphi 0, %s71
      %s74 = sphi 0, %s73
      %s88 = sphi 0, %s74
      %s92 = sphi 0, %s92
      %s94 = sphi 0, %s92
      %s95 = sphi 0, %s94
      %s109 = sphi 0, %s95
      %s113 = sphi 0, %s113
      %s115 = sphi 0, %s113
      %s116 = sphi 0, %s115
      %s130 = sphi 0, %s116
      %s134 = sphi 0, %s134
      %s136 = sphi 0, %s134
      %s137 = sphi 0, %s136
      %s151 = sphi 0, %s137
      %s155 = sphi 0, %s155
      %s157 = sphi 0, %s155
      %s158 = sphi 0, %s157
      %s172 = sphi 0, %s158
      %s176 = sphi 0, %s176
      %s178 = sphi 0, %s176
      %s179 = sphi 0, %s178
      %s193 = sphi 0, %s179
      %s197 = sphi 0, %s197
      %s199 = sphi 0, %s197
      %s200 = sphi 0, %s199
      %s214 = sphi 0, %s200
      %s218 = sphi 0, %s218
      %s220 = sphi 0, %s218
      %s221 = sphi 0, %s220
      %s235 = sphi 0, %s221
      %s239 = sphi 0, %s239
      %s241 = sphi 0, %s239
      %s242 = sphi 0, %s241
      %s256 = sphi 0, %s242
      %s260 = sphi 0, %s260
      %s262 = sphi 0, %s260
      %s263 = sphi 0, %s262
      %s277 = sphi 0, %s263
      %s283 = sphi 0, %s285
      %s286 = sphi 0, %s283
      %s287 = sphi 0, %s286
      %s303 = sphi 0, %s287
    $region4: #{pointnet_autoencoder.3} parent=1 // loop_header_branch
      %26 = sbr.rel (%p24) target = $region8
    $region5: #{pointnet_autoencoder.3} parent=1 // loop_body
      %s28 = ssub.s32 %s23, 1
      %s29 = ssub.s32 %s23, 2
      %s36 = sadd.s32 1, %s31
      %p37 = scmp.ge.s32.totalorder %s36, 1
      %s38 = scalar_select %p37, 0, %s36
      %s39 = sadd.s32 1, %s30
      %s40 = scalar_select %p37, %s39, %s30
      %p41 = scmp.ge.s32.totalorder %s40, 2
      %s42 = scalar_select %p41, 0, %s40
      %s43 = ssub.s32 %s30, %s42
      %s44 = ssub.s32 %s31, %s38
      %s45 = sor.u32 %s43, %s44
      %p46 = scmp.eq.s32.totalorder %s45, 0
      %s48 = sadd.s32 %s47, 1
      %s49 = scalar_select %p46, %s47, %s48
      %p52 = pneg %p46
      %p53 = scmp.eq.s32.totalorder %s23, 1
      %p54 = por %p52, %p53
      %p55 = scmp.ne.s32.totalorder %s47, %s50
      %p56 = scmp.eq.s32.totalorder %s23, 0
      %p57 = por %p55, %p56
      %p58 = scmp.ne.s32.totalorder %s47, %s50
      %p59 = scmp.eq.s32.totalorder %s28, 1
      %p60 = por %p58, %p59
      %p61 = scmp.ne.s32.totalorder %s50, %s51
      %p62 = scmp.eq.s32.totalorder %s28, 0
      %p63 = por %p61, %p62
      %p64 = scmp.ne.s32.totalorder %s50, %s51
      %p65 = scmp.eq.s32.totalorder %s29, 1
      %p66 = por %p64, %p65
      %p68 = scmp.ne.s32.totalorder %s51, %s67
      %p69 = scmp.eq.s32.totalorder %s29, 0
      %p70 = por %p68, %p69
      %s72 = sadd.s32 %s71, 1
      %p75 = scmp.eq.s32.totalorder %s23, 1
      %p76 = scmp.ne.s32.totalorder %s71, %s73
      %p77 = scmp.eq.s32.totalorder %s23, 0
      %p78 = por %p76, %p77
      %p79 = scmp.ne.s32.totalorder %s71, %s73
      %p80 = scmp.eq.s32.totalorder %s28, 1
      %p81 = por %p79, %p80
      %p82 = scmp.ne.s32.totalorder %s73, %s74
      %p83 = scmp.eq.s32.totalorder %s28, 0
      %p84 = por %p82, %p83
      %p85 = scmp.ne.s32.totalorder %s73, %s74
      %p86 = scmp.eq.s32.totalorder %s29, 1
      %p87 = por %p85, %p86
      %p89 = scmp.ne.s32.totalorder %s74, %s88
      %p90 = scmp.eq.s32.totalorder %s29, 0
      %p91 = por %p89, %p90
      %s93 = sadd.s32 %s92, 1
      %p96 = scmp.eq.s32.totalorder %s23, 1
      %p97 = scmp.ne.s32.totalorder %s92, %s94
      %p98 = scmp.eq.s32.totalorder %s23, 0
      %p99 = por %p97, %p98
      %p100 = scmp.ne.s32.totalorder %s92, %s94
      %p101 = scmp.eq.s32.totalorder %s28, 1
      %p102 = por %p100, %p101
      %p103 = scmp.ne.s32.totalorder %s94, %s95
      %p104 = scmp.eq.s32.totalorder %s28, 0
      %p105 = por %p103, %p104
      %p106 = scmp.ne.s32.totalorder %s94, %s95
      %p107 = scmp.eq.s32.totalorder %s29, 1
      %p108 = por %p106, %p107
      %p110 = scmp.ne.s32.totalorder %s95, %s109
      %p111 = scmp.eq.s32.totalorder %s29, 0
      %p112 = por %p110, %p111
      %s114 = sadd.s32 %s113, 1
      %p117 = scmp.eq.s32.totalorder %s23, 1
      %p118 = scmp.ne.s32.totalorder %s113, %s115
      %p119 = scmp.eq.s32.totalorder %s23, 0
      %p120 = por %p118, %p119
      %p121 = scmp.ne.s32.totalorder %s113, %s115
      %p122 = scmp.eq.s32.totalorder %s28, 1
      %p123 = por %p121, %p122
      %p124 = scmp.ne.s32.totalorder %s115, %s116
      %p125 = scmp.eq.s32.totalorder %s28, 0
      %p126 = por %p124, %p125
      %p127 = scmp.ne.s32.totalorder %s115, %s116
      %p128 = scmp.eq.s32.totalorder %s29, 1
      %p129 = por %p127, %p128
      %p131 = scmp.ne.s32.totalorder %s116, %s130
      %p132 = scmp.eq.s32.totalorder %s29, 0
      %p133 = por %p131, %p132
      %s135 = sadd.s32 %s134, 1
      %p138 = scmp.eq.s32.totalorder %s23, 1
      %p139 = scmp.ne.s32.totalorder %s134, %s136
      %p140 = scmp.eq.s32.totalorder %s23, 0
      %p141 = por %p139, %p140
      %p142 = scmp.ne.s32.totalorder %s134, %s136
      %p143 = scmp.eq.s32.totalorder %s28, 1
      %p144 = por %p142, %p143
      %p145 = scmp.ne.s32.totalorder %s136, %s137
      %p146 = scmp.eq.s32.totalorder %s28, 0
      %p147 = por %p145, %p146
      %p148 = scmp.ne.s32.totalorder %s136, %s137
      %p149 = scmp.eq.s32.totalorder %s29, 1
      %p150 = por %p148, %p149
      %p152 = scmp.ne.s32.totalorder %s137, %s151
      %p153 = scmp.eq.s32.totalorder %s29, 0
      %p154 = por %p152, %p153
      %s156 = sadd.s32 %s155, 1
      %p159 = scmp.eq.s32.totalorder %s23, 1
      %p160 = scmp.ne.s32.totalorder %s155, %s157
      %p161 = scmp.eq.s32.totalorder %s23, 0
      %p162 = por %p160, %p161
      %p163 = scmp.ne.s32.totalorder %s155, %s157
      %p164 = scmp.eq.s32.totalorder %s28, 1
      %p165 = por %p163, %p164
      %p166 = scmp.ne.s32.totalorder %s157, %s158
      %p167 = scmp.eq.s32.totalorder %s28, 0
      %p168 = por %p166, %p167
      %p169 = scmp.ne.s32.totalorder %s157, %s158
      %p170 = scmp.eq.s32.totalorder %s29, 1
      %p171 = por %p169, %p170
      %p173 = scmp.ne.s32.totalorder %s158, %s172
      %p174 = scmp.eq.s32.totalorder %s29, 0
      %p175 = por %p173, %p174
      %s177 = sadd.s32 %s176, 1
      %p180 = scmp.eq.s32.totalorder %s23, 1
      %p181 = scmp.ne.s32.totalorder %s176, %s178
      %p182 = scmp.eq.s32.totalorder %s23, 0
      %p183 = por %p181, %p182
      %p184 = scmp.ne.s32.totalorder %s176, %s178
      %p185 = scmp.eq.s32.totalorder %s28, 1
      %p186 = por %p184, %p185
      %p187 = scmp.ne.s32.totalorder %s178, %s179
      %p188 = scmp.eq.s32.totalorder %s28, 0
      %p189 = por %p187, %p188
      %p190 = scmp.ne.s32.totalorder %s178, %s179
      %p191 = scmp.eq.s32.totalorder %s29, 1
      %p192 = por %p190, %p191
      %p194 = scmp.ne.s32.totalorder %s179, %s193
      %p195 = scmp.eq.s32.totalorder %s29, 0
      %p196 = por %p194, %p195
      %s198 = sadd.s32 %s197, 1
      %p201 = scmp.eq.s32.totalorder %s23, 1
      %p202 = scmp.ne.s32.totalorder %s197, %s199
      %p203 = scmp.eq.s32.totalorder %s23, 0
      %p204 = por %p202, %p203
      %p205 = scmp.ne.s32.totalorder %s197, %s199
      %p206 = scmp.eq.s32.totalorder %s28, 1
      %p207 = por %p205, %p206
      %p208 = scmp.ne.s32.totalorder %s199, %s200
      %p209 = scmp.eq.s32.totalorder %s28, 0
      %p210 = por %p208, %p209
      %p211 = scmp.ne.s32.totalorder %s199, %s200
      %p212 = scmp.eq.s32.totalorder %s29, 1
      %p213 = por %p211, %p212
      %p215 = scmp.ne.s32.totalorder %s200, %s214
      %p216 = scmp.eq.s32.totalorder %s29, 0
      %p217 = por %p215, %p216
      %s219 = sadd.s32 %s218, 1
      %p222 = scmp.eq.s32.totalorder %s23, 1
      %p223 = scmp.ne.s32.totalorder %s218, %s220
      %p224 = scmp.eq.s32.totalorder %s23, 0
      %p225 = por %p223, %p224
      %p226 = scmp.ne.s32.totalorder %s218, %s220
      %p227 = scmp.eq.s32.totalorder %s28, 1
      %p228 = por %p226, %p227
      %p229 = scmp.ne.s32.totalorder %s220, %s221
      %p230 = scmp.eq.s32.totalorder %s28, 0
      %p231 = por %p229, %p230
      %p232 = scmp.ne.s32.totalorder %s220, %s221
      %p233 = scmp.eq.s32.totalorder %s29, 1
      %p234 = por %p232, %p233
      %p236 = scmp.ne.s32.totalorder %s221, %s235
      %p237 = scmp.eq.s32.totalorder %s29, 0
      %p238 = por %p236, %p237
      %s240 = sadd.s32 %s239, 1
      %p243 = scmp.eq.s32.totalorder %s23, 1
      %p244 = scmp.ne.s32.totalorder %s239, %s241
      %p245 = scmp.eq.s32.totalorder %s23, 0
      %p246 = por %p244, %p245
      %p247 = scmp.ne.s32.totalorder %s239, %s241
      %p248 = scmp.eq.s32.totalorder %s28, 1
      %p249 = por %p247, %p248
      %p250 = scmp.ne.s32.totalorder %s241, %s242
      %p251 = scmp.eq.s32.totalorder %s28, 0
      %p252 = por %p250, %p251
      %p253 = scmp.ne.s32.totalorder %s241, %s242
      %p254 = scmp.eq.s32.totalorder %s29, 1
      %p255 = por %p253, %p254
      %p257 = scmp.ne.s32.totalorder %s242, %s256
      %p258 = scmp.eq.s32.totalorder %s29, 0
      %p259 = por %p257, %p258
      %s261 = sadd.s32 %s260, 1
      %p264 = scmp.eq.s32.totalorder %s23, 1
      %p265 = scmp.ne.s32.totalorder %s260, %s262
      %p266 = scmp.eq.s32.totalorder %s23, 0
      %p267 = por %p265, %p266
      %p268 = scmp.ne.s32.totalorder %s260, %s262
      %p269 = scmp.eq.s32.totalorder %s28, 1
      %p270 = por %p268, %p269
      %p271 = scmp.ne.s32.totalorder %s262, %s263
      %p272 = scmp.eq.s32.totalorder %s28, 0
      %p273 = por %p271, %p272
      %p274 = scmp.ne.s32.totalorder %s262, %s263
      %p275 = scmp.eq.s32.totalorder %s29, 1
      %p276 = por %p274, %p275
      %p278 = scmp.ne.s32.totalorder %s263, %s277
      %p279 = scmp.eq.s32.totalorder %s29, 0
      %p280 = por %p278, %p279
      %s281 = ssub.s32 %s30, %s42
      %p282 = scmp.eq.s32.totalorder %s281, 0
      %s284 = sadd.s32 %s283, 1
      %s285 = scalar_select %p282, %s283, %s284
      %p288 = pneg %p282
      %p289 = scmp.eq.s32.totalorder %s23, 1
      %p290 = por %p288, %p289
      %p291 = scmp.ne.s32.totalorder %s283, %s286
      %p292 = scmp.eq.s32.totalorder %s23, 0
      %p293 = por %p291, %p292
      %p294 = scmp.ne.s32.totalorder %s283, %s286
      %p295 = scmp.eq.s32.totalorder %s28, 1
      %p296 = por %p294, %p295
      %p297 = scmp.ne.s32.totalorder %s286, %s287
      %p298 = scmp.eq.s32.totalorder %s28, 0
      %p299 = por %p297, %p298
      %p300 = scmp.ne.s32.totalorder %s286, %s287
      %p301 = scmp.eq.s32.totalorder %s29, 1
      %p302 = por %p300, %p301
      %p304 = scmp.ne.s32.totalorder %s287, %s303
      %p305 = scmp.eq.s32.totalorder %s29, 0
      %p306 = por %p304, %p305
      %p307 = scmp.le.s32.totalorder 1, %s23
      %p308 = scmp.lt.s32.totalorder %s23, 3
      %p309 = pnand %p307, %p308
      %p310 = pneg %p309
      // Predicated region
      $region9: #{pointnet_autoencoder.3} parent=5 // pred_check
        _
      $region10: #{pointnet_autoencoder.3} parent=5 // pred_check_branch
        %312 = sbr.rel (%p309) target = $region12
      $region11: #{pointnet_autoencoder.3} parent=5 // pred_region
        %s313 = ssub.s32 %s23, 1
        // Predicated region
        $region13: #{pointnet_autoencoder.3} parent=11 // pred_check
          %p314 = pneg %p84
        $region14: #{pointnet_autoencoder.3} parent=11 // pred_check_branch
          %316 = sbr.rel (%p314) target = $region16
        $region15: #{pointnet_autoencoder.3} parent=11 // pred_region
          %s318 = ssub.s32 64, 64
          %319 = vsyncadd [#allocation3], %s318
          %s321 = sshll.u32 [#allocation2], 4
          %s322 = int_to_ptr.vmem [resolvable:$true] %s321
          %324 = dma.hbm_to_vmem [thread:$0]  %s1, 64, %s322, [#allocation3]
        $region16: #{pointnet_autoencoder.3} parent=11 // pred_fallthru
          _
        // Predicated region
        $region17: #{pointnet_autoencoder.3} parent=11 // pred_check
          %p325 = pneg %p105
        $region18: #{pointnet_autoencoder.3} parent=11 // pred_check_branch
          %327 = sbr.rel (%p325) target = $region20
        $region19: #{pointnet_autoencoder.3} parent=11 // pred_region
          %s329 = ssub.s32 16, 16
          %330 = vsyncadd [#allocation5], %s329
          %s332 = sshll.u32 [#allocation4], 4
          %s333 = int_to_ptr.vmem [resolvable:$true] %s332
          %335 = dma.hbm_to_vmem [thread:$0]  %s2, 16, %s333, [#allocation5]
        $region20: #{pointnet_autoencoder.3} parent=11 // pred_fallthru
          _
        // Predicated region
        $region21: #{pointnet_autoencoder.3} parent=11 // pred_check
          %p336 = pneg %p126
        $region22: #{pointnet_autoencoder.3} parent=11 // pred_check_branch
          %338 = sbr.rel (%p336) target = $region24
        $region23: #{pointnet_autoencoder.3} parent=11 // pred_region
          %s340 = ssub.s32 512, 512
          %341 = vsyncadd [#allocation5], %s340
          %s342 = sshll.u32 [#allocation6], 4
          %s343 = int_to_ptr.vmem [resolvable:$true] %s342
          %348 = dma.hbm_to_vmem [thread:$0]  %s3, 512, %s343, [#allocation5], 64, 64, 4
        $region24: #{pointnet_autoencoder.3} parent=11 // pred_fallthru
          _
        // Predicated region
        $region25: #{pointnet_autoencoder.3} parent=11 // pred_check
          %p349 = pneg %p147
        $region26: #{pointnet_autoencoder.3} parent=11 // pred_check_branch
          %351 = sbr.rel (%p349) target = $region28
        $region27: #{pointnet_autoencoder.3} parent=11 // pred_region
          %s353 = ssub.s32 16, 16
          %354 = vsyncadd [#allocation8], %s353
          %s356 = sshll.u32 [#allocation7], 4
          %s357 = int_to_ptr.vmem [resolvable:$true] %s356
          %359 = dma.hbm_to_vmem [thread:$0]  %s4, 16, %s357, [#allocation8]
        $region28: #{pointnet_autoencoder.3} parent=11 // pred_fallthru
          _
        // Predicated region
        $region29: #{pointnet_autoencoder.3} parent=11 // pred_check
          %p360 = pneg %p168
        $region30: #{pointnet_autoencoder.3} parent=11 // pred_check_branch
          %362 = sbr.rel (%p360) target = $region32
        $region31: #{pointnet_autoencoder.3} parent=11 // pred_region
          %s364 = ssub.s32 512, 512
          %365 = vsyncadd [#allocation8], %s364
          %s366 = sshll.u32 [#allocation9], 4
          %s367 = int_to_ptr.vmem [resolvable:$true] %s366
          %372 = dma.hbm_to_vmem [thread:$0]  %s5, 512, %s367, [#allocation8], 64, 64, 4
        $region32: #{pointnet_autoencoder.3} parent=11 // pred_fallthru
          _
        // Predicated region
        $region33: #{pointnet_autoencoder.3} parent=11 // pred_check
          %p373 = pneg %p189
        $region34: #{pointnet_autoencoder.3} parent=11 // pred_check_branch
          %375 = sbr.rel (%p373) target = $region36
        $region35: #{pointnet_autoencoder.3} parent=11 // pred_region
          %s377 = ssub.s32 16, 16
          %378 = vsyncadd [#allocation11], %s377
          %s380 = sshll.u32 [#allocation10], 4
          %s381 = int_to_ptr.vmem [resolvable:$true] %s380
          %383 = dma.hbm_to_vmem [thread:$0]  %s6, 16, %s381, [#allocation11]
        $region36: #{pointnet_autoencoder.3} parent=11 // pred_fallthru
          _
        // Predicated region
        $region37: #{pointnet_autoencoder.3} parent=11 // pred_check
          %p384 = pneg %p210
        $region38: #{pointnet_autoencoder.3} parent=11 // pred_check_branch
          %386 = sbr.rel (%p384) target = $region40
        $region39: #{pointnet_autoencoder.3} parent=11 // pred_region
          %s388 = ssub.s32 512, 512
          %389 = vsyncadd [#allocation11], %s388
          %s390 = sshll.u32 [#allocation12], 4
          %s391 = int_to_ptr.vmem [resolvable:$true] %s390
          %396 = dma.hbm_to_vmem [thread:$0]  %s7, 512, %s391, [#allocation11], 64, 64, 4
        $region40: #{pointnet_autoencoder.3} parent=11 // pred_fallthru
          _
        // Predicated region
        $region41: #{pointnet_autoencoder.3} parent=11 // pred_check
          %p397 = pneg %p231
        $region42: #{pointnet_autoencoder.3} parent=11 // pred_check_branch
          %399 = sbr.rel (%p397) target = $region44
        $region43: #{pointnet_autoencoder.3} parent=11 // pred_region
          %s401 = ssub.s32 16, 16
          %402 = vsyncadd [#allocation14], %s401
          %s404 = sshll.u32 [#allocation13], 4
          %s405 = int_to_ptr.vmem [resolvable:$true] %s404
          %407 = dma.hbm_to_vmem [thread:$0]  %s8, 16, %s405, [#allocation14]
        $region44: #{pointnet_autoencoder.3} parent=11 // pred_fallthru
          _
        // Predicated region
        $region45: #{pointnet_autoencoder.3} parent=11 // pred_check
          %p408 = pneg %p252
        $region46: #{pointnet_autoencoder.3} parent=11 // pred_check_branch
          %410 = sbr.rel (%p408) target = $region48
        $region47: #{pointnet_autoencoder.3} parent=11 // pred_region
          %s412 = ssub.s32 8192, 8192
          %413 = vsyncadd [#allocation14], %s412
          %s414 = sshll.u32 [#allocation15], 4
          %s415 = int_to_ptr.vmem [resolvable:$true] %s414
          %420 = dma.hbm_to_vmem [thread:$0]  %s9, 8192, %s415, [#allocation14], 512, 512, 32
        $region48: #{pointnet_autoencoder.3} parent=11 // pred_fallthru
          _
        // Predicated region
        $region49: #{pointnet_autoencoder.3} parent=11 // pred_check
          %p421 = pneg %p273
        $region50: #{pointnet_autoencoder.3} parent=11 // pred_check_branch
          %423 = sbr.rel (%p421) target = $region52
        $region51: #{pointnet_autoencoder.3} parent=11 // pred_region
          %s425 = ssub.s32 128, 128
          %426 = vsyncadd [#allocation17], %s425
          %s428 = sshll.u32 [#allocation16], 4
          %s429 = int_to_ptr.vmem [resolvable:$true] %s428
          %431 = dma.hbm_to_vmem [thread:$0]  %s10, 128, %s429, [#allocation17]
        $region52: #{pointnet_autoencoder.3} parent=11 // pred_fallthru
          _
      $region12: #{pointnet_autoencoder.3} parent=5 // pred_fallthru
        _
      %p432 = scmp.lt.s32.totalorder %s23, 2
      // Predicated region
      $region53: #{pointnet_autoencoder.3} parent=5 // pred_check
        %p433 = pneg %p432
      $region54: #{pointnet_autoencoder.3} parent=5 // pred_check_branch
        %435 = sbr.rel (%p433) target = $region56
      $region55: #{pointnet_autoencoder.3} parent=5 // pred_region
        // Predicated region
        $region57: #{pointnet_autoencoder.3} parent=55 // pred_check
          %p436 = pneg %p57
        $region58: #{pointnet_autoencoder.3} parent=55 // pred_check_branch
          %438 = sbr.rel (%p436) target = $region60
        $region59: #{pointnet_autoencoder.3} parent=55 // pred_region
          %s439 = smul.u32 32, %s31
          %p440 = scmp.lt.s32.totalorder %s30, 1
          %s441 = scalar_select %p440, %s30, 1
          %p442 = scmp.lt.s32.totalorder %s439, 31
          %s443 = scalar_select %p442, %s439, 31
          %s444 = smul.addr %s441, 32
          %s445 = sadd.s32 %s443, %s444
          %s446 = smul.addr %s445, 8
          %s447 = scalar_lea.vmem %s0, %s446
          %s448 = smul.u32 32, %s31
        $region60: #{pointnet_autoencoder.3} parent=55 // pred_fallthru
          _
      $region56: #{pointnet_autoencoder.3} parent=5 // pred_fallthru
        _
      %p449 = scmp.le.s32.totalorder 1, %s23
      %p450 = scmp.lt.s32.totalorder %s23, 3
      %p451 = pnand %p449, %p450
      %p452 = pneg %p451
      // Predicated region
      $region61: #{pointnet_autoencoder.3} parent=5 // pred_check
        _
      $region62: #{pointnet_autoencoder.3} parent=5 // pred_check_branch
        %454 = sbr.rel (%p451) target = $region64
      $region63: #{pointnet_autoencoder.3} parent=5 // pred_region
        %s455 = ssub.s32 %s23, 1
        // Predicated region
        $region65: #{pointnet_autoencoder.3} parent=63 // pred_check
          %p456 = pneg %p84
        $region66: #{pointnet_autoencoder.3} parent=63 // pred_check_branch
          %458 = sbr.rel (%p456) target = $region68
        $region67: #{pointnet_autoencoder.3} parent=63 // pred_region
          %459 = dma.done [#allocation3], 64
        $region68: #{pointnet_autoencoder.3} parent=63 // pred_fallthru
          _
        // Predicated region
        $region69: #{pointnet_autoencoder.3} parent=63 // pred_check
          %p460 = pneg %p105
        $region70: #{pointnet_autoencoder.3} parent=63 // pred_check_branch
          %462 = sbr.rel (%p460) target = $region72
        $region71: #{pointnet_autoencoder.3} parent=63 // pred_region
          %463 = dma.done [#allocation5], 16
        $region72: #{pointnet_autoencoder.3} parent=63 // pred_fallthru
          _
        // Predicated region
        $region73: #{pointnet_autoencoder.3} parent=63 // pred_check
          %p464 = pneg %p126
        $region74: #{pointnet_autoencoder.3} parent=63 // pred_check_branch
          %466 = sbr.rel (%p464) target = $region76
        $region75: #{pointnet_autoencoder.3} parent=63 // pred_region
          %467 = dma.done [#allocation5], 512
        $region76: #{pointnet_autoencoder.3} parent=63 // pred_fallthru
          _
        // Predicated region
        $region77: #{pointnet_autoencoder.3} parent=63 // pred_check
          %p468 = pneg %p147
        $region78: #{pointnet_autoencoder.3} parent=63 // pred_check_branch
          %470 = sbr.rel (%p468) target = $region80
        $region79: #{pointnet_autoencoder.3} parent=63 // pred_region
          %471 = dma.done [#allocation8], 16
        $region80: #{pointnet_autoencoder.3} parent=63 // pred_fallthru
          _
        // Predicated region
        $region81: #{pointnet_autoencoder.3} parent=63 // pred_check
          %p472 = pneg %p168
        $region82: #{pointnet_autoencoder.3} parent=63 // pred_check_branch
          %474 = sbr.rel (%p472) target = $region84
        $region83: #{pointnet_autoencoder.3} parent=63 // pred_region
          %475 = dma.done [#allocation8], 512
        $region84: #{pointnet_autoencoder.3} parent=63 // pred_fallthru
          _
        // Predicated region
        $region85: #{pointnet_autoencoder.3} parent=63 // pred_check
          %p476 = pneg %p189
        $region86: #{pointnet_autoencoder.3} parent=63 // pred_check_branch
          %478 = sbr.rel (%p476) target = $region88
        $region87: #{pointnet_autoencoder.3} parent=63 // pred_region
          %479 = dma.done [#allocation11], 16
        $region88: #{pointnet_autoencoder.3} parent=63 // pred_fallthru
          _
        // Predicated region
        $region89: #{pointnet_autoencoder.3} parent=63 // pred_check
          %p480 = pneg %p210
        $region90: #{pointnet_autoencoder.3} parent=63 // pred_check_branch
          %482 = sbr.rel (%p480) target = $region92
        $region91: #{pointnet_autoencoder.3} parent=63 // pred_region
          %483 = dma.done [#allocation11], 512
        $region92: #{pointnet_autoencoder.3} parent=63 // pred_fallthru
          _
        // Predicated region
        $region93: #{pointnet_autoencoder.3} parent=63 // pred_check
          %p484 = pneg %p231
        $region94: #{pointnet_autoencoder.3} parent=63 // pred_check_branch
          %486 = sbr.rel (%p484) target = $region96
        $region95: #{pointnet_autoencoder.3} parent=63 // pred_region
          %487 = dma.done [#allocation14], 16
        $region96: #{pointnet_autoencoder.3} parent=63 // pred_fallthru
          _
        // Predicated region
        $region97: #{pointnet_autoencoder.3} parent=63 // pred_check
          %p488 = pneg %p252
        $region98: #{pointnet_autoencoder.3} parent=63 // pred_check_branch
          %490 = sbr.rel (%p488) target = $region100
        $region99: #{pointnet_autoencoder.3} parent=63 // pred_region
          %491 = dma.done [#allocation14], 8192
        $region100: #{pointnet_autoencoder.3} parent=63 // pred_fallthru
          _
        // Predicated region
        $region101: #{pointnet_autoencoder.3} parent=63 // pred_check
          %p492 = pneg %p273
        $region102: #{pointnet_autoencoder.3} parent=63 // pred_check_branch
          %494 = sbr.rel (%p492) target = $region104
        $region103: #{pointnet_autoencoder.3} parent=63 // pred_region
          %495 = dma.done [#allocation17], 128
        $region104: #{pointnet_autoencoder.3} parent=63 // pred_fallthru
          _
        %s496 = smul.u32 32, %s33
        %p497 = scmp.lt.s32.totalorder %s32, 1
        %s498 = scalar_select %p497, %s32, 1
        %p499 = scmp.lt.s32.totalorder %s496, 31
        %s500 = scalar_select %p499, %s496, 31
        %s501 = smul.addr %s498, 32
        %s502 = sadd.s32 %s500, %s501
        %s503 = smul.addr %s502, 8
        %s504 = scalar_lea.vmem %s0, %s503
        %p505 = pneg %p63
        %p506 = pneg %p60
        %p507 = pneg %p84
        %p508 = pneg %p81
        %p509 = pneg %p105
        %p510 = pneg %p102
        %p511 = pneg %p126
        %p512 = pneg %p123
        %p513 = pneg %p147
        %p514 = pneg %p144
        %p515 = pneg %p168
        %p516 = pneg %p165
        %p517 = pneg %p189
        %p518 = pneg %p186
        %p519 = pneg %p210
        %p520 = pneg %p207
        %p521 = pneg %p231
        %p522 = pneg %p228
        %p523 = pneg %p252
        %p524 = pneg %p249
        %p525 = pneg %p273
        %p526 = pneg %p270
        %p527 = pneg %p299
        %p528 = pneg %p296
        %p529 = scmp.lt.s32.totalorder %s32, 1
        %s530 = scalar_select %p529, %s32, 1
        %s531 = smul.addr %s530, 8
        %s532 = scalar_lea.vmem %s11, %s531
        %s533 = smul.u32 32, %s33
        %p534 = scmp.lt.s32.totalorder %s32, 1
        %s535 = scalar_select %p534, %s32, 1
        %p536 = scmp.lt.s32.totalorder %s533, 31
        %s537 = scalar_select %p536, %s533, 31
        %s538 = smul.addr %s535, 32
        %s539 = sadd.s32 %s537, %s538
        %s540 = smul.addr %s539, 8
        %s541 = scalar_lea.vmem %s0, %s540
        %s542 = smul.u32 32, %s33
        %p543 = scmp.lt.s32.totalorder %s32, 1
        %s544 = scalar_select %p543, %s32, 1
        %s545 = smul.addr %s544, 8
        %s546 = scalar_lea.vmem %s11, %s545
        %p548 = scmp.eq.s32.totalorder %s33, 0
        // Predicated region
        $region105: #{pointnet_autoencoder.3} parent=63 // pred_check
          %p549 = pneg %p548
        $region106: #{pointnet_autoencoder.3} parent=63 // pred_check_branch
          %551 = sbr.rel (%p549) target = $region108
        $region107: #{pointnet_autoencoder.3} parent=63 // pred_region
          %552 = vst [vmem:[%s546] sm:$0xff] -inf
        $region108: #{pointnet_autoencoder.3} parent=63 // pred_fallthru
          _
        %v553 = vld [vmem:[%s541] sm:$0xff]
        %v554 = vld [vmem:[%s541 + $0x8] sm:$0xff]
        %v555 = vld [vmem:[%s541 + $0x10] sm:$0xff]
        %v556 = vld [vmem:[%s541 + $0x18] sm:$0xff]
        %v557 = vld [vmem:[%s541 + $0x20] sm:$0xff]
        %v558 = vld [vmem:[%s541 + $0x28] sm:$0xff]
        %v559 = vld [vmem:[%s541 + $0x30] sm:$0xff]
        %v560 = vld [vmem:[%s541 + $0x38] sm:$0xff]
        %v561 = vld [vmem:[%s541 + $0x40] sm:$0xff]
        %v562 = vld [vmem:[%s541 + $0x48] sm:$0xff]
        %v563 = vld [vmem:[%s541 + $0x50] sm:$0xff]
        %v564 = vld [vmem:[%s541 + $0x58] sm:$0xff]
        %v565 = vld [vmem:[%s541 + $0x60] sm:$0xff]
        %v566 = vld [vmem:[%s541 + $0x68] sm:$0xff]
        %v567 = vld [vmem:[%s541 + $0x70] sm:$0xff]
        %v568 = vld [vmem:[%s541 + $0x78] sm:$0xff]
        %v569 = vld [vmem:[%s541 + $0x80] sm:$0xff]
        %v570 = vld [vmem:[%s541 + $0x88] sm:$0xff]
        %v571 = vld [vmem:[%s541 + $0x90] sm:$0xff]
        %v572 = vld [vmem:[%s541 + $0x98] sm:$0xff]
        %v573 = vld [vmem:[%s541 + $0xa0] sm:$0xff]
        %v574 = vld [vmem:[%s541 + $0xa8] sm:$0xff]
        %v575 = vld [vmem:[%s541 + $0xb0] sm:$0xff]
        %v576 = vld [vmem:[%s541 + $0xb8] sm:$0xff]
        %v577 = vld [vmem:[%s541 + $0xc0] sm:$0xff]
        %v578 = vld [vmem:[%s541 + $0xc8] sm:$0xff]
        %v579 = vld [vmem:[%s541 + $0xd0] sm:$0xff]
        %v580 = vld [vmem:[%s541 + $0xd8] sm:$0xff]
        %v581 = vld [vmem:[%s541 + $0xe0] sm:$0xff]
        %v582 = vld [vmem:[%s541 + $0xe8] sm:$0xff]
        %v583 = vld [vmem:[%s541 + $0xf0] sm:$0xff]
        %v584 = vld [vmem:[%s541 + $0xf8] sm:$0xff]
        %v585 = vld [vmem:[#allocation2] sm:$0x7]
        %v586 = vld [vmem:[#allocation4] sm:$0x1]
        %v588 = vlaneseq
        %v589 = vshrl.u32 %v588, 7
        %v590 = vsub.s32 0, %v589
        %v591 = vrot.slane %v586, %v590
        %vm593 = vcmask 23552
        %v595 = vsel %vm593, %v553, 0
        %v598 = vsel %vm593, %v554, 0
        %v601 = vsel %vm593, %v555, 0
        %v604 = vsel %vm593, %v556, 0
        %v607 = vsel %vm593, %v557, 0
        %v610 = vsel %vm593, %v558, 0
        %v613 = vsel %vm593, %v559, 0
        %v616 = vsel %vm593, %v560, 0
        %v619 = vsel %vm593, %v561, 0
        %v622 = vsel %vm593, %v562, 0
        %v625 = vsel %vm593, %v563, 0
        %v628 = vsel %vm593, %v564, 0
        %v631 = vsel %vm593, %v565, 0
        %v634 = vsel %vm593, %v566, 0
        %v637 = vsel %vm593, %v567, 0
        %v640 = vsel %vm593, %v568, 0
        %v643 = vsel %vm593, %v569, 0
        %v646 = vsel %vm593, %v570, 0
        %v649 = vsel %vm593, %v571, 0
        %v652 = vsel %vm593, %v572, 0
        %v655 = vsel %vm593, %v573, 0
        %v658 = vsel %vm593, %v574, 0
        %v661 = vsel %vm593, %v575, 0
        %v664 = vsel %vm593, %v576, 0
        %v667 = vsel %vm593, %v577, 0
        %v670 = vsel %vm593, %v578, 0
        %v673 = vsel %vm593, %v579, 0
        %v676 = vsel %vm593, %v580, 0
        %v679 = vsel %vm593, %v581, 0
        %v682 = vsel %vm593, %v582, 0
        %v685 = vsel %vm593, %v583, 0
        %v688 = vsel %vm593, %v584, 0
        %vm690 = vcmask 1042432
        %v692 = vsel %vm690, %v585, 0
        %694 = vmatprep.subr.mxu0 0.0
        %695 = vmatpush1.msra.mxu0 %v692
        %696 = vmatprep.subr.mxu0 0.0
        %697 = vmatpush1.msra.mxu0 0.0
        %698 = vmatprep.subr.mxu0 0.0
        %699 = vmatpush1.msra.mxu0 0.0
        %700 = vmatprep.subr.mxu0 0.0
        %701 = vmatpush1.msra.mxu0 0.0
        %702 = vmatprep.subr.mxu0 0.0
        %703 = vmatpush1.msra.mxu0 0.0
        %704 = vmatprep.subr.mxu0 0.0
        %705 = vmatpush1.msra.mxu0 0.0
        %706 = vmatprep.subr.mxu0 0.0
        %707 = vmatpush1.msra.mxu0 0.0
        %708 = vmatprep.subr.mxu0 0.0
        %709 = vmatpush1.msra.mxu0 0.0
        %710 = vmatprep.subr.mxu0 0.0
        %711 = vmatpush1.msra.mxu0 0.0
        %712 = vmatprep.subr.mxu0 0.0
        %713 = vmatpush1.msra.mxu0 0.0
        %714 = vmatprep.subr.mxu0 0.0
        %715 = vmatpush1.msra.mxu0 0.0
        %716 = vmatprep.subr.mxu0 0.0
        %717 = vmatpush1.msra.mxu0 0.0
        %718 = vmatprep.subr.mxu0 0.0
        %719 = vmatpush1.msra.mxu0 0.0
        %720 = vmatprep.subr.mxu0 0.0
        %721 = vmatpush1.msra.mxu0 0.0
        %722 = vmatprep.subr.mxu0 0.0
        %723 = vmatpush1.msra.mxu0 0.0
        %724 = vmatprep.subr.mxu0 0.0
        %725 = vmatpush1.msra.mxu0 0.0
        %726 = vmatprep.subr.mxu0 0.0
        %727 = vmatpush1.msra.mxu0 0.0
        %728 = vmatprep.subr.mxu0 0.0
        %729 = vmatpush1.msra.mxu0 0.0
        %730 = vmatprep.subr.mxu0 0.0
        %731 = vmatpush1.msra.mxu0 0.0
        %732 = vmatprep.subr.mxu0 0.0
        %733 = vmatpush1.msra.mxu0 0.0
        %734 = vmatprep.subr.mxu0 0.0
        %735 = vmatpush1.msra.mxu0 0.0
        %736 = vmatprep.subr.mxu0 0.0
        %737 = vmatpush1.msra.mxu0 0.0
        %738 = vmatprep.subr.mxu0 0.0
        %739 = vmatpush1.msra.mxu0 0.0
        %740 = vmatprep.subr.mxu0 0.0
        %741 = vmatpush1.msra.mxu0 0.0
        %742 = vmatprep.subr.mxu0 0.0
        %743 = vmatpush1.msra.mxu0 0.0
        %744 = vmatprep.subr.mxu0 0.0
        %745 = vmatpush1.msra.mxu0 0.0
        %746 = vmatprep.subr.mxu0 0.0
        %747 = vmatpush1.msra.mxu0 0.0
        %748 = vmatprep.subr.mxu0 0.0
        %749 = vmatpush1.msra.mxu0 0.0
        %750 = vmatprep.subr.mxu0 0.0
        %751 = vmatpush1.msra.mxu0 0.0
        %752 = vmatprep.subr.mxu0 0.0
        %753 = vmatpush1.msra.mxu0 0.0
        %754 = vmatprep.subr.mxu0 0.0
        %755 = vmatpush1.msra.mxu0 0.0
        %756 = vmatprep.subr.mxu0 0.0
        %757 = vmatpush1.msra.mxu0 0.0
        %758 = vmatprep.mubr.f32.mxu0 0.0
        %759 = vmatmul.mubr.f32.gmra.mrb[0].mxu0 %v595
        %v760 = vpop.f32.mrb[0].mxu0
        %v761 = vadd.f32 %v591, %v760
        %v762 = vpop.f32.mrb[0].mxu0
        %763 = vmatprep.mubr.f32.mxu0 0.0
        %764 = vmatmul.mubr.f32.gmra.mrb[0].mxu0 %v598
        %v765 = vpop.f32.mrb[0].mxu0
        %v766 = vadd.f32 %v591, %v765
        %v767 = vpop.f32.mrb[0].mxu0
        %768 = vmatprep.mubr.f32.mxu0 0.0
        %769 = vmatmul.mubr.f32.gmra.mrb[0].mxu0 %v601
        %v770 = vpop.f32.mrb[0].mxu0
        %v771 = vadd.f32 %v591, %v770
        %v772 = vpop.f32.mrb[0].mxu0
        %773 = vmatprep.mubr.f32.mxu0 0.0
        %774 = vmatmul.mubr.f32.gmra.mrb[0].mxu0 %v604
        %v775 = vpop.f32.mrb[0].mxu0
        %v776 = vadd.f32 %v591, %v775
        %v777 = vpop.f32.mrb[0].mxu0
        %778 = vmatprep.mubr.f32.mxu0 0.0
        %779 = vmatmul.mubr.f32.gmra.mrb[0].mxu0 %v607
        %v780 = vpop.f32.mrb[0].mxu0
        %v781 = vadd.f32 %v591, %v780
        %v782 = vpop.f32.mrb[0].mxu0
        %783 = vmatprep.mubr.f32.mxu0 0.0
        %784 = vmatmul.mubr.f32.gmra.mrb[0].mxu0 %v610
        %v785 = vpop.f32.mrb[0].mxu0
        %v786 = vadd.f32 %v591, %v785
        %v787 = vpop.f32.mrb[0].mxu0
        %788 = vmatprep.mubr.f32.mxu0 0.0
        %789 = vmatmul.mubr.f32.gmra.mrb[0].mxu0 %v613
        %v790 = vpop.f32.mrb[0].mxu0
        %v791 = vadd.f32 %v591, %v790
        %v792 = vpop.f32.mrb[0].mxu0
        %793 = vmatprep.mubr.f32.mxu0 0.0
        %794 = vmatmul.mubr.f32.gmra.mrb[0].mxu0 %v616
        %v795 = vpop.f32.mrb[0].mxu0
        %v796 = vadd.f32 %v591, %v795
        %v797 = vpop.f32.mrb[0].mxu0
        %798 = vmatprep.mubr.f32.mxu0 0.0
        %799 = vmatmul.mubr.f32.gmra.mrb[0].mxu0 %v619
        %v800 = vpop.f32.mrb[0].mxu0
        %v801 = vadd.f32 %v591, %v800
        %v802 = vpop.f32.mrb[0].mxu0
        %803 = vmatprep.mubr.f32.mxu0 0.0
        %804 = vmatmul.mubr.f32.gmra.mrb[0].mxu0 %v622
        %v805 = vpop.f32.mrb[0].mxu0
        %v806 = vadd.f32 %v591, %v805
        %v807 = vpop.f32.mrb[0].mxu0
        %808 = vmatprep.mubr.f32.mxu0 0.0
        %809 = vmatmul.mubr.f32.gmra.mrb[0].mxu0 %v625
        %v810 = vpop.f32.mrb[0].mxu0
        %v811 = vadd.f32 %v591, %v810
        %v812 = vpop.f32.mrb[0].mxu0
        %813 = vmatprep.mubr.f32.mxu0 0.0
        %814 = vmatmul.mubr.f32.gmra.mrb[0].mxu0 %v628
        %v815 = vpop.f32.mrb[0].mxu0
        %v816 = vadd.f32 %v591, %v815
        %v817 = vpop.f32.mrb[0].mxu0
        %818 = vmatprep.mubr.f32.mxu0 0.0
        %819 = vmatmul.mubr.f32.gmra.mrb[0].mxu0 %v631
        %v820 = vpop.f32.mrb[0].mxu0
        %v821 = vadd.f32 %v591, %v820
        %v822 = vpop.f32.mrb[0].mxu0
        %823 = vmatprep.mubr.f32.mxu0 0.0
        %824 = vmatmul.mubr.f32.gmra.mrb[0].mxu0 %v634
        %v825 = vpop.f32.mrb[0].mxu0
        %v826 = vadd.f32 %v591, %v825
        %v827 = vpop.f32.mrb[0].mxu0
        %828 = vmatprep.mubr.f32.mxu0 0.0
        %829 = vmatmul.mubr.f32.gmra.mrb[0].mxu0 %v637
        %v830 = vpop.f32.mrb[0].mxu0
        %v831 = vadd.f32 %v591, %v830
        %v832 = vpop.f32.mrb[0].mxu0
        %833 = vmatprep.mubr.f32.mxu0 0.0
        %834 = vmatmul.mubr.f32.gmra.mrb[0].mxu0 %v640
        %v835 = vpop.f32.mrb[0].mxu0
        %v836 = vadd.f32 %v591, %v835
        %v837 = vpop.f32.mrb[0].mxu0
        %838 = vmatprep.mubr.f32.mxu0 0.0
        %839 = vmatmul.mubr.f32.gmra.mrb[0].mxu0 %v643
        %v840 = vpop.f32.mrb[0].mxu0
        %v841 = vadd.f32 %v591, %v840
        %v842 = vpop.f32.mrb[0].mxu0
        %843 = vmatprep.mubr.f32.mxu0 0.0
        %844 = vmatmul.mubr.f32.gmra.mrb[0].mxu0 %v646
        %v845 = vpop.f32.mrb[0].mxu0
        %v846 = vadd.f32 %v591, %v845
        %v847 = vpop.f32.mrb[0].mxu0
        %848 = vmatprep.mubr.f32.mxu0 0.0
        %849 = vmatmul.mubr.f32.gmra.mrb[0].mxu0 %v649
        %v850 = vpop.f32.mrb[0].mxu0
        %v851 = vadd.f32 %v591, %v850
        %v852 = vpop.f32.mrb[0].mxu0
        %853 = vmatprep.mubr.f32.mxu0 0.0
        %854 = vmatmul.mubr.f32.gmra.mrb[0].mxu0 %v652
        %v855 = vpop.f32.mrb[0].mxu0
        %v856 = vadd.f32 %v591, %v855
        %v857 = vpop.f32.mrb[0].mxu0
        %858 = vmatprep.mubr.f32.mxu0 0.0
        %859 = vmatmul.mubr.f32.gmra.mrb[0].mxu0 %v655
        %v860 = vpop.f32.mrb[0].mxu0
        %v861 = vadd.f32 %v591, %v860
        %v862 = vpop.f32.mrb[0].mxu0
        %863 = vmatprep.mubr.f32.mxu0 0.0
        %864 = vmatmul.mubr.f32.gmra.mrb[0].mxu0 %v658
        %v865 = vpop.f32.mrb[0].mxu0
        %v866 = vadd.f32 %v591, %v865
        %v867 = vpop.f32.mrb[0].mxu0
        %868 = vmatprep.mubr.f32.mxu0 0.0
        %869 = vmatmul.mubr.f32.gmra.mrb[0].mxu0 %v661
        %v870 = vpop.f32.mrb[0].mxu0
        %v871 = vadd.f32 %v591, %v870
        %v872 = vpop.f32.mrb[0].mxu0
        %873 = vmatprep.mubr.f32.mxu0 0.0
        %874 = vmatmul.mubr.f32.gmra.mrb[0].mxu0 %v664
        %v875 = vpop.f32.mrb[0].mxu0
        %v876 = vadd.f32 %v591, %v875
        %v877 = vpop.f32.mrb[0].mxu0
        %878 = vmatprep.mubr.f32.mxu0 0.0
        %879 = vmatmul.mubr.f32.gmra.mrb[0].mxu0 %v667
        %v880 = vpop.f32.mrb[0].mxu0
        %v881 = vadd.f32 %v591, %v880
        %v882 = vpop.f32.mrb[0].mxu0
        %883 = vmatprep.mubr.f32.mxu0 0.0
        %884 = vmatmul.mubr.f32.gmra.mrb[0].mxu0 %v670
        %v885 = vpop.f32.mrb[0].mxu0
        %v886 = vadd.f32 %v591, %v885
        %v887 = vpop.f32.mrb[0].mxu0
        %888 = vmatprep.mubr.f32.mxu0 0.0
        %889 = vmatmul.mubr.f32.gmra.mrb[0].mxu0 %v673
        %v890 = vpop.f32.mrb[0].mxu0
        %v891 = vadd.f32 %v591, %v890
        %v892 = vpop.f32.mrb[0].mxu0
        %893 = vmatprep.mubr.f32.mxu0 0.0
        %894 = vmatmul.mubr.f32.gmra.mrb[0].mxu0 %v676
        %v895 = vpop.f32.mrb[0].mxu0
        %v896 = vadd.f32 %v591, %v895
        %v897 = vpop.f32.mrb[0].mxu0
        %898 = vmatprep.mubr.f32.mxu0 0.0
        %899 = vmatmul.mubr.f32.gmra.mrb[0].mxu0 %v679
        %v900 = vpop.f32.mrb[0].mxu0
        %v901 = vadd.f32 %v591, %v900
        %v902 = vpop.f32.mrb[0].mxu0
        %903 = vmatprep.mubr.f32.mxu0 0.0
        %904 = vmatmul.mubr.f32.gmra.mrb[0].mxu0 %v682
        %v905 = vpop.f32.mrb[0].mxu0
        %v906 = vadd.f32 %v591, %v905
        %v907 = vpop.f32.mrb[0].mxu0
        %908 = vmatprep.mubr.f32.mxu0 0.0
        %909 = vmatmul.mubr.f32.gmra.mrb[0].mxu0 %v685
        %v910 = vpop.f32.mrb[0].mxu0
        %v911 = vadd.f32 %v591, %v910
        %v912 = vpop.f32.mrb[0].mxu0
        %913 = vmatprep.mubr.f32.mxu0 0.0
        %914 = vmatmul.mubr.f32.gmra.mrb[0].mxu0 %v688
        %v915 = vpop.f32.mrb[0].mxu0
        %v916 = vadd.f32 %v591, %v915
        %v917 = vpop.f32.mrb[0].mxu0
        %918 = vdwg.mxu0
        %v919 = vpack.c.bf16 %v766, %v761
        %v920 = vpack.c.bf16 %v776, %v771
        %v921 = vpack.c.bf16 %v786, %v781
        %v922 = vpack.c.bf16 %v796, %v791
        %v923 = vpack.c.bf16 %v806, %v801
        %v924 = vpack.c.bf16 %v816, %v811
        %v925 = vpack.c.bf16 %v826, %v821
        %v926 = vpack.c.bf16 %v836, %v831
        %v927 = vpack.c.bf16 %v846, %v841
        %v928 = vpack.c.bf16 %v856, %v851
        %v929 = vpack.c.bf16 %v866, %v861
        %v930 = vpack.c.bf16 %v876, %v871
        %v931 = vpack.c.bf16 %v886, %v881
        %v932 = vpack.c.bf16 %v896, %v891
        %v933 = vpack.c.bf16 %v906, %v901
        %v934 = vpack.c.bf16 %v916, %v911
        %v935 = vld [vmem:[#allocation6] sm:$0xf]
        %v936 = vld [vmem:[#allocation6 + $0x4] sm:$0xf]
        %v937 = vld [vmem:[#allocation6 + $0x8] sm:$0xf]
        %v938 = vld [vmem:[#allocation6 + $0xc] sm:$0xf]
        %v939 = vld [vmem:[#allocation6 + $0x10] sm:$0xf]
        %v940 = vld [vmem:[#allocation6 + $0x14] sm:$0xf]
        %v941 = vld [vmem:[#allocation6 + $0x18] sm:$0xf]
        %v942 = vld [vmem:[#allocation6 + $0x1c] sm:$0xf]
        %v943 = vld [vmem:[#allocation7] sm:$0x1]
        %v945 = vlaneseq
        %v946 = vshrl.u32 %v945, 7
        %v947 = vsub.s32 0, %v946
        %v948 = vrot.slane %v943, %v947
        %v958 = vunpack.c.l.b16 %v935
        %v959 = vunpack.c.l.b16 %v936
        %v960 = vunpack.c.l.b16 %v937
        %v961 = vunpack.c.l.b16 %v938
        %v962 = vunpack.c.l.b16 %v939
        %v963 = vunpack.c.l.b16 %v940
        %v964 = vunpack.c.l.b16 %v941
        %v965 = vunpack.c.l.b16 %v942
        %v966 = vpack.c.b16 %v959, %v958
        %v967 = vpack.c.b16 %v961, %v960
        %v968 = vpack.c.b16 %v963, %v962
        %v969 = vpack.c.b16 %v965, %v964
        %vm974 = vcmask 523264
        %v976 = vsel %vm974, %v919, 0
        %v979 = vsel %vm974, %v920, 0
        %v982 = vsel %vm974, %v921, 0
        %v985 = vsel %vm974, %v922, 0
        %v988 = vsel %vm974, %v923, 0
        %v991 = vsel %vm974, %v924, 0
        %v994 = vsel %vm974, %v925, 0
        %v997 = vsel %vm974, %v926, 0
        %v1000 = vsel %vm974, %v927, 0
        %v1003 = vsel %vm974, %v928, 0
        %v1006 = vsel %vm974, %v929, 0
        %v1009 = vsel %vm974, %v930, 0
        %v1012 = vsel %vm974, %v931, 0
        %v1015 = vsel %vm974, %v932, 0
        %v1018 = vsel %vm974, %v933, 0
        %v1021 = vsel %vm974, %v934, 0
        %1023 = vmatprep.subr.bf16.mxu0 0
        %1024 = vmatpush1.bf16.msra.mxu0 %v966
        %1025 = vmatprep.subr.bf16.mxu0 0
        %1026 = vmatpush1.bf16.msra.mxu0 %v967
        %1027 = vmatprep.subr.bf16.mxu0 0
        %1028 = vmatpush1.bf16.msra.mxu0 %v968
        %1029 = vmatprep.subr.bf16.mxu0 0
        %1030 = vmatpush1.bf16.msra.mxu0 %v969
        %1031 = vmatprep.subr.bf16.mxu0 0
        %1032 = vmatpush1.bf16.msra.mxu0 0
        %1033 = vmatprep.subr.bf16.mxu0 0
        %1034 = vmatpush1.bf16.msra.mxu0 0
        %1035 = vmatprep.subr.bf16.mxu0 0
        %1036 = vmatpush1.bf16.msra.mxu0 0
        %1037 = vmatprep.subr.bf16.mxu0 0
        %1038 = vmatpush1.bf16.msra.mxu0 0
        %1039 = vmatprep.subr.bf16.mxu0 0
        %1040 = vmatpush1.bf16.msra.mxu0 0
        %1041 = vmatprep.subr.bf16.mxu0 0
        %1042 = vmatpush1.bf16.msra.mxu0 0
        %1043 = vmatprep.subr.bf16.mxu0 0
        %1044 = vmatpush1.bf16.msra.mxu0 0
        %1045 = vmatprep.subr.bf16.mxu0 0
        %1046 = vmatpush1.bf16.msra.mxu0 0
        %1047 = vmatprep.subr.bf16.mxu0 0
        %1048 = vmatpush1.bf16.msra.mxu0 0
        %1049 = vmatprep.subr.bf16.mxu0 0
        %1050 = vmatpush1.bf16.msra.mxu0 0
        %1051 = vmatprep.subr.bf16.mxu0 0
        %1052 = vmatpush1.bf16.msra.mxu0 0
        %1053 = vmatprep.subr.bf16.mxu0 0
        %1054 = vmatpush1.bf16.msra.mxu0 0
        %1055 = vmatprep.mubr.bf16.mxu0 0
        %1056 = vmatmul.mubr.bf16.gmra.mrb[0].mxu0 %v976
        %v1057 = vpop.f32.mrb[0].mxu0
        %v1058 = vadd.f32 %v948, %v1057
        %v1059 = vpop.f32.mrb[0].mxu0
        %v1060 = vpop.f32.mrb[0].mxu0
        %v1061 = vadd.f32 %v948, %v1060
        %v1062 = vpop.f32.mrb[0].mxu0
        %1063 = vmatprep.mubr.bf16.mxu0 0
        %1064 = vmatmul.mubr.bf16.gmra.mrb[0].mxu0 %v979
        %v1065 = vpop.f32.mrb[0].mxu0
        %v1066 = vadd.f32 %v948, %v1065
        %v1067 = vpop.f32.mrb[0].mxu0
        %v1068 = vpop.f32.mrb[0].mxu0
        %v1069 = vadd.f32 %v948, %v1068
        %v1070 = vpop.f32.mrb[0].mxu0
        %1071 = vmatprep.mubr.bf16.mxu0 0
        %1072 = vmatmul.mubr.bf16.gmra.mrb[0].mxu0 %v982
        %v1073 = vpop.f32.mrb[0].mxu0
        %v1074 = vadd.f32 %v948, %v1073
        %v1075 = vpop.f32.mrb[0].mxu0
        %v1076 = vpop.f32.mrb[0].mxu0
        %v1077 = vadd.f32 %v948, %v1076
        %v1078 = vpop.f32.mrb[0].mxu0
        %1079 = vmatprep.mubr.bf16.mxu0 0
        %1080 = vmatmul.mubr.bf16.gmra.mrb[0].mxu0 %v985
        %v1081 = vpop.f32.mrb[0].mxu0
        %v1082 = vadd.f32 %v948, %v1081
        %v1083 = vpop.f32.mrb[0].mxu0
        %v1084 = vpop.f32.mrb[0].mxu0
        %v1085 = vadd.f32 %v948, %v1084
        %v1086 = vpop.f32.mrb[0].mxu0
        %1087 = vmatprep.mubr.bf16.mxu0 0
        %1088 = vmatmul.mubr.bf16.gmra.mrb[0].mxu0 %v988
        %v1089 = vpop.f32.mrb[0].mxu0
        %v1090 = vadd.f32 %v948, %v1089
        %v1091 = vpop.f32.mrb[0].mxu0
        %v1092 = vpop.f32.mrb[0].mxu0
        %v1093 = vadd.f32 %v948, %v1092
        %v1094 = vpop.f32.mrb[0].mxu0
        %1095 = vmatprep.mubr.bf16.mxu0 0
        %1096 = vmatmul.mubr.bf16.gmra.mrb[0].mxu0 %v991
        %v1097 = vpop.f32.mrb[0].mxu0
        %v1098 = vadd.f32 %v948, %v1097
        %v1099 = vpop.f32.mrb[0].mxu0
        %v1100 = vpop.f32.mrb[0].mxu0
        %v1101 = vadd.f32 %v948, %v1100
        %v1102 = vpop.f32.mrb[0].mxu0
        %1103 = vmatprep.mubr.bf16.mxu0 0
        %1104 = vmatmul.mubr.bf16.gmra.mrb[0].mxu0 %v994
        %v1105 = vpop.f32.mrb[0].mxu0
        %v1106 = vadd.f32 %v948, %v1105
        %v1107 = vpop.f32.mrb[0].mxu0
        %v1108 = vpop.f32.mrb[0].mxu0
        %v1109 = vadd.f32 %v948, %v1108
        %v1110 = vpop.f32.mrb[0].mxu0
        %1111 = vmatprep.mubr.bf16.mxu0 0
        %1112 = vmatmul.mubr.bf16.gmra.mrb[0].mxu0 %v997
        %v1113 = vpop.f32.mrb[0].mxu0
        %v1114 = vadd.f32 %v948, %v1113
        %v1115 = vpop.f32.mrb[0].mxu0
        %v1116 = vpop.f32.mrb[0].mxu0
        %v1117 = vadd.f32 %v948, %v1116
        %v1118 = vpop.f32.mrb[0].mxu0
        %1119 = vmatprep.mubr.bf16.mxu0 0
        %1120 = vmatmul.mubr.bf16.gmra.mrb[0].mxu0 %v1000
        %v1121 = vpop.f32.mrb[0].mxu0
        %v1122 = vadd.f32 %v948, %v1121
        %v1123 = vpop.f32.mrb[0].mxu0
        %v1124 = vpop.f32.mrb[0].mxu0
        %v1125 = vadd.f32 %v948, %v1124
        %v1126 = vpop.f32.mrb[0].mxu0
        %1127 = vmatprep.mubr.bf16.mxu0 0
        %1128 = vmatmul.mubr.bf16.gmra.mrb[0].mxu0 %v1003
        %v1129 = vpop.f32.mrb[0].mxu0
        %v1130 = vadd.f32 %v948, %v1129
        %v1131 = vpop.f32.mrb[0].mxu0
        %v1132 = vpop.f32.mrb[0].mxu0
        %v1133 = vadd.f32 %v948, %v1132
        %v1134 = vpop.f32.mrb[0].mxu0
        %1135 = vmatprep.mubr.bf16.mxu0 0
        %1136 = vmatmul.mubr.bf16.gmra.mrb[0].mxu0 %v1006
        %v1137 = vpop.f32.mrb[0].mxu0
        %v1138 = vadd.f32 %v948, %v1137
        %v1139 = vpop.f32.mrb[0].mxu0
        %v1140 = vpop.f32.mrb[0].mxu0
        %v1141 = vadd.f32 %v948, %v1140
        %v1142 = vpop.f32.mrb[0].mxu0
        %1143 = vmatprep.mubr.bf16.mxu0 0
        %1144 = vmatmul.mubr.bf16.gmra.mrb[0].mxu0 %v1009
        %v1145 = vpop.f32.mrb[0].mxu0
        %v1146 = vadd.f32 %v948, %v1145
        %v1147 = vpop.f32.mrb[0].mxu0
        %v1148 = vpop.f32.mrb[0].mxu0
        %v1149 = vadd.f32 %v948, %v1148
        %v1150 = vpop.f32.mrb[0].mxu0
        %1151 = vmatprep.mubr.bf16.mxu0 0
        %1152 = vmatmul.mubr.bf16.gmra.mrb[0].mxu0 %v1012
        %v1153 = vpop.f32.mrb[0].mxu0
        %v1154 = vadd.f32 %v948, %v1153
        %v1155 = vpop.f32.mrb[0].mxu0
        %v1156 = vpop.f32.mrb[0].mxu0
        %v1157 = vadd.f32 %v948, %v1156
        %v1158 = vpop.f32.mrb[0].mxu0
        %1159 = vmatprep.mubr.bf16.mxu0 0
        %1160 = vmatmul.mubr.bf16.gmra.mrb[0].mxu0 %v1015
        %v1161 = vpop.f32.mrb[0].mxu0
        %v1162 = vadd.f32 %v948, %v1161
        %v1163 = vpop.f32.mrb[0].mxu0
        %v1164 = vpop.f32.mrb[0].mxu0
        %v1165 = vadd.f32 %v948, %v1164
        %v1166 = vpop.f32.mrb[0].mxu0
        %1167 = vmatprep.mubr.bf16.mxu0 0
        %1168 = vmatmul.mubr.bf16.gmra.mrb[0].mxu0 %v1018
        %v1169 = vpop.f32.mrb[0].mxu0
        %v1170 = vadd.f32 %v948, %v1169
        %v1171 = vpop.f32.mrb[0].mxu0
        %v1172 = vpop.f32.mrb[0].mxu0
        %v1173 = vadd.f32 %v948, %v1172
        %v1174 = vpop.f32.mrb[0].mxu0
        %1175 = vmatprep.mubr.bf16.mxu0 0
        %1176 = vmatmul.mubr.bf16.gmra.mrb[0].mxu0 %v1021
        %v1177 = vpop.f32.mrb[0].mxu0
        %v1178 = vadd.f32 %v948, %v1177
        %v1179 = vpop.f32.mrb[0].mxu0
        %v1180 = vpop.f32.mrb[0].mxu0
        %v1181 = vadd.f32 %v948, %v1180
        %v1182 = vpop.f32.mrb[0].mxu0
        %1183 = vdwg.mxu0
        %v1184 = vmax.f32 %v1058, 0.0
        %v1185 = vmax.f32 %v1061, 0.0
        %v1186 = vmax.f32 %v1066, 0.0
        %v1187 = vmax.f32 %v1069, 0.0
        %v1188 = vmax.f32 %v1074, 0.0
        %v1189 = vmax.f32 %v1077, 0.0
        %v1190 = vmax.f32 %v1082, 0.0
        %v1191 = vmax.f32 %v1085, 0.0
        %v1192 = vmax.f32 %v1090, 0.0
        %v1193 = vmax.f32 %v1093, 0.0
        %v1194 = vmax.f32 %v1098, 0.0
        %v1195 = vmax.f32 %v1101, 0.0
        %v1196 = vmax.f32 %v1106, 0.0
        %v1197 = vmax.f32 %v1109, 0.0
        %v1198 = vmax.f32 %v1114, 0.0
        %v1199 = vmax.f32 %v1117, 0.0
        %v1200 = vmax.f32 %v1122, 0.0
        %v1201 = vmax.f32 %v1125, 0.0
        %v1202 = vmax.f32 %v1130, 0.0
        %v1203 = vmax.f32 %v1133, 0.0
        %v1204 = vmax.f32 %v1138, 0.0
        %v1205 = vmax.f32 %v1141, 0.0
        %v1206 = vmax.f32 %v1146, 0.0
        %v1207 = vmax.f32 %v1149, 0.0
        %v1208 = vmax.f32 %v1154, 0.0
        %v1209 = vmax.f32 %v1157, 0.0
        %v1210 = vmax.f32 %v1162, 0.0
        %v1211 = vmax.f32 %v1165, 0.0
        %v1212 = vmax.f32 %v1170, 0.0
        %v1213 = vmax.f32 %v1173, 0.0
        %v1214 = vmax.f32 %v1178, 0.0
        %v1215 = vmax.f32 %v1181, 0.0
        %v1216 = vpack.c.bf16 %v1185, %v1184
        %v1217 = vpack.c.bf16 %v1187, %v1186
        %v1218 = vpack.c.bf16 %v1189, %v1188
        %v1219 = vpack.c.bf16 %v1191, %v1190
        %v1220 = vpack.c.bf16 %v1193, %v1192
        %v1221 = vpack.c.bf16 %v1195, %v1194
        %v1222 = vpack.c.bf16 %v1197, %v1196
        %v1223 = vpack.c.bf16 %v1199, %v1198
        %v1224 = vpack.c.bf16 %v1201, %v1200
        %v1225 = vpack.c.bf16 %v1203, %v1202
        %v1226 = vpack.c.bf16 %v1205, %v1204
        %v1227 = vpack.c.bf16 %v1207, %v1206
        %v1228 = vpack.c.bf16 %v1209, %v1208
        %v1229 = vpack.c.bf16 %v1211, %v1210
        %v1230 = vpack.c.bf16 %v1213, %v1212
        %v1231 = vpack.c.bf16 %v1215, %v1214
        %v1232 = vld [vmem:[#allocation9] sm:$0xf]
        %v1233 = vld [vmem:[#allocation9 + $0x4] sm:$0xf]
        %v1234 = vld [vmem:[#allocation9 + $0x8] sm:$0xf]
        %v1235 = vld [vmem:[#allocation9 + $0xc] sm:$0xf]
        %v1236 = vld [vmem:[#allocation9 + $0x10] sm:$0xf]
        %v1237 = vld [vmem:[#allocation9 + $0x14] sm:$0xf]
        %v1238 = vld [vmem:[#allocation9 + $0x18] sm:$0xf]
        %v1239 = vld [vmem:[#allocation9 + $0x1c] sm:$0xf]
        %v1240 = vld [vmem:[#allocation10] sm:$0x1]
        %v1242 = vlaneseq
        %v1243 = vshrl.u32 %v1242, 7
        %v1244 = vsub.s32 0, %v1243
        %v1245 = vrot.slane %v1240, %v1244
        %v1255 = vunpack.c.l.b16 %v1232
        %v1256 = vunpack.c.l.b16 %v1233
        %v1257 = vunpack.c.l.b16 %v1234
        %v1258 = vunpack.c.l.b16 %v1235
        %v1259 = vunpack.c.l.b16 %v1236
        %v1260 = vunpack.c.l.b16 %v1237
        %v1261 = vunpack.c.l.b16 %v1238
        %v1262 = vunpack.c.l.b16 %v1239
        %v1263 = vpack.c.b16 %v1256, %v1255
        %v1264 = vpack.c.b16 %v1258, %v1257
        %v1265 = vpack.c.b16 %v1260, %v1259
        %v1266 = vpack.c.b16 %v1262, %v1261
        %v1272 = vsel %vm974, %v1216, 0
        %v1275 = vsel %vm974, %v1217, 0
        %v1278 = vsel %vm974, %v1218, 0
        %v1281 = vsel %vm974, %v1219, 0
        %v1284 = vsel %vm974, %v1220, 0
        %v1287 = vsel %vm974, %v1221, 0
        %v1290 = vsel %vm974, %v1222, 0
        %v1293 = vsel %vm974, %v1223, 0
        %v1296 = vsel %vm974, %v1224, 0
        %v1299 = vsel %vm974, %v1225, 0
        %v1302 = vsel %vm974, %v1226, 0
        %v1305 = vsel %vm974, %v1227, 0
        %v1308 = vsel %vm974, %v1228, 0
        %v1311 = vsel %vm974, %v1229, 0
        %v1314 = vsel %vm974, %v1230, 0
        %v1317 = vsel %vm974, %v1231, 0
        %1319 = vmatprep.subr.bf16.mxu0 0
        %1320 = vmatpush1.bf16.msra.mxu0 %v1263
        %1321 = vmatprep.subr.bf16.mxu0 0
        %1322 = vmatpush1.bf16.msra.mxu0 %v1264
        %1323 = vmatprep.subr.bf16.mxu0 0
        %1324 = vmatpush1.bf16.msra.mxu0 %v1265
        %1325 = vmatprep.subr.bf16.mxu0 0
        %1326 = vmatpush1.bf16.msra.mxu0 %v1266
        %1327 = vmatprep.subr.bf16.mxu0 0
        %1328 = vmatpush1.bf16.msra.mxu0 0
        %1329 = vmatprep.subr.bf16.mxu0 0
        %1330 = vmatpush1.bf16.msra.mxu0 0
        %1331 = vmatprep.subr.bf16.mxu0 0
        %1332 = vmatpush1.bf16.msra.mxu0 0
        %1333 = vmatprep.subr.bf16.mxu0 0
        %1334 = vmatpush1.bf16.msra.mxu0 0
        %1335 = vmatprep.subr.bf16.mxu0 0
        %1336 = vmatpush1.bf16.msra.mxu0 0
        %1337 = vmatprep.subr.bf16.mxu0 0
        %1338 = vmatpush1.bf16.msra.mxu0 0
        %1339 = vmatprep.subr.bf16.mxu0 0
        %1340 = vmatpush1.bf16.msra.mxu0 0
        %1341 = vmatprep.subr.bf16.mxu0 0
        %1342 = vmatpush1.bf16.msra.mxu0 0
        %1343 = vmatprep.subr.bf16.mxu0 0
        %1344 = vmatpush1.bf16.msra.mxu0 0
        %1345 = vmatprep.subr.bf16.mxu0 0
        %1346 = vmatpush1.bf16.msra.mxu0 0
        %1347 = vmatprep.subr.bf16.mxu0 0
        %1348 = vmatpush1.bf16.msra.mxu0 0
        %1349 = vmatprep.subr.bf16.mxu0 0
        %1350 = vmatpush1.bf16.msra.mxu0 0
        %1351 = vmatprep.mubr.bf16.mxu0 0
        %1352 = vmatmul.mubr.bf16.gmra.mrb[0].mxu0 %v1272
        %v1353 = vpop.f32.mrb[0].mxu0
        %v1354 = vadd.f32 %v1245, %v1353
        %v1355 = vpop.f32.mrb[0].mxu0
        %v1356 = vpop.f32.mrb[0].mxu0
        %v1357 = vadd.f32 %v1245, %v1356
        %v1358 = vpop.f32.mrb[0].mxu0
        %1359 = vmatprep.mubr.bf16.mxu0 0
        %1360 = vmatmul.mubr.bf16.gmra.mrb[0].mxu0 %v1275
        %v1361 = vpop.f32.mrb[0].mxu0
        %v1362 = vadd.f32 %v1245, %v1361
        %v1363 = vpop.f32.mrb[0].mxu0
        %v1364 = vpop.f32.mrb[0].mxu0
        %v1365 = vadd.f32 %v1245, %v1364
        %v1366 = vpop.f32.mrb[0].mxu0
        %1367 = vmatprep.mubr.bf16.mxu0 0
        %1368 = vmatmul.mubr.bf16.gmra.mrb[0].mxu0 %v1278
        %v1369 = vpop.f32.mrb[0].mxu0
        %v1370 = vadd.f32 %v1245, %v1369
        %v1371 = vpop.f32.mrb[0].mxu0
        %v1372 = vpop.f32.mrb[0].mxu0
        %v1373 = vadd.f32 %v1245, %v1372
        %v1374 = vpop.f32.mrb[0].mxu0
        %1375 = vmatprep.mubr.bf16.mxu0 0
        %1376 = vmatmul.mubr.bf16.gmra.mrb[0].mxu0 %v1281
        %v1377 = vpop.f32.mrb[0].mxu0
        %v1378 = vadd.f32 %v1245, %v1377
        %v1379 = vpop.f32.mrb[0].mxu0
        %v1380 = vpop.f32.mrb[0].mxu0
        %v1381 = vadd.f32 %v1245, %v1380
        %v1382 = vpop.f32.mrb[0].mxu0
        %1383 = vmatprep.mubr.bf16.mxu0 0
        %1384 = vmatmul.mubr.bf16.gmra.mrb[0].mxu0 %v1284
        %v1385 = vpop.f32.mrb[0].mxu0
        %v1386 = vadd.f32 %v1245, %v1385
        %v1387 = vpop.f32.mrb[0].mxu0
        %v1388 = vpop.f32.mrb[0].mxu0
        %v1389 = vadd.f32 %v1245, %v1388
        %v1390 = vpop.f32.mrb[0].mxu0
        %1391 = vmatprep.mubr.bf16.mxu0 0
        %1392 = vmatmul.mubr.bf16.gmra.mrb[0].mxu0 %v1287
        %v1393 = vpop.f32.mrb[0].mxu0
        %v1394 = vadd.f32 %v1245, %v1393
        %v1395 = vpop.f32.mrb[0].mxu0
        %v1396 = vpop.f32.mrb[0].mxu0
        %v1397 = vadd.f32 %v1245, %v1396
        %v1398 = vpop.f32.mrb[0].mxu0
        %1399 = vmatprep.mubr.bf16.mxu0 0
        %1400 = vmatmul.mubr.bf16.gmra.mrb[0].mxu0 %v1290
        %v1401 = vpop.f32.mrb[0].mxu0
        %v1402 = vadd.f32 %v1245, %v1401
        %v1403 = vpop.f32.mrb[0].mxu0
        %v1404 = vpop.f32.mrb[0].mxu0
        %v1405 = vadd.f32 %v1245, %v1404
        %v1406 = vpop.f32.mrb[0].mxu0
        %1407 = vmatprep.mubr.bf16.mxu0 0
        %1408 = vmatmul.mubr.bf16.gmra.mrb[0].mxu0 %v1293
        %v1409 = vpop.f32.mrb[0].mxu0
        %v1410 = vadd.f32 %v1245, %v1409
        %v1411 = vpop.f32.mrb[0].mxu0
        %v1412 = vpop.f32.mrb[0].mxu0
        %v1413 = vadd.f32 %v1245, %v1412
        %v1414 = vpop.f32.mrb[0].mxu0
        %1415 = vmatprep.mubr.bf16.mxu0 0
        %1416 = vmatmul.mubr.bf16.gmra.mrb[0].mxu0 %v1296
        %v1417 = vpop.f32.mrb[0].mxu0
        %v1418 = vadd.f32 %v1245, %v1417
        %v1419 = vpop.f32.mrb[0].mxu0
        %v1420 = vpop.f32.mrb[0].mxu0
        %v1421 = vadd.f32 %v1245, %v1420
        %v1422 = vpop.f32.mrb[0].mxu0
        %1423 = vmatprep.mubr.bf16.mxu0 0
        %1424 = vmatmul.mubr.bf16.gmra.mrb[0].mxu0 %v1299
        %v1425 = vpop.f32.mrb[0].mxu0
        %v1426 = vadd.f32 %v1245, %v1425
        %v1427 = vpop.f32.mrb[0].mxu0
        %v1428 = vpop.f32.mrb[0].mxu0
        %v1429 = vadd.f32 %v1245, %v1428
        %v1430 = vpop.f32.mrb[0].mxu0
        %1431 = vmatprep.mubr.bf16.mxu0 0
        %1432 = vmatmul.mubr.bf16.gmra.mrb[0].mxu0 %v1302
        %v1433 = vpop.f32.mrb[0].mxu0
        %v1434 = vadd.f32 %v1245, %v1433
        %v1435 = vpop.f32.mrb[0].mxu0
        %v1436 = vpop.f32.mrb[0].mxu0
        %v1437 = vadd.f32 %v1245, %v1436
        %v1438 = vpop.f32.mrb[0].mxu0
        %1439 = vmatprep.mubr.bf16.mxu0 0
        %1440 = vmatmul.mubr.bf16.gmra.mrb[0].mxu0 %v1305
        %v1441 = vpop.f32.mrb[0].mxu0
        %v1442 = vadd.f32 %v1245, %v1441
        %v1443 = vpop.f32.mrb[0].mxu0
        %v1444 = vpop.f32.mrb[0].mxu0
        %v1445 = vadd.f32 %v1245, %v1444
        %v1446 = vpop.f32.mrb[0].mxu0
        %1447 = vmatprep.mubr.bf16.mxu0 0
        %1448 = vmatmul.mubr.bf16.gmra.mrb[0].mxu0 %v1308
        %v1449 = vpop.f32.mrb[0].mxu0
        %v1450 = vadd.f32 %v1245, %v1449
        %v1451 = vpop.f32.mrb[0].mxu0
        %v1452 = vpop.f32.mrb[0].mxu0
        %v1453 = vadd.f32 %v1245, %v1452
        %v1454 = vpop.f32.mrb[0].mxu0
        %1455 = vmatprep.mubr.bf16.mxu0 0
        %1456 = vmatmul.mubr.bf16.gmra.mrb[0].mxu0 %v1311
        %v1457 = vpop.f32.mrb[0].mxu0
        %v1458 = vadd.f32 %v1245, %v1457
        %v1459 = vpop.f32.mrb[0].mxu0
        %v1460 = vpop.f32.mrb[0].mxu0
        %v1461 = vadd.f32 %v1245, %v1460
        %v1462 = vpop.f32.mrb[0].mxu0
        %1463 = vmatprep.mubr.bf16.mxu0 0
        %1464 = vmatmul.mubr.bf16.gmra.mrb[0].mxu0 %v1314
        %v1465 = vpop.f32.mrb[0].mxu0
        %v1466 = vadd.f32 %v1245, %v1465
        %v1467 = vpop.f32.mrb[0].mxu0
        %v1468 = vpop.f32.mrb[0].mxu0
        %v1469 = vadd.f32 %v1245, %v1468
        %v1470 = vpop.f32.mrb[0].mxu0
        %1471 = vmatprep.mubr.bf16.mxu0 0
        %1472 = vmatmul.mubr.bf16.gmra.mrb[0].mxu0 %v1317
        %v1473 = vpop.f32.mrb[0].mxu0
        %v1474 = vadd.f32 %v1245, %v1473
        %v1475 = vpop.f32.mrb[0].mxu0
        %v1476 = vpop.f32.mrb[0].mxu0
        %v1477 = vadd.f32 %v1245, %v1476
        %v1478 = vpop.f32.mrb[0].mxu0
        %1479 = vdwg.mxu0
        %v1480 = vpack.c.bf16 %v1357, %v1354
        %v1481 = vpack.c.bf16 %v1365, %v1362
        %v1482 = vpack.c.bf16 %v1373, %v1370
        %v1483 = vpack.c.bf16 %v1381, %v1378
        %v1484 = vpack.c.bf16 %v1389, %v1386
        %v1485 = vpack.c.bf16 %v1397, %v1394
        %v1486 = vpack.c.bf16 %v1405, %v1402
        %v1487 = vpack.c.bf16 %v1413, %v1410
        %v1488 = vpack.c.bf16 %v1421, %v1418
        %v1489 = vpack.c.bf16 %v1429, %v1426
        %v1490 = vpack.c.bf16 %v1437, %v1434
        %v1491 = vpack.c.bf16 %v1445, %v1442
        %v1492 = vpack.c.bf16 %v1453, %v1450
        %v1493 = vpack.c.bf16 %v1461, %v1458
        %v1494 = vpack.c.bf16 %v1469, %v1466
        %v1495 = vpack.c.bf16 %v1477, %v1474
        %v1496 = vld [vmem:[#allocation12] sm:$0xf]
        %v1497 = vld [vmem:[#allocation12 + $0x4] sm:$0xf]
        %v1498 = vld [vmem:[#allocation12 + $0x8] sm:$0xf]
        %v1499 = vld [vmem:[#allocation12 + $0xc] sm:$0xf]
        %v1500 = vld [vmem:[#allocation12 + $0x10] sm:$0xf]
        %v1501 = vld [vmem:[#allocation12 + $0x14] sm:$0xf]
        %v1502 = vld [vmem:[#allocation12 + $0x18] sm:$0xf]
        %v1503 = vld [vmem:[#allocation12 + $0x1c] sm:$0xf]
        %v1504 = vld [vmem:[#allocation13] sm:$0x1]
        %v1506 = vlaneseq
        %v1507 = vshrl.u32 %v1506, 7
        %v1508 = vsub.s32 0, %v1507
        %v1509 = vrot.slane %v1504, %v1508
        %v1519 = vunpack.c.l.b16 %v1496
        %v1520 = vunpack.c.l.b16 %v1497
        %v1521 = vunpack.c.l.b16 %v1498
        %v1522 = vunpack.c.l.b16 %v1499
        %v1523 = vunpack.c.l.b16 %v1500
        %v1524 = vunpack.c.l.b16 %v1501
        %v1525 = vunpack.c.l.b16 %v1502
        %v1526 = vunpack.c.l.b16 %v1503
        %v1527 = vpack.c.b16 %v1520, %v1519
        %v1528 = vpack.c.b16 %v1522, %v1521
        %v1529 = vpack.c.b16 %v1524, %v1523
        %v1530 = vpack.c.b16 %v1526, %v1525
        %v1536 = vsel %vm974, %v1480, 0
        %v1539 = vsel %vm974, %v1481, 0
        %v1542 = vsel %vm974, %v1482, 0
        %v1545 = vsel %vm974, %v1483, 0
        %v1548 = vsel %vm974, %v1484, 0
        %v1551 = vsel %vm974, %v1485, 0
        %v1554 = vsel %vm974, %v1486, 0
        %v1557 = vsel %vm974, %v1487, 0
        %v1560 = vsel %vm974, %v1488, 0
        %v1563 = vsel %vm974, %v1489, 0
        %v1566 = vsel %vm974, %v1490, 0
        %v1569 = vsel %vm974, %v1491, 0
        %v1572 = vsel %vm974, %v1492, 0
        %v1575 = vsel %vm974, %v1493, 0
        %v1578 = vsel %vm974, %v1494, 0
        %v1581 = vsel %vm974, %v1495, 0
        %1583 = vmatprep.subr.bf16.mxu0 0
        %1584 = vmatpush1.bf16.msra.mxu0 %v1527
        %1585 = vmatprep.subr.bf16.mxu0 0
        %1586 = vmatpush1.bf16.msra.mxu0 %v1528
        %1587 = vmatprep.subr.bf16.mxu0 0
        %1588 = vmatpush1.bf16.msra.mxu0 %v1529
        %1589 = vmatprep.subr.bf16.mxu0 0
        %1590 = vmatpush1.bf16.msra.mxu0 %v1530
        %1591 = vmatprep.subr.bf16.mxu0 0
        %1592 = vmatpush1.bf16.msra.mxu0 0
        %1593 = vmatprep.subr.bf16.mxu0 0
        %1594 = vmatpush1.bf16.msra.mxu0 0
        %1595 = vmatprep.subr.bf16.mxu0 0
        %1596 = vmatpush1.bf16.msra.mxu0 0
        %1597 = vmatprep.subr.bf16.mxu0 0
        %1598 = vmatpush1.bf16.msra.mxu0 0
        %1599 = vmatprep.subr.bf16.mxu0 0
        %1600 = vmatpush1.bf16.msra.mxu0 0
        %1601 = vmatprep.subr.bf16.mxu0 0
        %1602 = vmatpush1.bf16.msra.mxu0 0
        %1603 = vmatprep.subr.bf16.mxu0 0
        %1604 = vmatpush1.bf16.msra.mxu0 0
        %1605 = vmatprep.subr.bf16.mxu0 0
        %1606 = vmatpush1.bf16.msra.mxu0 0
        %1607 = vmatprep.subr.bf16.mxu0 0
        %1608 = vmatpush1.bf16.msra.mxu0 0
        %1609 = vmatprep.subr.bf16.mxu0 0
        %1610 = vmatpush1.bf16.msra.mxu0 0
        %1611 = vmatprep.subr.bf16.mxu0 0
        %1612 = vmatpush1.bf16.msra.mxu0 0
        %1613 = vmatprep.subr.bf16.mxu0 0
        %1614 = vmatpush1.bf16.msra.mxu0 0
        %1615 = vmatprep.mubr.bf16.mxu0 0
        %1616 = vmatmul.mubr.bf16.gmra.mrb[0].mxu0 %v1536
        %v1617 = vpop.f32.mrb[0].mxu0
        %v1618 = vadd.f32 %v1509, %v1617
        %v1619 = vpop.f32.mrb[0].mxu0
        %v1620 = vpop.f32.mrb[0].mxu0
        %v1621 = vadd.f32 %v1509, %v1620
        %v1622 = vpop.f32.mrb[0].mxu0
        %1623 = vmatprep.mubr.bf16.mxu0 0
        %1624 = vmatmul.mubr.bf16.gmra.mrb[0].mxu0 %v1539
        %v1625 = vpop.f32.mrb[0].mxu0
        %v1626 = vadd.f32 %v1509, %v1625
        %v1627 = vpop.f32.mrb[0].mxu0
        %v1628 = vpop.f32.mrb[0].mxu0
        %v1629 = vadd.f32 %v1509, %v1628
        %v1630 = vpop.f32.mrb[0].mxu0
        %1631 = vmatprep.mubr.bf16.mxu0 0
        %1632 = vmatmul.mubr.bf16.gmra.mrb[0].mxu0 %v1542
        %v1633 = vpop.f32.mrb[0].mxu0
        %v1634 = vadd.f32 %v1509, %v1633
        %v1635 = vpop.f32.mrb[0].mxu0
        %v1636 = vpop.f32.mrb[0].mxu0
        %v1637 = vadd.f32 %v1509, %v1636
        %v1638 = vpop.f32.mrb[0].mxu0
        %1639 = vmatprep.mubr.bf16.mxu0 0
        %1640 = vmatmul.mubr.bf16.gmra.mrb[0].mxu0 %v1545
        %v1641 = vpop.f32.mrb[0].mxu0
        %v1642 = vadd.f32 %v1509, %v1641
        %v1643 = vpop.f32.mrb[0].mxu0
        %v1644 = vpop.f32.mrb[0].mxu0
        %v1645 = vadd.f32 %v1509, %v1644
        %v1646 = vpop.f32.mrb[0].mxu0
        %1647 = vmatprep.mubr.bf16.mxu0 0
        %1648 = vmatmul.mubr.bf16.gmra.mrb[0].mxu0 %v1548
        %v1649 = vpop.f32.mrb[0].mxu0
        %v1650 = vadd.f32 %v1509, %v1649
        %v1651 = vpop.f32.mrb[0].mxu0
        %v1652 = vpop.f32.mrb[0].mxu0
        %v1653 = vadd.f32 %v1509, %v1652
        %v1654 = vpop.f32.mrb[0].mxu0
        %1655 = vmatprep.mubr.bf16.mxu0 0
        %1656 = vmatmul.mubr.bf16.gmra.mrb[0].mxu0 %v1551
        %v1657 = vpop.f32.mrb[0].mxu0
        %v1658 = vadd.f32 %v1509, %v1657
        %v1659 = vpop.f32.mrb[0].mxu0
        %v1660 = vpop.f32.mrb[0].mxu0
        %v1661 = vadd.f32 %v1509, %v1660
        %v1662 = vpop.f32.mrb[0].mxu0
        %1663 = vmatprep.mubr.bf16.mxu0 0
        %1664 = vmatmul.mubr.bf16.gmra.mrb[0].mxu0 %v1554
        %v1665 = vpop.f32.mrb[0].mxu0
        %v1666 = vadd.f32 %v1509, %v1665
        %v1667 = vpop.f32.mrb[0].mxu0
        %v1668 = vpop.f32.mrb[0].mxu0
        %v1669 = vadd.f32 %v1509, %v1668
        %v1670 = vpop.f32.mrb[0].mxu0
        %1671 = vmatprep.mubr.bf16.mxu0 0
        %1672 = vmatmul.mubr.bf16.gmra.mrb[0].mxu0 %v1557
        %v1673 = vpop.f32.mrb[0].mxu0
        %v1674 = vadd.f32 %v1509, %v1673
        %v1675 = vpop.f32.mrb[0].mxu0
        %v1676 = vpop.f32.mrb[0].mxu0
        %v1677 = vadd.f32 %v1509, %v1676
        %v1678 = vpop.f32.mrb[0].mxu0
        %1679 = vmatprep.mubr.bf16.mxu0 0
        %1680 = vmatmul.mubr.bf16.gmra.mrb[0].mxu0 %v1560
        %v1681 = vpop.f32.mrb[0].mxu0
        %v1682 = vadd.f32 %v1509, %v1681
        %v1683 = vpop.f32.mrb[0].mxu0
        %v1684 = vpop.f32.mrb[0].mxu0
        %v1685 = vadd.f32 %v1509, %v1684
        %v1686 = vpop.f32.mrb[0].mxu0
        %1687 = vmatprep.mubr.bf16.mxu0 0
        %1688 = vmatmul.mubr.bf16.gmra.mrb[0].mxu0 %v1563
        %v1689 = vpop.f32.mrb[0].mxu0
        %v1690 = vadd.f32 %v1509, %v1689
        %v1691 = vpop.f32.mrb[0].mxu0
        %v1692 = vpop.f32.mrb[0].mxu0
        %v1693 = vadd.f32 %v1509, %v1692
        %v1694 = vpop.f32.mrb[0].mxu0
        %1695 = vmatprep.mubr.bf16.mxu0 0
        %1696 = vmatmul.mubr.bf16.gmra.mrb[0].mxu0 %v1566
        %v1697 = vpop.f32.mrb[0].mxu0
        %v1698 = vadd.f32 %v1509, %v1697
        %v1699 = vpop.f32.mrb[0].mxu0
        %v1700 = vpop.f32.mrb[0].mxu0
        %v1701 = vadd.f32 %v1509, %v1700
        %v1702 = vpop.f32.mrb[0].mxu0
        %1703 = vmatprep.mubr.bf16.mxu0 0
        %1704 = vmatmul.mubr.bf16.gmra.mrb[0].mxu0 %v1569
        %v1705 = vpop.f32.mrb[0].mxu0
        %v1706 = vadd.f32 %v1509, %v1705
        %v1707 = vpop.f32.mrb[0].mxu0
        %v1708 = vpop.f32.mrb[0].mxu0
        %v1709 = vadd.f32 %v1509, %v1708
        %v1710 = vpop.f32.mrb[0].mxu0
        %1711 = vmatprep.mubr.bf16.mxu0 0
        %1712 = vmatmul.mubr.bf16.gmra.mrb[0].mxu0 %v1572
        %v1713 = vpop.f32.mrb[0].mxu0
        %v1714 = vadd.f32 %v1509, %v1713
        %v1715 = vpop.f32.mrb[0].mxu0
        %v1716 = vpop.f32.mrb[0].mxu0
        %v1717 = vadd.f32 %v1509, %v1716
        %v1718 = vpop.f32.mrb[0].mxu0
        %1719 = vmatprep.mubr.bf16.mxu0 0
        %1720 = vmatmul.mubr.bf16.gmra.mrb[0].mxu0 %v1575
        %v1721 = vpop.f32.mrb[0].mxu0
        %v1722 = vadd.f32 %v1509, %v1721
        %v1723 = vpop.f32.mrb[0].mxu0
        %v1724 = vpop.f32.mrb[0].mxu0
        %v1725 = vadd.f32 %v1509, %v1724
        %v1726 = vpop.f32.mrb[0].mxu0
        %1727 = vmatprep.mubr.bf16.mxu0 0
        %1728 = vmatmul.mubr.bf16.gmra.mrb[0].mxu0 %v1578
        %v1729 = vpop.f32.mrb[0].mxu0
        %v1730 = vadd.f32 %v1509, %v1729
        %v1731 = vpop.f32.mrb[0].mxu0
        %v1732 = vpop.f32.mrb[0].mxu0
        %v1733 = vadd.f32 %v1509, %v1732
        %v1734 = vpop.f32.mrb[0].mxu0
        %1735 = vmatprep.mubr.bf16.mxu0 0
        %1736 = vmatmul.mubr.bf16.gmra.mrb[0].mxu0 %v1581
        %v1737 = vpop.f32.mrb[0].mxu0
        %v1738 = vadd.f32 %v1509, %v1737
        %v1739 = vpop.f32.mrb[0].mxu0
        %v1740 = vpop.f32.mrb[0].mxu0
        %v1741 = vadd.f32 %v1509, %v1740
        %v1742 = vpop.f32.mrb[0].mxu0
        %1743 = vdwg.mxu0
        %v1744 = vpack.c.bf16 %v1621, %v1618
        %v1745 = vpack.c.bf16 %v1629, %v1626
        %v1746 = vpack.c.bf16 %v1637, %v1634
        %v1747 = vpack.c.bf16 %v1645, %v1642
        %v1748 = vpack.c.bf16 %v1653, %v1650
        %v1749 = vpack.c.bf16 %v1661, %v1658
        %v1750 = vpack.c.bf16 %v1669, %v1666
        %v1751 = vpack.c.bf16 %v1677, %v1674
        %v1752 = vpack.c.bf16 %v1685, %v1682
        %v1753 = vpack.c.bf16 %v1693, %v1690
        %v1754 = vpack.c.bf16 %v1701, %v1698
        %v1755 = vpack.c.bf16 %v1709, %v1706
        %v1756 = vpack.c.bf16 %v1717, %v1714
        %v1757 = vpack.c.bf16 %v1725, %v1722
        %v1758 = vpack.c.bf16 %v1733, %v1730
        %v1759 = vpack.c.bf16 %v1741, %v1738
        %v1760 = vld [vmem:[#allocation15] sm:$0xff]
        %v1761 = vld [vmem:[#allocation15 + $0x8] sm:$0xff]
        %v1762 = vld [vmem:[#allocation15 + $0x10] sm:$0xff]
        %v1763 = vld [vmem:[#allocation15 + $0x18] sm:$0xff]
        %v1764 = vld [vmem:[#allocation15 + $0x20] sm:$0xff]
        %v1765 = vld [vmem:[#allocation15 + $0x28] sm:$0xff]
        %v1766 = vld [vmem:[#allocation15 + $0x30] sm:$0xff]
        %v1767 = vld [vmem:[#allocation15 + $0x38] sm:$0xff]
        %v1768 = vld [vmem:[#allocation15 + $0x40] sm:$0xff]
        %v1769 = vld [vmem:[#allocation15 + $0x48] sm:$0xff]
        %v1770 = vld [vmem:[#allocation15 + $0x50] sm:$0xff]
        %v1771 = vld [vmem:[#allocation15 + $0x58] sm:$0xff]
        %v1772 = vld [vmem:[#allocation15 + $0x60] sm:$0xff]
        %v1773 = vld [vmem:[#allocation15 + $0x68] sm:$0xff]
        %v1774 = vld [vmem:[#allocation15 + $0x70] sm:$0xff]
        %v1775 = vld [vmem:[#allocation15 + $0x78] sm:$0xff]
        %v1776 = vld [vmem:[#allocation15 + $0x80] sm:$0xff]
        %v1777 = vld [vmem:[#allocation15 + $0x88] sm:$0xff]
        %v1778 = vld [vmem:[#allocation15 + $0x90] sm:$0xff]
        %v1779 = vld [vmem:[#allocation15 + $0x98] sm:$0xff]
        %v1780 = vld [vmem:[#allocation15 + $0xa0] sm:$0xff]
        %v1781 = vld [vmem:[#allocation15 + $0xa8] sm:$0xff]
        %v1782 = vld [vmem:[#allocation15 + $0xb0] sm:$0xff]
        %v1783 = vld [vmem:[#allocation15 + $0xb8] sm:$0xff]
        %v1784 = vld [vmem:[#allocation15 + $0xc0] sm:$0xff]
        %v1785 = vld [vmem:[#allocation15 + $0xc8] sm:$0xff]
        %v1786 = vld [vmem:[#allocation15 + $0xd0] sm:$0xff]
        %v1787 = vld [vmem:[#allocation15 + $0xd8] sm:$0xff]
        %v1788 = vld [vmem:[#allocation15 + $0xe0] sm:$0xff]
        %v1789 = vld [vmem:[#allocation15 + $0xe8] sm:$0xff]
        %v1790 = vld [vmem:[#allocation15 + $0xf0] sm:$0xff]
        %v1791 = vld [vmem:[#allocation15 + $0xf8] sm:$0xff]
        %v1792 = vld [vmem:[#allocation15 + $0x100] sm:$0xff]
        %v1793 = vld [vmem:[#allocation15 + $0x108] sm:$0xff]
        %v1794 = vld [vmem:[#allocation15 + $0x110] sm:$0xff]
        %v1795 = vld [vmem:[#allocation15 + $0x118] sm:$0xff]
        %v1796 = vld [vmem:[#allocation15 + $0x120] sm:$0xff]
        %v1797 = vld [vmem:[#allocation15 + $0x128] sm:$0xff]
        %v1798 = vld [vmem:[#allocation15 + $0x130] sm:$0xff]
        %v1799 = vld [vmem:[#allocation15 + $0x138] sm:$0xff]
        %v1800 = vld [vmem:[#allocation15 + $0x140] sm:$0xff]
        %v1801 = vld [vmem:[#allocation15 + $0x148] sm:$0xff]
        %v1802 = vld [vmem:[#allocation15 + $0x150] sm:$0xff]
        %v1803 = vld [vmem:[#allocation15 + $0x158] sm:$0xff]
        %v1804 = vld [vmem:[#allocation15 + $0x160] sm:$0xff]
        %v1805 = vld [vmem:[#allocation15 + $0x168] sm:$0xff]
        %v1806 = vld [vmem:[#allocation15 + $0x170] sm:$0xff]
        %v1807 = vld [vmem:[#allocation15 + $0x178] sm:$0xff]
        %v1808 = vld [vmem:[#allocation15 + $0x180] sm:$0xff]
        %v1809 = vld [vmem:[#allocation15 + $0x188] sm:$0xff]
        %v1810 = vld [vmem:[#allocation15 + $0x190] sm:$0xff]
        %v1811 = vld [vmem:[#allocation15 + $0x198] sm:$0xff]
        %v1812 = vld [vmem:[#allocation15 + $0x1a0] sm:$0xff]
        %v1813 = vld [vmem:[#allocation15 + $0x1a8] sm:$0xff]
        %v1814 = vld [vmem:[#allocation15 + $0x1b0] sm:$0xff]
        %v1815 = vld [vmem:[#allocation15 + $0x1b8] sm:$0xff]
        %v1816 = vld [vmem:[#allocation15 + $0x1c0] sm:$0xff]
        %v1817 = vld [vmem:[#allocation15 + $0x1c8] sm:$0xff]
        %v1818 = vld [vmem:[#allocation15 + $0x1d0] sm:$0xff]
        %v1819 = vld [vmem:[#allocation15 + $0x1d8] sm:$0xff]
        %v1820 = vld [vmem:[#allocation15 + $0x1e0] sm:$0xff]
        %v1821 = vld [vmem:[#allocation15 + $0x1e8] sm:$0xff]
        %v1822 = vld [vmem:[#allocation15 + $0x1f0] sm:$0xff]
        %v1823 = vld [vmem:[#allocation15 + $0x1f8] sm:$0xff]
        %v1824 = vld [vmem:[#allocation16] sm:$0xff]
        %v1826 = vlaneseq
        %v1827 = vshrl.u32 %v1826, 7
        %v1828 = vsub.s32 0, %v1827
        %v1829 = vrot.slane %v1824, %v1828
        %v1830 = vlaneseq
        %v1831 = vshrl.u32 %v1830, 7
        %v1832 = vsub.s32 1, %v1831
        %v1833 = vrot.slane %v1824, %v1832
        %v1834 = vlaneseq
        %v1835 = vshrl.u32 %v1834, 7
        %v1836 = vsub.s32 2, %v1835
        %v1837 = vrot.slane %v1824, %v1836
        %v1838 = vlaneseq
        %v1839 = vshrl.u32 %v1838, 7
        %v1840 = vsub.s32 3, %v1839
        %v1841 = vrot.slane %v1824, %v1840
        %v1842 = vlaneseq
        %v1843 = vshrl.u32 %v1842, 7
        %v1844 = vsub.s32 4, %v1843
        %v1845 = vrot.slane %v1824, %v1844
        %v1846 = vlaneseq
        %v1847 = vshrl.u32 %v1846, 7
        %v1848 = vsub.s32 5, %v1847
        %v1849 = vrot.slane %v1824, %v1848
        %v1850 = vlaneseq
        %v1851 = vshrl.u32 %v1850, 7
        %v1852 = vsub.s32 6, %v1851
        %v1853 = vrot.slane %v1824, %v1852
        %v1854 = vlaneseq
        %v1855 = vshrl.u32 %v1854, 7
        %v1856 = vsub.s32 7, %v1855
        %v1857 = vrot.slane %v1824, %v1856
        %v1930 = vunpack.c.l.b16 %v1760
        %v1931 = vunpack.c.h.b16 %v1760
        %v1932 = vunpack.c.l.b16 %v1761
        %v1933 = vunpack.c.h.b16 %v1761
        %v1934 = vunpack.c.l.b16 %v1762
        %v1935 = vunpack.c.h.b16 %v1762
        %v1936 = vunpack.c.l.b16 %v1763
        %v1937 = vunpack.c.h.b16 %v1763
        %v1938 = vunpack.c.l.b16 %v1764
        %v1939 = vunpack.c.h.b16 %v1764
        %v1940 = vunpack.c.l.b16 %v1765
        %v1941 = vunpack.c.h.b16 %v1765
        %v1942 = vunpack.c.l.b16 %v1766
        %v1943 = vunpack.c.h.b16 %v1766
        %v1944 = vunpack.c.l.b16 %v1767
        %v1945 = vunpack.c.h.b16 %v1767
        %v1946 = vunpack.c.l.b16 %v1768
        %v1947 = vunpack.c.h.b16 %v1768
        %v1948 = vunpack.c.l.b16 %v1769
        %v1949 = vunpack.c.h.b16 %v1769
        %v1950 = vunpack.c.l.b16 %v1770
        %v1951 = vunpack.c.h.b16 %v1770
        %v1952 = vunpack.c.l.b16 %v1771
        %v1953 = vunpack.c.h.b16 %v1771
        %v1954 = vunpack.c.l.b16 %v1772
        %v1955 = vunpack.c.h.b16 %v1772
        %v1956 = vunpack.c.l.b16 %v1773
        %v1957 = vunpack.c.h.b16 %v1773
        %v1958 = vunpack.c.l.b16 %v1774
        %v1959 = vunpack.c.h.b16 %v1774
        %v1960 = vunpack.c.l.b16 %v1775
        %v1961 = vunpack.c.h.b16 %v1775
        %v1962 = vunpack.c.l.b16 %v1776
        %v1963 = vunpack.c.h.b16 %v1776
        %v1964 = vunpack.c.l.b16 %v1777
        %v1965 = vunpack.c.h.b16 %v1777
        %v1966 = vunpack.c.l.b16 %v1778
        %v1967 = vunpack.c.h.b16 %v1778
        %v1968 = vunpack.c.l.b16 %v1779
        %v1969 = vunpack.c.h.b16 %v1779
        %v1970 = vunpack.c.l.b16 %v1780
        %v1971 = vunpack.c.h.b16 %v1780
        %v1972 = vunpack.c.l.b16 %v1781
        %v1973 = vunpack.c.h.b16 %v1781
        %v1974 = vunpack.c.l.b16 %v1782
        %v1975 = vunpack.c.h.b16 %v1782
        %v1976 = vunpack.c.l.b16 %v1783
        %v1977 = vunpack.c.h.b16 %v1783
        %v1978 = vunpack.c.l.b16 %v1784
        %v1979 = vunpack.c.h.b16 %v1784
        %v1980 = vunpack.c.l.b16 %v1785
        %v1981 = vunpack.c.h.b16 %v1785
        %v1982 = vunpack.c.l.b16 %v1786
        %v1983 = vunpack.c.h.b16 %v1786
        %v1984 = vunpack.c.l.b16 %v1787
        %v1985 = vunpack.c.h.b16 %v1787
        %v1986 = vunpack.c.l.b16 %v1788
        %v1987 = vunpack.c.h.b16 %v1788
        %v1988 = vunpack.c.l.b16 %v1789
        %v1989 = vunpack.c.h.b16 %v1789
        %v1990 = vunpack.c.l.b16 %v1790
        %v1991 = vunpack.c.h.b16 %v1790
        %v1992 = vunpack.c.l.b16 %v1791
        %v1993 = vunpack.c.h.b16 %v1791
        %v1994 = vunpack.c.l.b16 %v1792
        %v1995 = vunpack.c.h.b16 %v1792
        %v1996 = vunpack.c.l.b16 %v1793
        %v1997 = vunpack.c.h.b16 %v1793
        %v1998 = vunpack.c.l.b16 %v1794
        %v1999 = vunpack.c.h.b16 %v1794
        %v2000 = vunpack.c.l.b16 %v1795
        %v2001 = vunpack.c.h.b16 %v1795
        %v2002 = vunpack.c.l.b16 %v1796
        %v2003 = vunpack.c.h.b16 %v1796
        %v2004 = vunpack.c.l.b16 %v1797
        %v2005 = vunpack.c.h.b16 %v1797
        %v2006 = vunpack.c.l.b16 %v1798
        %v2007 = vunpack.c.h.b16 %v1798
        %v2008 = vunpack.c.l.b16 %v1799
        %v2009 = vunpack.c.h.b16 %v1799
        %v2010 = vunpack.c.l.b16 %v1800
        %v2011 = vunpack.c.h.b16 %v1800
        %v2012 = vunpack.c.l.b16 %v1801
        %v2013 = vunpack.c.h.b16 %v1801
        %v2014 = vunpack.c.l.b16 %v1802
        %v2015 = vunpack.c.h.b16 %v1802
        %v2016 = vunpack.c.l.b16 %v1803
        %v2017 = vunpack.c.h.b16 %v1803
        %v2018 = vunpack.c.l.b16 %v1804
        %v2019 = vunpack.c.h.b16 %v1804
        %v2020 = vunpack.c.l.b16 %v1805
        %v2021 = vunpack.c.h.b16 %v1805
        %v2022 = vunpack.c.l.b16 %v1806
        %v2023 = vunpack.c.h.b16 %v1806
        %v2024 = vunpack.c.l.b16 %v1807
        %v2025 = vunpack.c.h.b16 %v1807
        %v2026 = vunpack.c.l.b16 %v1808
        %v2027 = vunpack.c.h.b16 %v1808
        %v2028 = vunpack.c.l.b16 %v1809
        %v2029 = vunpack.c.h.b16 %v1809
        %v2030 = vunpack.c.l.b16 %v1810
        %v2031 = vunpack.c.h.b16 %v1810
        %v2032 = vunpack.c.l.b16 %v1811
        %v2033 = vunpack.c.h.b16 %v1811
        %v2034 = vunpack.c.l.b16 %v1812
        %v2035 = vunpack.c.h.b16 %v1812
        %v2036 = vunpack.c.l.b16 %v1813
        %v2037 = vunpack.c.h.b16 %v1813
        %v2038 = vunpack.c.l.b16 %v1814
        %v2039 = vunpack.c.h.b16 %v1814
        %v2040 = vunpack.c.l.b16 %v1815
        %v2041 = vunpack.c.h.b16 %v1815
        %v2042 = vunpack.c.l.b16 %v1816
        %v2043 = vunpack.c.h.b16 %v1816
        %v2044 = vunpack.c.l.b16 %v1817
        %v2045 = vunpack.c.h.b16 %v1817
        %v2046 = vunpack.c.l.b16 %v1818
        %v2047 = vunpack.c.h.b16 %v1818
        %v2048 = vunpack.c.l.b16 %v1819
        %v2049 = vunpack.c.h.b16 %v1819
        %v2050 = vunpack.c.l.b16 %v1820
        %v2051 = vunpack.c.h.b16 %v1820
        %v2052 = vunpack.c.l.b16 %v1821
        %v2053 = vunpack.c.h.b16 %v1821
        %v2054 = vunpack.c.l.b16 %v1822
        %v2055 = vunpack.c.h.b16 %v1822
        %v2056 = vunpack.c.l.b16 %v1823
        %v2057 = vunpack.c.h.b16 %v1823
        %v2058 = vpack.c.b16 %v1938, %v1930
        %v2059 = vpack.c.b16 %v1939, %v1931
        %v2060 = vpack.c.b16 %v1940, %v1932
        %v2061 = vpack.c.b16 %v1941, %v1933
        %v2062 = vpack.c.b16 %v1942, %v1934
        %v2063 = vpack.c.b16 %v1943, %v1935
        %v2064 = vpack.c.b16 %v1944, %v1936
        %v2065 = vpack.c.b16 %v1945, %v1937
        %v2066 = vpack.c.b16 %v1954, %v1946
        %v2067 = vpack.c.b16 %v1955, %v1947
        %v2068 = vpack.c.b16 %v1956, %v1948
        %v2069 = vpack.c.b16 %v1957, %v1949
        %v2070 = vpack.c.b16 %v1958, %v1950
        %v2071 = vpack.c.b16 %v1959, %v1951
        %v2072 = vpack.c.b16 %v1960, %v1952
        %v2073 = vpack.c.b16 %v1961, %v1953
        %v2074 = vpack.c.b16 %v1970, %v1962
        %v2075 = vpack.c.b16 %v1971, %v1963
        %v2076 = vpack.c.b16 %v1972, %v1964
        %v2077 = vpack.c.b16 %v1973, %v1965
        %v2078 = vpack.c.b16 %v1974, %v1966
        %v2079 = vpack.c.b16 %v1975, %v1967
        %v2080 = vpack.c.b16 %v1976, %v1968
        %v2081 = vpack.c.b16 %v1977, %v1969
        %v2082 = vpack.c.b16 %v1986, %v1978
        %v2083 = vpack.c.b16 %v1987, %v1979
        %v2084 = vpack.c.b16 %v1988, %v1980
        %v2085 = vpack.c.b16 %v1989, %v1981
        %v2086 = vpack.c.b16 %v1990, %v1982
        %v2087 = vpack.c.b16 %v1991, %v1983
        %v2088 = vpack.c.b16 %v1992, %v1984
        %v2089 = vpack.c.b16 %v1993, %v1985
        %v2090 = vpack.c.b16 %v2002, %v1994
        %v2091 = vpack.c.b16 %v2003, %v1995
        %v2092 = vpack.c.b16 %v2004, %v1996
        %v2093 = vpack.c.b16 %v2005, %v1997
        %v2094 = vpack.c.b16 %v2006, %v1998
        %v2095 = vpack.c.b16 %v2007, %v1999
        %v2096 = vpack.c.b16 %v2008, %v2000
        %v2097 = vpack.c.b16 %v2009, %v2001
        %v2098 = vpack.c.b16 %v2018, %v2010
        %v2099 = vpack.c.b16 %v2019, %v2011
        %v2100 = vpack.c.b16 %v2020, %v2012
        %v2101 = vpack.c.b16 %v2021, %v2013
        %v2102 = vpack.c.b16 %v2022, %v2014
        %v2103 = vpack.c.b16 %v2023, %v2015
        %v2104 = vpack.c.b16 %v2024, %v2016
        %v2105 = vpack.c.b16 %v2025, %v2017
        %v2106 = vpack.c.b16 %v2034, %v2026
        %v2107 = vpack.c.b16 %v2035, %v2027
        %v2108 = vpack.c.b16 %v2036, %v2028
        %v2109 = vpack.c.b16 %v2037, %v2029
        %v2110 = vpack.c.b16 %v2038, %v2030
        %v2111 = vpack.c.b16 %v2039, %v2031
        %v2112 = vpack.c.b16 %v2040, %v2032
        %v2113 = vpack.c.b16 %v2041, %v2033
        %v2114 = vpack.c.b16 %v2050, %v2042
        %v2115 = vpack.c.b16 %v2051, %v2043
        %v2116 = vpack.c.b16 %v2052, %v2044
        %v2117 = vpack.c.b16 %v2053, %v2045
        %v2118 = vpack.c.b16 %v2054, %v2046
        %v2119 = vpack.c.b16 %v2055, %v2047
        %v2120 = vpack.c.b16 %v2056, %v2048
        %v2121 = vpack.c.b16 %v2057, %v2049
        %2186 = vmatprep.subr.bf16.mxu0 %v2059
        %2187 = vmatpush1.bf16.msra.mxu0 %v2058
        %2188 = vmatprep.subr.bf16.mxu0 %v2067
        %2189 = vmatpush1.bf16.msra.mxu0 %v2066
        %2190 = vmatprep.subr.bf16.mxu0 %v2075
        %2191 = vmatpush1.bf16.msra.mxu0 %v2074
        %2192 = vmatprep.subr.bf16.mxu0 %v2083
        %2193 = vmatpush1.bf16.msra.mxu0 %v2082
        %2194 = vmatprep.subr.bf16.mxu0 %v2091
        %2195 = vmatpush1.bf16.msra.mxu0 %v2090
        %2196 = vmatprep.subr.bf16.mxu0 %v2099
        %2197 = vmatpush1.bf16.msra.mxu0 %v2098
        %2198 = vmatprep.subr.bf16.mxu0 %v2107
        %2199 = vmatpush1.bf16.msra.mxu0 %v2106
        %2200 = vmatprep.subr.bf16.mxu0 %v2115
        %2201 = vmatpush1.bf16.msra.mxu0 %v2114
        %2202 = vmatprep.subr.bf16.mxu0 0
        %2203 = vmatpush1.bf16.msra.mxu0 0
        %2204 = vmatprep.subr.bf16.mxu0 0
        %2205 = vmatpush1.bf16.msra.mxu0 0
        %2206 = vmatprep.subr.bf16.mxu0 0
        %2207 = vmatpush1.bf16.msra.mxu0 0
        %2208 = vmatprep.subr.bf16.mxu0 0
        %2209 = vmatpush1.bf16.msra.mxu0 0
        %2210 = vmatprep.subr.bf16.mxu0 0
        %2211 = vmatpush1.bf16.msra.mxu0 0
        %2212 = vmatprep.subr.bf16.mxu0 0
        %2213 = vmatpush1.bf16.msra.mxu0 0
        %2214 = vmatprep.subr.bf16.mxu0 0
        %2215 = vmatpush1.bf16.msra.mxu0 0
        %2216 = vmatprep.subr.bf16.mxu0 0
        %2217 = vmatpush1.bf16.msra.mxu0 0
        %2218 = vmatprep.mubr.bf16.mxu0 0
        %2219 = vmatmul.mubr.bf16.gmra.mrb[0].mxu0 %v1744
        %v2220 = vpop.f32.mrb[0].mxu0
        %v2221 = vadd.f32 %v1829, %v2220
        %v2222 = vpop.f32.mrb[0].mxu0
        %v2223 = vadd.f32 %v1833, %v2222
        %v2224 = vpop.f32.mrb[0].mxu0
        %v2225 = vadd.f32 %v1829, %v2224
        %v2226 = vpop.f32.mrb[0].mxu0
        %v2227 = vadd.f32 %v1833, %v2226
        %2228 = vmatprep.mubr.bf16.mxu0 0
        %2229 = vmatmul.mubr.bf16.gmra.mrb[0].mxu0 %v1745
        %v2230 = vpop.f32.mrb[0].mxu0
        %v2231 = vadd.f32 %v1829, %v2230
        %v2232 = vpop.f32.mrb[0].mxu0
        %v2233 = vadd.f32 %v1833, %v2232
        %v2234 = vpop.f32.mrb[0].mxu0
        %v2235 = vadd.f32 %v1829, %v2234
        %v2236 = vpop.f32.mrb[0].mxu0
        %v2237 = vadd.f32 %v1833, %v2236
        %2238 = vmatprep.mubr.bf16.mxu0 0
        %2239 = vmatmul.mubr.bf16.gmra.mrb[0].mxu0 %v1746
        %v2240 = vpop.f32.mrb[0].mxu0
        %v2241 = vadd.f32 %v1829, %v2240
        %v2242 = vpop.f32.mrb[0].mxu0
        %v2243 = vadd.f32 %v1833, %v2242
        %v2244 = vpop.f32.mrb[0].mxu0
        %v2245 = vadd.f32 %v1829, %v2244
        %v2246 = vpop.f32.mrb[0].mxu0
        %v2247 = vadd.f32 %v1833, %v2246
        %2248 = vmatprep.mubr.bf16.mxu0 0
        %2249 = vmatmul.mubr.bf16.gmra.mrb[0].mxu0 %v1747
        %v2250 = vpop.f32.mrb[0].mxu0
        %v2251 = vadd.f32 %v1829, %v2250
        %v2252 = vpop.f32.mrb[0].mxu0
        %v2253 = vadd.f32 %v1833, %v2252
        %v2254 = vpop.f32.mrb[0].mxu0
        %v2255 = vadd.f32 %v1829, %v2254
        %v2256 = vpop.f32.mrb[0].mxu0
        %v2257 = vadd.f32 %v1833, %v2256
        %2258 = vmatprep.mubr.bf16.mxu0 0
        %2259 = vmatmul.mubr.bf16.gmra.mrb[0].mxu0 %v1748
        %v2260 = vpop.f32.mrb[0].mxu0
        %v2261 = vadd.f32 %v1829, %v2260
        %v2262 = vpop.f32.mrb[0].mxu0
        %v2263 = vadd.f32 %v1833, %v2262
        %v2264 = vpop.f32.mrb[0].mxu0
        %v2265 = vadd.f32 %v1829, %v2264
        %v2266 = vpop.f32.mrb[0].mxu0
        %v2267 = vadd.f32 %v1833, %v2266
        %2268 = vmatprep.mubr.bf16.mxu0 0
        %2269 = vmatmul.mubr.bf16.gmra.mrb[0].mxu0 %v1749
        %v2270 = vpop.f32.mrb[0].mxu0
        %v2271 = vadd.f32 %v1829, %v2270
        %v2272 = vpop.f32.mrb[0].mxu0
        %v2273 = vadd.f32 %v1833, %v2272
        %v2274 = vpop.f32.mrb[0].mxu0
        %v2275 = vadd.f32 %v1829, %v2274
        %v2276 = vpop.f32.mrb[0].mxu0
        %v2277 = vadd.f32 %v1833, %v2276
        %2278 = vmatprep.mubr.bf16.mxu0 0
        %2279 = vmatmul.mubr.bf16.gmra.mrb[0].mxu0 %v1750
        %v2280 = vpop.f32.mrb[0].mxu0
        %v2281 = vadd.f32 %v1829, %v2280
        %v2282 = vpop.f32.mrb[0].mxu0
        %v2283 = vadd.f32 %v1833, %v2282
        %v2284 = vpop.f32.mrb[0].mxu0
        %v2285 = vadd.f32 %v1829, %v2284
        %v2286 = vpop.f32.mrb[0].mxu0
        %v2287 = vadd.f32 %v1833, %v2286
        %2288 = vmatprep.mubr.bf16.mxu0 0
        %2289 = vmatmul.mubr.bf16.gmra.mrb[0].mxu0 %v1751
        %v2290 = vpop.f32.mrb[0].mxu0
        %v2291 = vadd.f32 %v1829, %v2290
        %v2292 = vpop.f32.mrb[0].mxu0
        %v2293 = vadd.f32 %v1833, %v2292
        %v2294 = vpop.f32.mrb[0].mxu0
        %v2295 = vadd.f32 %v1829, %v2294
        %v2296 = vpop.f32.mrb[0].mxu0
        %v2297 = vadd.f32 %v1833, %v2296
        %2298 = vmatprep.mubr.bf16.mxu0 0
        %2299 = vmatmul.mubr.bf16.gmra.mrb[0].mxu0 %v1752
        %v2300 = vpop.f32.mrb[0].mxu0
        %v2301 = vadd.f32 %v1829, %v2300
        %v2302 = vpop.f32.mrb[0].mxu0
        %v2303 = vadd.f32 %v1833, %v2302
        %v2304 = vpop.f32.mrb[0].mxu0
        %v2305 = vadd.f32 %v1829, %v2304
        %v2306 = vpop.f32.mrb[0].mxu0
        %v2307 = vadd.f32 %v1833, %v2306
        %2308 = vmatprep.mubr.bf16.mxu0 0
        %2309 = vmatmul.mubr.bf16.gmra.mrb[0].mxu0 %v1753
        %v2310 = vpop.f32.mrb[0].mxu0
        %v2311 = vadd.f32 %v1829, %v2310
        %v2312 = vpop.f32.mrb[0].mxu0
        %v2313 = vadd.f32 %v1833, %v2312
        %v2314 = vpop.f32.mrb[0].mxu0
        %v2315 = vadd.f32 %v1829, %v2314
        %v2316 = vpop.f32.mrb[0].mxu0
        %v2317 = vadd.f32 %v1833, %v2316
        %2318 = vmatprep.mubr.bf16.mxu0 0
        %2319 = vmatmul.mubr.bf16.gmra.mrb[0].mxu0 %v1754
        %v2320 = vpop.f32.mrb[0].mxu0
        %v2321 = vadd.f32 %v1829, %v2320
        %v2322 = vpop.f32.mrb[0].mxu0
        %v2323 = vadd.f32 %v1833, %v2322
        %v2324 = vpop.f32.mrb[0].mxu0
        %v2325 = vadd.f32 %v1829, %v2324
        %v2326 = vpop.f32.mrb[0].mxu0
        %v2327 = vadd.f32 %v1833, %v2326
        %2328 = vmatprep.mubr.bf16.mxu0 0
        %2329 = vmatmul.mubr.bf16.gmra.mrb[0].mxu0 %v1755
        %v2330 = vpop.f32.mrb[0].mxu0
        %v2331 = vadd.f32 %v1829, %v2330
        %v2332 = vpop.f32.mrb[0].mxu0
        %v2333 = vadd.f32 %v1833, %v2332
        %v2334 = vpop.f32.mrb[0].mxu0
        %v2335 = vadd.f32 %v1829, %v2334
        %v2336 = vpop.f32.mrb[0].mxu0
        %v2337 = vadd.f32 %v1833, %v2336
        %2338 = vmatprep.mubr.bf16.mxu0 0
        %2339 = vmatmul.mubr.bf16.gmra.mrb[0].mxu0 %v1756
        %v2340 = vpop.f32.mrb[0].mxu0
        %v2341 = vadd.f32 %v1829, %v2340
        %v2342 = vpop.f32.mrb[0].mxu0
        %v2343 = vadd.f32 %v1833, %v2342
        %v2344 = vpop.f32.mrb[0].mxu0
        %v2345 = vadd.f32 %v1829, %v2344
        %v2346 = vpop.f32.mrb[0].mxu0
        %v2347 = vadd.f32 %v1833, %v2346
        %2348 = vmatprep.mubr.bf16.mxu0 0
        %2349 = vmatmul.mubr.bf16.gmra.mrb[0].mxu0 %v1757
        %v2350 = vpop.f32.mrb[0].mxu0
        %v2351 = vadd.f32 %v1829, %v2350
        %v2352 = vpop.f32.mrb[0].mxu0
        %v2353 = vadd.f32 %v1833, %v2352
        %v2354 = vpop.f32.mrb[0].mxu0
        %v2355 = vadd.f32 %v1829, %v2354
        %v2356 = vpop.f32.mrb[0].mxu0
        %v2357 = vadd.f32 %v1833, %v2356
        %2358 = vmatprep.mubr.bf16.mxu0 0
        %2359 = vmatmul.mubr.bf16.gmra.mrb[0].mxu0 %v1758
        %v2360 = vpop.f32.mrb[0].mxu0
        %v2361 = vadd.f32 %v1829, %v2360
        %v2362 = vpop.f32.mrb[0].mxu0
        %v2363 = vadd.f32 %v1833, %v2362
        %v2364 = vpop.f32.mrb[0].mxu0
        %v2365 = vadd.f32 %v1829, %v2364
        %v2366 = vpop.f32.mrb[0].mxu0
        %v2367 = vadd.f32 %v1833, %v2366
        %2368 = vmatprep.mubr.bf16.mxu0 0
        %2369 = vmatmul.mubr.bf16.gmra.mrb[0].mxu0 %v1759
        %v2370 = vpop.f32.mrb[0].mxu0
        %v2371 = vadd.f32 %v1829, %v2370
        %v2372 = vpop.f32.mrb[0].mxu0
        %v2373 = vadd.f32 %v1833, %v2372
        %v2374 = vpop.f32.mrb[0].mxu0
        %v2375 = vadd.f32 %v1829, %v2374
        %v2376 = vpop.f32.mrb[0].mxu0
        %v2377 = vadd.f32 %v1833, %v2376
        %2378 = vdwg.mxu0
        %2379 = vmatprep.subr.bf16.mxu0 %v2061
        %2380 = vmatpush1.bf16.msra.mxu0 %v2060
        %2381 = vmatprep.subr.bf16.mxu0 %v2069
        %2382 = vmatpush1.bf16.msra.mxu0 %v2068
        %2383 = vmatprep.subr.bf16.mxu0 %v2077
        %2384 = vmatpush1.bf16.msra.mxu0 %v2076
        %2385 = vmatprep.subr.bf16.mxu0 %v2085
        %2386 = vmatpush1.bf16.msra.mxu0 %v2084
        %2387 = vmatprep.subr.bf16.mxu0 %v2093
        %2388 = vmatpush1.bf16.msra.mxu0 %v2092
        %2389 = vmatprep.subr.bf16.mxu0 %v2101
        %2390 = vmatpush1.bf16.msra.mxu0 %v2100
        %2391 = vmatprep.subr.bf16.mxu0 %v2109
        %2392 = vmatpush1.bf16.msra.mxu0 %v2108
        %2393 = vmatprep.subr.bf16.mxu0 %v2117
        %2394 = vmatpush1.bf16.msra.mxu0 %v2116
        %2395 = vmatprep.subr.bf16.mxu0 0
        %2396 = vmatpush1.bf16.msra.mxu0 0
        %2397 = vmatprep.subr.bf16.mxu0 0
        %2398 = vmatpush1.bf16.msra.mxu0 0
        %2399 = vmatprep.subr.bf16.mxu0 0
        %2400 = vmatpush1.bf16.msra.mxu0 0
        %2401 = vmatprep.subr.bf16.mxu0 0
        %2402 = vmatpush1.bf16.msra.mxu0 0
        %2403 = vmatprep.subr.bf16.mxu0 0
        %2404 = vmatpush1.bf16.msra.mxu0 0
        %2405 = vmatprep.subr.bf16.mxu0 0
        %2406 = vmatpush1.bf16.msra.mxu0 0
        %2407 = vmatprep.subr.bf16.mxu0 0
        %2408 = vmatpush1.bf16.msra.mxu0 0
        %2409 = vmatprep.subr.bf16.mxu0 0
        %2410 = vmatpush1.bf16.msra.mxu0 0
        %2411 = vmatprep.mubr.bf16.mxu0 0
        %2412 = vmatmul.mubr.bf16.gmra.mrb[0].mxu0 %v1744
        %v2413 = vpop.f32.mrb[0].mxu0
        %v2414 = vadd.f32 %v1837, %v2413
        %v2415 = vpop.f32.mrb[0].mxu0
        %v2416 = vadd.f32 %v1841, %v2415
        %v2417 = vpop.f32.mrb[0].mxu0
        %v2418 = vadd.f32 %v1837, %v2417
        %v2419 = vpop.f32.mrb[0].mxu0
        %v2420 = vadd.f32 %v1841, %v2419
        %2421 = vmatprep.mubr.bf16.mxu0 0
        %2422 = vmatmul.mubr.bf16.gmra.mrb[0].mxu0 %v1745
        %v2423 = vpop.f32.mrb[0].mxu0
        %v2424 = vadd.f32 %v1837, %v2423
        %v2425 = vpop.f32.mrb[0].mxu0
        %v2426 = vadd.f32 %v1841, %v2425
        %v2427 = vpop.f32.mrb[0].mxu0
        %v2428 = vadd.f32 %v1837, %v2427
        %v2429 = vpop.f32.mrb[0].mxu0
        %v2430 = vadd.f32 %v1841, %v2429
        %2431 = vmatprep.mubr.bf16.mxu0 0
        %2432 = vmatmul.mubr.bf16.gmra.mrb[0].mxu0 %v1746
        %v2433 = vpop.f32.mrb[0].mxu0
        %v2434 = vadd.f32 %v1837, %v2433
        %v2435 = vpop.f32.mrb[0].mxu0
        %v2436 = vadd.f32 %v1841, %v2435
        %v2437 = vpop.f32.mrb[0].mxu0
        %v2438 = vadd.f32 %v1837, %v2437
        %v2439 = vpop.f32.mrb[0].mxu0
        %v2440 = vadd.f32 %v1841, %v2439
        %2441 = vmatprep.mubr.bf16.mxu0 0
        %2442 = vmatmul.mubr.bf16.gmra.mrb[0].mxu0 %v1747
        %v2443 = vpop.f32.mrb[0].mxu0
        %v2444 = vadd.f32 %v1837, %v2443
        %v2445 = vpop.f32.mrb[0].mxu0
        %v2446 = vadd.f32 %v1841, %v2445
        %v2447 = vpop.f32.mrb[0].mxu0
        %v2448 = vadd.f32 %v1837, %v2447
        %v2449 = vpop.f32.mrb[0].mxu0
        %v2450 = vadd.f32 %v1841, %v2449
        %2451 = vmatprep.mubr.bf16.mxu0 0
        %2452 = vmatmul.mubr.bf16.gmra.mrb[0].mxu0 %v1748
        %v2453 = vpop.f32.mrb[0].mxu0
        %v2454 = vadd.f32 %v1837, %v2453
        %v2455 = vpop.f32.mrb[0].mxu0
        %v2456 = vadd.f32 %v1841, %v2455
        %v2457 = vpop.f32.mrb[0].mxu0
        %v2458 = vadd.f32 %v1837, %v2457
        %v2459 = vpop.f32.mrb[0].mxu0
        %v2460 = vadd.f32 %v1841, %v2459
        %2461 = vmatprep.mubr.bf16.mxu0 0
        %2462 = vmatmul.mubr.bf16.gmra.mrb[0].mxu0 %v1749
        %v2463 = vpop.f32.mrb[0].mxu0
        %v2464 = vadd.f32 %v1837, %v2463
        %v2465 = vpop.f32.mrb[0].mxu0
        %v2466 = vadd.f32 %v1841, %v2465
        %v2467 = vpop.f32.mrb[0].mxu0
        %v2468 = vadd.f32 %v1837, %v2467
        %v2469 = vpop.f32.mrb[0].mxu0
        %v2470 = vadd.f32 %v1841, %v2469
        %2471 = vmatprep.mubr.bf16.mxu0 0
        %2472 = vmatmul.mubr.bf16.gmra.mrb[0].mxu0 %v1750
        %v2473 = vpop.f32.mrb[0].mxu0
        %v2474 = vadd.f32 %v1837, %v2473
        %v2475 = vpop.f32.mrb[0].mxu0
        %v2476 = vadd.f32 %v1841, %v2475
        %v2477 = vpop.f32.mrb[0].mxu0
        %v2478 = vadd.f32 %v1837, %v2477
        %v2479 = vpop.f32.mrb[0].mxu0
        %v2480 = vadd.f32 %v1841, %v2479
        %2481 = vmatprep.mubr.bf16.mxu0 0
        %2482 = vmatmul.mubr.bf16.gmra.mrb[0].mxu0 %v1751
        %v2483 = vpop.f32.mrb[0].mxu0
        %v2484 = vadd.f32 %v1837, %v2483
        %v2485 = vpop.f32.mrb[0].mxu0
        %v2486 = vadd.f32 %v1841, %v2485
        %v2487 = vpop.f32.mrb[0].mxu0
        %v2488 = vadd.f32 %v1837, %v2487
        %v2489 = vpop.f32.mrb[0].mxu0
        %v2490 = vadd.f32 %v1841, %v2489
        %2491 = vmatprep.mubr.bf16.mxu0 0
        %2492 = vmatmul.mubr.bf16.gmra.mrb[0].mxu0 %v1752
        %v2493 = vpop.f32.mrb[0].mxu0
        %v2494 = vadd.f32 %v1837, %v2493
        %v2495 = vpop.f32.mrb[0].mxu0
        %v2496 = vadd.f32 %v1841, %v2495
        %v2497 = vpop.f32.mrb[0].mxu0
        %v2498 = vadd.f32 %v1837, %v2497
        %v2499 = vpop.f32.mrb[0].mxu0
        %v2500 = vadd.f32 %v1841, %v2499
        %2501 = vmatprep.mubr.bf16.mxu0 0
        %2502 = vmatmul.mubr.bf16.gmra.mrb[0].mxu0 %v1753
        %v2503 = vpop.f32.mrb[0].mxu0
        %v2504 = vadd.f32 %v1837, %v2503
        %v2505 = vpop.f32.mrb[0].mxu0
        %v2506 = vadd.f32 %v1841, %v2505
        %v2507 = vpop.f32.mrb[0].mxu0
        %v2508 = vadd.f32 %v1837, %v2507
        %v2509 = vpop.f32.mrb[0].mxu0
        %v2510 = vadd.f32 %v1841, %v2509
        %2511 = vmatprep.mubr.bf16.mxu0 0
        %2512 = vmatmul.mubr.bf16.gmra.mrb[0].mxu0 %v1754
        %v2513 = vpop.f32.mrb[0].mxu0
        %v2514 = vadd.f32 %v1837, %v2513
        %v2515 = vpop.f32.mrb[0].mxu0
        %v2516 = vadd.f32 %v1841, %v2515
        %v2517 = vpop.f32.mrb[0].mxu0
        %v2518 = vadd.f32 %v1837, %v2517
        %v2519 = vpop.f32.mrb[0].mxu0
        %v2520 = vadd.f32 %v1841, %v2519
        %2521 = vmatprep.mubr.bf16.mxu0 0
        %2522 = vmatmul.mubr.bf16.gmra.mrb[0].mxu0 %v1755
        %v2523 = vpop.f32.mrb[0].mxu0
        %v2524 = vadd.f32 %v1837, %v2523
        %v2525 = vpop.f32.mrb[0].mxu0
        %v2526 = vadd.f32 %v1841, %v2525
        %v2527 = vpop.f32.mrb[0].mxu0
        %v2528 = vadd.f32 %v1837, %v2527
        %v2529 = vpop.f32.mrb[0].mxu0
        %v2530 = vadd.f32 %v1841, %v2529
        %2531 = vmatprep.mubr.bf16.mxu0 0
        %2532 = vmatmul.mubr.bf16.gmra.mrb[0].mxu0 %v1756
        %v2533 = vpop.f32.mrb[0].mxu0
        %v2534 = vadd.f32 %v1837, %v2533
        %v2535 = vpop.f32.mrb[0].mxu0
        %v2536 = vadd.f32 %v1841, %v2535
        %v2537 = vpop.f32.mrb[0].mxu0
        %v2538 = vadd.f32 %v1837, %v2537
        %v2539 = vpop.f32.mrb[0].mxu0
        %v2540 = vadd.f32 %v1841, %v2539
        %2541 = vmatprep.mubr.bf16.mxu0 0
        %2542 = vmatmul.mubr.bf16.gmra.mrb[0].mxu0 %v1757
        %v2543 = vpop.f32.mrb[0].mxu0
        %v2544 = vadd.f32 %v1837, %v2543
        %v2545 = vpop.f32.mrb[0].mxu0
        %v2546 = vadd.f32 %v1841, %v2545
        %v2547 = vpop.f32.mrb[0].mxu0
        %v2548 = vadd.f32 %v1837, %v2547
        %v2549 = vpop.f32.mrb[0].mxu0
        %v2550 = vadd.f32 %v1841, %v2549
        %2551 = vmatprep.mubr.bf16.mxu0 0
        %2552 = vmatmul.mubr.bf16.gmra.mrb[0].mxu0 %v1758
        %v2553 = vpop.f32.mrb[0].mxu0
        %v2554 = vadd.f32 %v1837, %v2553
        %v2555 = vpop.f32.mrb[0].mxu0
        %v2556 = vadd.f32 %v1841, %v2555
        %v2557 = vpop.f32.mrb[0].mxu0
        %v2558 = vadd.f32 %v1837, %v2557
        %v2559 = vpop.f32.mrb[0].mxu0
        %v2560 = vadd.f32 %v1841, %v2559
        %2561 = vmatprep.mubr.bf16.mxu0 0
        %2562 = vmatmul.mubr.bf16.gmra.mrb[0].mxu0 %v1759
        %v2563 = vpop.f32.mrb[0].mxu0
        %v2564 = vadd.f32 %v1837, %v2563
        %v2565 = vpop.f32.mrb[0].mxu0
        %v2566 = vadd.f32 %v1841, %v2565
        %v2567 = vpop.f32.mrb[0].mxu0
        %v2568 = vadd.f32 %v1837, %v2567
        %v2569 = vpop.f32.mrb[0].mxu0
        %v2570 = vadd.f32 %v1841, %v2569
        %2571 = vdwg.mxu0
        %2572 = vmatprep.subr.bf16.mxu0 %v2063
        %2573 = vmatpush1.bf16.msra.mxu0 %v2062
        %2574 = vmatprep.subr.bf16.mxu0 %v2071
        %2575 = vmatpush1.bf16.msra.mxu0 %v2070
        %2576 = vmatprep.subr.bf16.mxu0 %v2079
        %2577 = vmatpush1.bf16.msra.mxu0 %v2078
        %2578 = vmatprep.subr.bf16.mxu0 %v2087
        %2579 = vmatpush1.bf16.msra.mxu0 %v2086
        %2580 = vmatprep.subr.bf16.mxu0 %v2095
        %2581 = vmatpush1.bf16.msra.mxu0 %v2094
        %2582 = vmatprep.subr.bf16.mxu0 %v2103
        %2583 = vmatpush1.bf16.msra.mxu0 %v2102
        %2584 = vmatprep.subr.bf16.mxu0 %v2111
        %2585 = vmatpush1.bf16.msra.mxu0 %v2110
        %2586 = vmatprep.subr.bf16.mxu0 %v2119
        %2587 = vmatpush1.bf16.msra.mxu0 %v2118
        %2588 = vmatprep.subr.bf16.mxu0 0
        %2589 = vmatpush1.bf16.msra.mxu0 0
        %2590 = vmatprep.subr.bf16.mxu0 0
        %2591 = vmatpush1.bf16.msra.mxu0 0
        %2592 = vmatprep.subr.bf16.mxu0 0
        %2593 = vmatpush1.bf16.msra.mxu0 0
        %2594 = vmatprep.subr.bf16.mxu0 0
        %2595 = vmatpush1.bf16.msra.mxu0 0
        %2596 = vmatprep.subr.bf16.mxu0 0
        %2597 = vmatpush1.bf16.msra.mxu0 0
        %2598 = vmatprep.subr.bf16.mxu0 0
        %2599 = vmatpush1.bf16.msra.mxu0 0
        %2600 = vmatprep.subr.bf16.mxu0 0
        %2601 = vmatpush1.bf16.msra.mxu0 0
        %2602 = vmatprep.subr.bf16.mxu0 0
        %2603 = vmatpush1.bf16.msra.mxu0 0
        %2604 = vmatprep.mubr.bf16.mxu0 0
        %2605 = vmatmul.mubr.bf16.gmra.mrb[0].mxu0 %v1744
        %v2606 = vpop.f32.mrb[0].mxu0
        %v2607 = vadd.f32 %v1845, %v2606
        %v2608 = vpop.f32.mrb[0].mxu0
        %v2609 = vadd.f32 %v1849, %v2608
        %v2610 = vpop.f32.mrb[0].mxu0
        %v2611 = vadd.f32 %v1845, %v2610
        %v2612 = vpop.f32.mrb[0].mxu0
        %v2613 = vadd.f32 %v1849, %v2612
        %2614 = vmatprep.mubr.bf16.mxu0 0
        %2615 = vmatmul.mubr.bf16.gmra.mrb[0].mxu0 %v1745
        %v2616 = vpop.f32.mrb[0].mxu0
        %v2617 = vadd.f32 %v1845, %v2616
        %v2618 = vpop.f32.mrb[0].mxu0
        %v2619 = vadd.f32 %v1849, %v2618
        %v2620 = vpop.f32.mrb[0].mxu0
        %v2621 = vadd.f32 %v1845, %v2620
        %v2622 = vpop.f32.mrb[0].mxu0
        %v2623 = vadd.f32 %v1849, %v2622
        %2624 = vmatprep.mubr.bf16.mxu0 0
        %2625 = vmatmul.mubr.bf16.gmra.mrb[0].mxu0 %v1746
        %v2626 = vpop.f32.mrb[0].mxu0
        %v2627 = vadd.f32 %v1845, %v2626
        %v2628 = vpop.f32.mrb[0].mxu0
        %v2629 = vadd.f32 %v1849, %v2628
        %v2630 = vpop.f32.mrb[0].mxu0
        %v2631 = vadd.f32 %v1845, %v2630
        %v2632 = vpop.f32.mrb[0].mxu0
        %v2633 = vadd.f32 %v1849, %v2632
        %2634 = vmatprep.mubr.bf16.mxu0 0
        %2635 = vmatmul.mubr.bf16.gmra.mrb[0].mxu0 %v1747
        %v2636 = vpop.f32.mrb[0].mxu0
        %v2637 = vadd.f32 %v1845, %v2636
        %v2638 = vpop.f32.mrb[0].mxu0
        %v2639 = vadd.f32 %v1849, %v2638
        %v2640 = vpop.f32.mrb[0].mxu0
        %v2641 = vadd.f32 %v1845, %v2640
        %v2642 = vpop.f32.mrb[0].mxu0
        %v2643 = vadd.f32 %v1849, %v2642
        %2644 = vmatprep.mubr.bf16.mxu0 0
        %2645 = vmatmul.mubr.bf16.gmra.mrb[0].mxu0 %v1748
        %v2646 = vpop.f32.mrb[0].mxu0
        %v2647 = vadd.f32 %v1845, %v2646
        %v2648 = vpop.f32.mrb[0].mxu0
        %v2649 = vadd.f32 %v1849, %v2648
        %v2650 = vpop.f32.mrb[0].mxu0
        %v2651 = vadd.f32 %v1845, %v2650
        %v2652 = vpop.f32.mrb[0].mxu0
        %v2653 = vadd.f32 %v1849, %v2652
        %2654 = vmatprep.mubr.bf16.mxu0 0
        %2655 = vmatmul.mubr.bf16.gmra.mrb[0].mxu0 %v1749
        %v2656 = vpop.f32.mrb[0].mxu0
        %v2657 = vadd.f32 %v1845, %v2656
        %v2658 = vpop.f32.mrb[0].mxu0
        %v2659 = vadd.f32 %v1849, %v2658
        %v2660 = vpop.f32.mrb[0].mxu0
        %v2661 = vadd.f32 %v1845, %v2660
        %v2662 = vpop.f32.mrb[0].mxu0
        %v2663 = vadd.f32 %v1849, %v2662
        %2664 = vmatprep.mubr.bf16.mxu0 0
        %2665 = vmatmul.mubr.bf16.gmra.mrb[0].mxu0 %v1750
        %v2666 = vpop.f32.mrb[0].mxu0
        %v2667 = vadd.f32 %v1845, %v2666
        %v2668 = vpop.f32.mrb[0].mxu0
        %v2669 = vadd.f32 %v1849, %v2668
        %v2670 = vpop.f32.mrb[0].mxu0
        %v2671 = vadd.f32 %v1845, %v2670
        %v2672 = vpop.f32.mrb[0].mxu0
        %v2673 = vadd.f32 %v1849, %v2672
        %2674 = vmatprep.mubr.bf16.mxu0 0
        %2675 = vmatmul.mubr.bf16.gmra.mrb[0].mxu0 %v1751
        %v2676 = vpop.f32.mrb[0].mxu0
        %v2677 = vadd.f32 %v1845, %v2676
        %v2678 = vpop.f32.mrb[0].mxu0
        %v2679 = vadd.f32 %v1849, %v2678
        %v2680 = vpop.f32.mrb[0].mxu0
        %v2681 = vadd.f32 %v1845, %v2680
        %v2682 = vpop.f32.mrb[0].mxu0
        %v2683 = vadd.f32 %v1849, %v2682
        %2684 = vmatprep.mubr.bf16.mxu0 0
        %2685 = vmatmul.mubr.bf16.gmra.mrb[0].mxu0 %v1752
        %v2686 = vpop.f32.mrb[0].mxu0
        %v2687 = vadd.f32 %v1845, %v2686
        %v2688 = vpop.f32.mrb[0].mxu0
        %v2689 = vadd.f32 %v1849, %v2688
        %v2690 = vpop.f32.mrb[0].mxu0
        %v2691 = vadd.f32 %v1845, %v2690
        %v2692 = vpop.f32.mrb[0].mxu0
        %v2693 = vadd.f32 %v1849, %v2692
        %2694 = vmatprep.mubr.bf16.mxu0 0
        %2695 = vmatmul.mubr.bf16.gmra.mrb[0].mxu0 %v1753
        %v2696 = vpop.f32.mrb[0].mxu0
        %v2697 = vadd.f32 %v1845, %v2696
        %v2698 = vpop.f32.mrb[0].mxu0
        %v2699 = vadd.f32 %v1849, %v2698
        %v2700 = vpop.f32.mrb[0].mxu0
        %v2701 = vadd.f32 %v1845, %v2700
        %v2702 = vpop.f32.mrb[0].mxu0
        %v2703 = vadd.f32 %v1849, %v2702
        %2704 = vmatprep.mubr.bf16.mxu0 0
        %2705 = vmatmul.mubr.bf16.gmra.mrb[0].mxu0 %v1754
        %v2706 = vpop.f32.mrb[0].mxu0
        %v2707 = vadd.f32 %v1845, %v2706
        %v2708 = vpop.f32.mrb[0].mxu0
        %v2709 = vadd.f32 %v1849, %v2708
        %v2710 = vpop.f32.mrb[0].mxu0
        %v2711 = vadd.f32 %v1845, %v2710
        %v2712 = vpop.f32.mrb[0].mxu0
        %v2713 = vadd.f32 %v1849, %v2712
        %2714 = vmatprep.mubr.bf16.mxu0 0
        %2715 = vmatmul.mubr.bf16.gmra.mrb[0].mxu0 %v1755
        %v2716 = vpop.f32.mrb[0].mxu0
        %v2717 = vadd.f32 %v1845, %v2716
        %v2718 = vpop.f32.mrb[0].mxu0
        %v2719 = vadd.f32 %v1849, %v2718
        %v2720 = vpop.f32.mrb[0].mxu0
        %v2721 = vadd.f32 %v1845, %v2720
        %v2722 = vpop.f32.mrb[0].mxu0
        %v2723 = vadd.f32 %v1849, %v2722
        %2724 = vmatprep.mubr.bf16.mxu0 0
        %2725 = vmatmul.mubr.bf16.gmra.mrb[0].mxu0 %v1756
        %v2726 = vpop.f32.mrb[0].mxu0
        %v2727 = vadd.f32 %v1845, %v2726
        %v2728 = vpop.f32.mrb[0].mxu0
        %v2729 = vadd.f32 %v1849, %v2728
        %v2730 = vpop.f32.mrb[0].mxu0
        %v2731 = vadd.f32 %v1845, %v2730
        %v2732 = vpop.f32.mrb[0].mxu0
        %v2733 = vadd.f32 %v1849, %v2732
        %2734 = vmatprep.mubr.bf16.mxu0 0
        %2735 = vmatmul.mubr.bf16.gmra.mrb[0].mxu0 %v1757
        %v2736 = vpop.f32.mrb[0].mxu0
        %v2737 = vadd.f32 %v1845, %v2736
        %v2738 = vpop.f32.mrb[0].mxu0
        %v2739 = vadd.f32 %v1849, %v2738
        %v2740 = vpop.f32.mrb[0].mxu0
        %v2741 = vadd.f32 %v1845, %v2740
        %v2742 = vpop.f32.mrb[0].mxu0
        %v2743 = vadd.f32 %v1849, %v2742
        %2744 = vmatprep.mubr.bf16.mxu0 0
        %2745 = vmatmul.mubr.bf16.gmra.mrb[0].mxu0 %v1758
        %v2746 = vpop.f32.mrb[0].mxu0
        %v2747 = vadd.f32 %v1845, %v2746
        %v2748 = vpop.f32.mrb[0].mxu0
        %v2749 = vadd.f32 %v1849, %v2748
        %v2750 = vpop.f32.mrb[0].mxu0
        %v2751 = vadd.f32 %v1845, %v2750
        %v2752 = vpop.f32.mrb[0].mxu0
        %v2753 = vadd.f32 %v1849, %v2752
        %2754 = vmatprep.mubr.bf16.mxu0 0
        %2755 = vmatmul.mubr.bf16.gmra.mrb[0].mxu0 %v1759
        %v2756 = vpop.f32.mrb[0].mxu0
        %v2757 = vadd.f32 %v1845, %v2756
        %v2758 = vpop.f32.mrb[0].mxu0
        %v2759 = vadd.f32 %v1849, %v2758
        %v2760 = vpop.f32.mrb[0].mxu0
        %v2761 = vadd.f32 %v1845, %v2760
        %v2762 = vpop.f32.mrb[0].mxu0
        %v2763 = vadd.f32 %v1849, %v2762
        %2764 = vdwg.mxu0
        %2765 = vmatprep.subr.bf16.mxu0 %v2065
        %2766 = vmatpush1.bf16.msra.mxu0 %v2064
        %2767 = vmatprep.subr.bf16.mxu0 %v2073
        %2768 = vmatpush1.bf16.msra.mxu0 %v2072
        %2769 = vmatprep.subr.bf16.mxu0 %v2081
        %2770 = vmatpush1.bf16.msra.mxu0 %v2080
        %2771 = vmatprep.subr.bf16.mxu0 %v2089
        %2772 = vmatpush1.bf16.msra.mxu0 %v2088
        %2773 = vmatprep.subr.bf16.mxu0 %v2097
        %2774 = vmatpush1.bf16.msra.mxu0 %v2096
        %2775 = vmatprep.subr.bf16.mxu0 %v2105
        %2776 = vmatpush1.bf16.msra.mxu0 %v2104
        %2777 = vmatprep.subr.bf16.mxu0 %v2113
        %2778 = vmatpush1.bf16.msra.mxu0 %v2112
        %2779 = vmatprep.subr.bf16.mxu0 %v2121
        %2780 = vmatpush1.bf16.msra.mxu0 %v2120
        %2781 = vmatprep.subr.bf16.mxu0 0
        %2782 = vmatpush1.bf16.msra.mxu0 0
        %2783 = vmatprep.subr.bf16.mxu0 0
        %2784 = vmatpush1.bf16.msra.mxu0 0
        %2785 = vmatprep.subr.bf16.mxu0 0
        %2786 = vmatpush1.bf16.msra.mxu0 0
        %2787 = vmatprep.subr.bf16.mxu0 0
        %2788 = vmatpush1.bf16.msra.mxu0 0
        %2789 = vmatprep.subr.bf16.mxu0 0
        %2790 = vmatpush1.bf16.msra.mxu0 0
        %2791 = vmatprep.subr.bf16.mxu0 0
        %2792 = vmatpush1.bf16.msra.mxu0 0
        %2793 = vmatprep.subr.bf16.mxu0 0
        %2794 = vmatpush1.bf16.msra.mxu0 0
        %2795 = vmatprep.subr.bf16.mxu0 0
        %2796 = vmatpush1.bf16.msra.mxu0 0
        %2797 = vmatprep.mubr.bf16.mxu0 0
        %2798 = vmatmul.mubr.bf16.gmra.mrb[0].mxu0 %v1744
        %v2799 = vpop.f32.mrb[0].mxu0
        %v2800 = vadd.f32 %v1853, %v2799
        %v2801 = vpop.f32.mrb[0].mxu0
        %v2802 = vadd.f32 %v1857, %v2801
        %v2803 = vpop.f32.mrb[0].mxu0
        %v2804 = vadd.f32 %v1853, %v2803
        %v2805 = vpop.f32.mrb[0].mxu0
        %v2806 = vadd.f32 %v1857, %v2805
        %2807 = vmatprep.mubr.bf16.mxu0 0
        %2808 = vmatmul.mubr.bf16.gmra.mrb[0].mxu0 %v1745
        %v2809 = vpop.f32.mrb[0].mxu0
        %v2810 = vadd.f32 %v1853, %v2809
        %v2811 = vpop.f32.mrb[0].mxu0
        %v2812 = vadd.f32 %v1857, %v2811
        %v2813 = vpop.f32.mrb[0].mxu0
        %v2814 = vadd.f32 %v1853, %v2813
        %v2815 = vpop.f32.mrb[0].mxu0
        %v2816 = vadd.f32 %v1857, %v2815
        %2817 = vmatprep.mubr.bf16.mxu0 0
        %2818 = vmatmul.mubr.bf16.gmra.mrb[0].mxu0 %v1746
        %v2819 = vpop.f32.mrb[0].mxu0
        %v2820 = vadd.f32 %v1853, %v2819
        %v2821 = vpop.f32.mrb[0].mxu0
        %v2822 = vadd.f32 %v1857, %v2821
        %v2823 = vpop.f32.mrb[0].mxu0
        %v2824 = vadd.f32 %v1853, %v2823
        %v2825 = vpop.f32.mrb[0].mxu0
        %v2826 = vadd.f32 %v1857, %v2825
        %2827 = vmatprep.mubr.bf16.mxu0 0
        %2828 = vmatmul.mubr.bf16.gmra.mrb[0].mxu0 %v1747
        %v2829 = vpop.f32.mrb[0].mxu0
        %v2830 = vadd.f32 %v1853, %v2829
        %v2831 = vpop.f32.mrb[0].mxu0
        %v2832 = vadd.f32 %v1857, %v2831
        %v2833 = vpop.f32.mrb[0].mxu0
        %v2834 = vadd.f32 %v1853, %v2833
        %v2835 = vpop.f32.mrb[0].mxu0
        %v2836 = vadd.f32 %v1857, %v2835
        %2837 = vmatprep.mubr.bf16.mxu0 0
        %2838 = vmatmul.mubr.bf16.gmra.mrb[0].mxu0 %v1748
        %v2839 = vpop.f32.mrb[0].mxu0
        %v2840 = vadd.f32 %v1853, %v2839
        %v2841 = vpop.f32.mrb[0].mxu0
        %v2842 = vadd.f32 %v1857, %v2841
        %v2843 = vpop.f32.mrb[0].mxu0
        %v2844 = vadd.f32 %v1853, %v2843
        %v2845 = vpop.f32.mrb[0].mxu0
        %v2846 = vadd.f32 %v1857, %v2845
        %2847 = vmatprep.mubr.bf16.mxu0 0
        %2848 = vmatmul.mubr.bf16.gmra.mrb[0].mxu0 %v1749
        %v2849 = vpop.f32.mrb[0].mxu0
        %v2850 = vadd.f32 %v1853, %v2849
        %v2851 = vpop.f32.mrb[0].mxu0
        %v2852 = vadd.f32 %v1857, %v2851
        %v2853 = vpop.f32.mrb[0].mxu0
        %v2854 = vadd.f32 %v1853, %v2853
        %v2855 = vpop.f32.mrb[0].mxu0
        %v2856 = vadd.f32 %v1857, %v2855
        %2857 = vmatprep.mubr.bf16.mxu0 0
        %2858 = vmatmul.mubr.bf16.gmra.mrb[0].mxu0 %v1750
        %v2859 = vpop.f32.mrb[0].mxu0
        %v2860 = vadd.f32 %v1853, %v2859
        %v2861 = vpop.f32.mrb[0].mxu0
        %v2862 = vadd.f32 %v1857, %v2861
        %v2863 = vpop.f32.mrb[0].mxu0
        %v2864 = vadd.f32 %v1853, %v2863
        %v2865 = vpop.f32.mrb[0].mxu0
        %v2866 = vadd.f32 %v1857, %v2865
        %2867 = vmatprep.mubr.bf16.mxu0 0
        %2868 = vmatmul.mubr.bf16.gmra.mrb[0].mxu0 %v1751
        %v2869 = vpop.f32.mrb[0].mxu0
        %v2870 = vadd.f32 %v1853, %v2869
        %v2871 = vpop.f32.mrb[0].mxu0
        %v2872 = vadd.f32 %v1857, %v2871
        %v2873 = vpop.f32.mrb[0].mxu0
        %v2874 = vadd.f32 %v1853, %v2873
        %v2875 = vpop.f32.mrb[0].mxu0
        %v2876 = vadd.f32 %v1857, %v2875
        %2877 = vmatprep.mubr.bf16.mxu0 0
        %2878 = vmatmul.mubr.bf16.gmra.mrb[0].mxu0 %v1752
        %v2879 = vpop.f32.mrb[0].mxu0
        %v2880 = vadd.f32 %v1853, %v2879
        %v2881 = vpop.f32.mrb[0].mxu0
        %v2882 = vadd.f32 %v1857, %v2881
        %v2883 = vpop.f32.mrb[0].mxu0
        %v2884 = vadd.f32 %v1853, %v2883
        %v2885 = vpop.f32.mrb[0].mxu0
        %v2886 = vadd.f32 %v1857, %v2885
        %2887 = vmatprep.mubr.bf16.mxu0 0
        %2888 = vmatmul.mubr.bf16.gmra.mrb[0].mxu0 %v1753
        %v2889 = vpop.f32.mrb[0].mxu0
        %v2890 = vadd.f32 %v1853, %v2889
        %v2891 = vpop.f32.mrb[0].mxu0
        %v2892 = vadd.f32 %v1857, %v2891
        %v2893 = vpop.f32.mrb[0].mxu0
        %v2894 = vadd.f32 %v1853, %v2893
        %v2895 = vpop.f32.mrb[0].mxu0
        %v2896 = vadd.f32 %v1857, %v2895
        %2897 = vmatprep.mubr.bf16.mxu0 0
        %2898 = vmatmul.mubr.bf16.gmra.mrb[0].mxu0 %v1754
        %v2899 = vpop.f32.mrb[0].mxu0
        %v2900 = vadd.f32 %v1853, %v2899
        %v2901 = vpop.f32.mrb[0].mxu0
        %v2902 = vadd.f32 %v1857, %v2901
        %v2903 = vpop.f32.mrb[0].mxu0
        %v2904 = vadd.f32 %v1853, %v2903
        %v2905 = vpop.f32.mrb[0].mxu0
        %v2906 = vadd.f32 %v1857, %v2905
        %2907 = vmatprep.mubr.bf16.mxu0 0
        %2908 = vmatmul.mubr.bf16.gmra.mrb[0].mxu0 %v1755
        %v2909 = vpop.f32.mrb[0].mxu0
        %v2910 = vadd.f32 %v1853, %v2909
        %v2911 = vpop.f32.mrb[0].mxu0
        %v2912 = vadd.f32 %v1857, %v2911
        %v2913 = vpop.f32.mrb[0].mxu0
        %v2914 = vadd.f32 %v1853, %v2913
        %v2915 = vpop.f32.mrb[0].mxu0
        %v2916 = vadd.f32 %v1857, %v2915
        %2917 = vmatprep.mubr.bf16.mxu0 0
        %2918 = vmatmul.mubr.bf16.gmra.mrb[0].mxu0 %v1756
        %v2919 = vpop.f32.mrb[0].mxu0
        %v2920 = vadd.f32 %v1853, %v2919
        %v2921 = vpop.f32.mrb[0].mxu0
        %v2922 = vadd.f32 %v1857, %v2921
        %v2923 = vpop.f32.mrb[0].mxu0
        %v2924 = vadd.f32 %v1853, %v2923
        %v2925 = vpop.f32.mrb[0].mxu0
        %v2926 = vadd.f32 %v1857, %v2925
        %2927 = vmatprep.mubr.bf16.mxu0 0
        %2928 = vmatmul.mubr.bf16.gmra.mrb[0].mxu0 %v1757
        %v2929 = vpop.f32.mrb[0].mxu0
        %v2930 = vadd.f32 %v1853, %v2929
        %v2931 = vpop.f32.mrb[0].mxu0
        %v2932 = vadd.f32 %v1857, %v2931
        %v2933 = vpop.f32.mrb[0].mxu0
        %v2934 = vadd.f32 %v1853, %v2933
        %v2935 = vpop.f32.mrb[0].mxu0
        %v2936 = vadd.f32 %v1857, %v2935
        %2937 = vmatprep.mubr.bf16.mxu0 0
        %2938 = vmatmul.mubr.bf16.gmra.mrb[0].mxu0 %v1758
        %v2939 = vpop.f32.mrb[0].mxu0
        %v2940 = vadd.f32 %v1853, %v2939
        %v2941 = vpop.f32.mrb[0].mxu0
        %v2942 = vadd.f32 %v1857, %v2941
        %v2943 = vpop.f32.mrb[0].mxu0
        %v2944 = vadd.f32 %v1853, %v2943
        %v2945 = vpop.f32.mrb[0].mxu0
        %v2946 = vadd.f32 %v1857, %v2945
        %2947 = vmatprep.mubr.bf16.mxu0 0
        %2948 = vmatmul.mubr.bf16.gmra.mrb[0].mxu0 %v1759
        %v2949 = vpop.f32.mrb[0].mxu0
        %v2950 = vadd.f32 %v1853, %v2949
        %v2951 = vpop.f32.mrb[0].mxu0
        %v2952 = vadd.f32 %v1857, %v2951
        %v2953 = vpop.f32.mrb[0].mxu0
        %v2954 = vadd.f32 %v1853, %v2953
        %v2955 = vpop.f32.mrb[0].mxu0
        %v2956 = vadd.f32 %v1857, %v2955
        %2957 = vdwg.mxu0
        %v2958 = vmax.f32 %v2221, 0.0
        %v2959 = vmax.f32 %v2223, 0.0
        %v2960 = vmax.f32 %v2414, 0.0
        %v2961 = vmax.f32 %v2416, 0.0
        %v2962 = vmax.f32 %v2607, 0.0
        %v2963 = vmax.f32 %v2609, 0.0
        %v2964 = vmax.f32 %v2800, 0.0
        %v2965 = vmax.f32 %v2802, 0.0
        %v2966 = vmax.f32 %v2225, 0.0
        %v2967 = vmax.f32 %v2227, 0.0
        %v2968 = vmax.f32 %v2418, 0.0
        %v2969 = vmax.f32 %v2420, 0.0
        %v2970 = vmax.f32 %v2611, 0.0
        %v2971 = vmax.f32 %v2613, 0.0
        %v2972 = vmax.f32 %v2804, 0.0
        %v2973 = vmax.f32 %v2806, 0.0
        %v2974 = vmax.f32 %v2231, 0.0
        %v2975 = vmax.f32 %v2233, 0.0
        %v2976 = vmax.f32 %v2424, 0.0
        %v2977 = vmax.f32 %v2426, 0.0
        %v2978 = vmax.f32 %v2617, 0.0
        %v2979 = vmax.f32 %v2619, 0.0
        %v2980 = vmax.f32 %v2810, 0.0
        %v2981 = vmax.f32 %v2812, 0.0
        %v2982 = vmax.f32 %v2235, 0.0
        %v2983 = vmax.f32 %v2237, 0.0
        %v2984 = vmax.f32 %v2428, 0.0
        %v2985 = vmax.f32 %v2430, 0.0
        %v2986 = vmax.f32 %v2621, 0.0
        %v2987 = vmax.f32 %v2623, 0.0
        %v2988 = vmax.f32 %v2814, 0.0
        %v2989 = vmax.f32 %v2816, 0.0
        %v2990 = vmax.f32 %v2241, 0.0
        %v2991 = vmax.f32 %v2243, 0.0
        %v2992 = vmax.f32 %v2434, 0.0
        %v2993 = vmax.f32 %v2436, 0.0
        %v2994 = vmax.f32 %v2627, 0.0
        %v2995 = vmax.f32 %v2629, 0.0
        %v2996 = vmax.f32 %v2820, 0.0
        %v2997 = vmax.f32 %v2822, 0.0
        %v2998 = vmax.f32 %v2245, 0.0
        %v2999 = vmax.f32 %v2247, 0.0
        %v3000 = vmax.f32 %v2438, 0.0
        %v3001 = vmax.f32 %v2440, 0.0
        %v3002 = vmax.f32 %v2631, 0.0
        %v3003 = vmax.f32 %v2633, 0.0
        %v3004 = vmax.f32 %v2824, 0.0
        %v3005 = vmax.f32 %v2826, 0.0
        %v3006 = vmax.f32 %v2251, 0.0
        %v3007 = vmax.f32 %v2253, 0.0
        %v3008 = vmax.f32 %v2444, 0.0
        %v3009 = vmax.f32 %v2446, 0.0
        %v3010 = vmax.f32 %v2637, 0.0
        %v3011 = vmax.f32 %v2639, 0.0
        %v3012 = vmax.f32 %v2830, 0.0
        %v3013 = vmax.f32 %v2832, 0.0
        %v3014 = vmax.f32 %v2255, 0.0
        %v3015 = vmax.f32 %v2257, 0.0
        %v3016 = vmax.f32 %v2448, 0.0
        %v3017 = vmax.f32 %v2450, 0.0
        %v3018 = vmax.f32 %v2641, 0.0
        %v3019 = vmax.f32 %v2643, 0.0
        %v3020 = vmax.f32 %v2834, 0.0
        %v3021 = vmax.f32 %v2836, 0.0
        %v3022 = vmax.f32 %v2261, 0.0
        %v3023 = vmax.f32 %v2263, 0.0
        %v3024 = vmax.f32 %v2454, 0.0
        %v3025 = vmax.f32 %v2456, 0.0
        %v3026 = vmax.f32 %v2647, 0.0
        %v3027 = vmax.f32 %v2649, 0.0
        %v3028 = vmax.f32 %v2840, 0.0
        %v3029 = vmax.f32 %v2842, 0.0
        %v3030 = vmax.f32 %v2265, 0.0
        %v3031 = vmax.f32 %v2267, 0.0
        %v3032 = vmax.f32 %v2458, 0.0
        %v3033 = vmax.f32 %v2460, 0.0
        %v3034 = vmax.f32 %v2651, 0.0
        %v3035 = vmax.f32 %v2653, 0.0
        %v3036 = vmax.f32 %v2844, 0.0
        %v3037 = vmax.f32 %v2846, 0.0
        %v3038 = vmax.f32 %v2271, 0.0
        %v3039 = vmax.f32 %v2273, 0.0
        %v3040 = vmax.f32 %v2464, 0.0
        %v3041 = vmax.f32 %v2466, 0.0
        %v3042 = vmax.f32 %v2657, 0.0
        %v3043 = vmax.f32 %v2659, 0.0
        %v3044 = vmax.f32 %v2850, 0.0
        %v3045 = vmax.f32 %v2852, 0.0
        %v3046 = vmax.f32 %v2275, 0.0
        %v3047 = vmax.f32 %v2277, 0.0
        %v3048 = vmax.f32 %v2468, 0.0
        %v3049 = vmax.f32 %v2470, 0.0
        %v3050 = vmax.f32 %v2661, 0.0
        %v3051 = vmax.f32 %v2663, 0.0
        %v3052 = vmax.f32 %v2854, 0.0
        %v3053 = vmax.f32 %v2856, 0.0
        %v3054 = vmax.f32 %v2281, 0.0
        %v3055 = vmax.f32 %v2283, 0.0
        %v3056 = vmax.f32 %v2474, 0.0
        %v3057 = vmax.f32 %v2476, 0.0
        %v3058 = vmax.f32 %v2667, 0.0
        %v3059 = vmax.f32 %v2669, 0.0
        %v3060 = vmax.f32 %v2860, 0.0
        %v3061 = vmax.f32 %v2862, 0.0
        %v3062 = vmax.f32 %v2285, 0.0
        %v3063 = vmax.f32 %v2287, 0.0
        %v3064 = vmax.f32 %v2478, 0.0
        %v3065 = vmax.f32 %v2480, 0.0
        %v3066 = vmax.f32 %v2671, 0.0
        %v3067 = vmax.f32 %v2673, 0.0
        %v3068 = vmax.f32 %v2864, 0.0
        %v3069 = vmax.f32 %v2866, 0.0
        %v3070 = vmax.f32 %v2291, 0.0
        %v3071 = vmax.f32 %v2293, 0.0
        %v3072 = vmax.f32 %v2484, 0.0
        %v3073 = vmax.f32 %v2486, 0.0
        %v3074 = vmax.f32 %v2677, 0.0
        %v3075 = vmax.f32 %v2679, 0.0
        %v3076 = vmax.f32 %v2870, 0.0
        %v3077 = vmax.f32 %v2872, 0.0
        %v3078 = vmax.f32 %v2295, 0.0
        %v3079 = vmax.f32 %v2297, 0.0
        %v3080 = vmax.f32 %v2488, 0.0
        %v3081 = vmax.f32 %v2490, 0.0
        %v3082 = vmax.f32 %v2681, 0.0
        %v3083 = vmax.f32 %v2683, 0.0
        %v3084 = vmax.f32 %v2874, 0.0
        %v3085 = vmax.f32 %v2876, 0.0
        %v3086 = vmax.f32 %v2301, 0.0
        %v3087 = vmax.f32 %v2303, 0.0
        %v3088 = vmax.f32 %v2494, 0.0
        %v3089 = vmax.f32 %v2496, 0.0
        %v3090 = vmax.f32 %v2687, 0.0
        %v3091 = vmax.f32 %v2689, 0.0
        %v3092 = vmax.f32 %v2880, 0.0
        %v3093 = vmax.f32 %v2882, 0.0
        %v3094 = vmax.f32 %v2305, 0.0
        %v3095 = vmax.f32 %v2307, 0.0
        %v3096 = vmax.f32 %v2498, 0.0
        %v3097 = vmax.f32 %v2500, 0.0
        %v3098 = vmax.f32 %v2691, 0.0
        %v3099 = vmax.f32 %v2693, 0.0
        %v3100 = vmax.f32 %v2884, 0.0
        %v3101 = vmax.f32 %v2886, 0.0
        %v3102 = vmax.f32 %v2311, 0.0
        %v3103 = vmax.f32 %v2313, 0.0
        %v3104 = vmax.f32 %v2504, 0.0
        %v3105 = vmax.f32 %v2506, 0.0
        %v3106 = vmax.f32 %v2697, 0.0
        %v3107 = vmax.f32 %v2699, 0.0
        %v3108 = vmax.f32 %v2890, 0.0
        %v3109 = vmax.f32 %v2892, 0.0
        %v3110 = vmax.f32 %v2315, 0.0
        %v3111 = vmax.f32 %v2317, 0.0
        %v3112 = vmax.f32 %v2508, 0.0
        %v3113 = vmax.f32 %v2510, 0.0
        %v3114 = vmax.f32 %v2701, 0.0
        %v3115 = vmax.f32 %v2703, 0.0
        %v3116 = vmax.f32 %v2894, 0.0
        %v3117 = vmax.f32 %v2896, 0.0
        %v3118 = vmax.f32 %v2321, 0.0
        %v3119 = vmax.f32 %v2323, 0.0
        %v3120 = vmax.f32 %v2514, 0.0
        %v3121 = vmax.f32 %v2516, 0.0
        %v3122 = vmax.f32 %v2707, 0.0
        %v3123 = vmax.f32 %v2709, 0.0
        %v3124 = vmax.f32 %v2900, 0.0
        %v3125 = vmax.f32 %v2902, 0.0
        %v3126 = vmax.f32 %v2325, 0.0
        %v3127 = vmax.f32 %v2327, 0.0
        %v3128 = vmax.f32 %v2518, 0.0
        %v3129 = vmax.f32 %v2520, 0.0
        %v3130 = vmax.f32 %v2711, 0.0
        %v3131 = vmax.f32 %v2713, 0.0
        %v3132 = vmax.f32 %v2904, 0.0
        %v3133 = vmax.f32 %v2906, 0.0
        %v3134 = vmax.f32 %v2331, 0.0
        %v3135 = vmax.f32 %v2333, 0.0
        %v3136 = vmax.f32 %v2524, 0.0
        %v3137 = vmax.f32 %v2526, 0.0
        %v3138 = vmax.f32 %v2717, 0.0
        %v3139 = vmax.f32 %v2719, 0.0
        %v3140 = vmax.f32 %v2910, 0.0
        %v3141 = vmax.f32 %v2912, 0.0
        %v3142 = vmax.f32 %v2335, 0.0
        %v3143 = vmax.f32 %v2337, 0.0
        %v3144 = vmax.f32 %v2528, 0.0
        %v3145 = vmax.f32 %v2530, 0.0
        %v3146 = vmax.f32 %v2721, 0.0
        %v3147 = vmax.f32 %v2723, 0.0
        %v3148 = vmax.f32 %v2914, 0.0
        %v3149 = vmax.f32 %v2916, 0.0
        %v3150 = vmax.f32 %v2341, 0.0
        %v3151 = vmax.f32 %v2343, 0.0
        %v3152 = vmax.f32 %v2534, 0.0
        %v3153 = vmax.f32 %v2536, 0.0
        %v3154 = vmax.f32 %v2727, 0.0
        %v3155 = vmax.f32 %v2729, 0.0
        %v3156 = vmax.f32 %v2920, 0.0
        %v3157 = vmax.f32 %v2922, 0.0
        %v3158 = vmax.f32 %v2345, 0.0
        %v3159 = vmax.f32 %v2347, 0.0
        %v3160 = vmax.f32 %v2538, 0.0
        %v3161 = vmax.f32 %v2540, 0.0
        %v3162 = vmax.f32 %v2731, 0.0
        %v3163 = vmax.f32 %v2733, 0.0
        %v3164 = vmax.f32 %v2924, 0.0
        %v3165 = vmax.f32 %v2926, 0.0
        %v3166 = vmax.f32 %v2351, 0.0
        %v3167 = vmax.f32 %v2353, 0.0
        %v3168 = vmax.f32 %v2544, 0.0
        %v3169 = vmax.f32 %v2546, 0.0
        %v3170 = vmax.f32 %v2737, 0.0
        %v3171 = vmax.f32 %v2739, 0.0
        %v3172 = vmax.f32 %v2930, 0.0
        %v3173 = vmax.f32 %v2932, 0.0
        %v3174 = vmax.f32 %v2355, 0.0
        %v3175 = vmax.f32 %v2357, 0.0
        %v3176 = vmax.f32 %v2548, 0.0
        %v3177 = vmax.f32 %v2550, 0.0
        %v3178 = vmax.f32 %v2741, 0.0
        %v3179 = vmax.f32 %v2743, 0.0
        %v3180 = vmax.f32 %v2934, 0.0
        %v3181 = vmax.f32 %v2936, 0.0
        %v3182 = vmax.f32 %v2361, 0.0
        %v3183 = vmax.f32 %v2363, 0.0
        %v3184 = vmax.f32 %v2554, 0.0
        %v3185 = vmax.f32 %v2556, 0.0
        %v3186 = vmax.f32 %v2747, 0.0
        %v3187 = vmax.f32 %v2749, 0.0
        %v3188 = vmax.f32 %v2940, 0.0
        %v3189 = vmax.f32 %v2942, 0.0
        %v3190 = vmax.f32 %v2365, 0.0
        %v3191 = vmax.f32 %v2367, 0.0
        %v3192 = vmax.f32 %v2558, 0.0
        %v3193 = vmax.f32 %v2560, 0.0
        %v3194 = vmax.f32 %v2751, 0.0
        %v3195 = vmax.f32 %v2753, 0.0
        %v3196 = vmax.f32 %v2944, 0.0
        %v3197 = vmax.f32 %v2946, 0.0
        %v3198 = vmax.f32 %v2371, 0.0
        %v3199 = vmax.f32 %v2373, 0.0
        %v3200 = vmax.f32 %v2564, 0.0
        %v3201 = vmax.f32 %v2566, 0.0
        %v3202 = vmax.f32 %v2757, 0.0
        %v3203 = vmax.f32 %v2759, 0.0
        %v3204 = vmax.f32 %v2950, 0.0
        %v3205 = vmax.f32 %v2952, 0.0
        %v3206 = vmax.f32 %v2375, 0.0
        %v3207 = vmax.f32 %v2377, 0.0
        %v3208 = vmax.f32 %v2568, 0.0
        %v3209 = vmax.f32 %v2570, 0.0
        %v3210 = vmax.f32 %v2761, 0.0
        %v3211 = vmax.f32 %v2763, 0.0
        %v3212 = vmax.f32 %v2954, 0.0
        %v3213 = vmax.f32 %v2956, 0.0
        %v3214 = vmax.f32 %v2958, %v2966
        %v3215 = vmax.f32 %v3214, %v2974
        %v3216 = vmax.f32 %v3215, %v2982
        %v3217 = vmax.f32 %v3216, %v2990
        %v3218 = vmax.f32 %v3217, %v2998
        %v3219 = vmax.f32 %v3218, %v3006
        %v3220 = vmax.f32 %v3219, %v3014
        %v3221 = vmax.f32 %v3220, %v3022
        %v3222 = vmax.f32 %v3221, %v3030
        %v3223 = vmax.f32 %v3222, %v3038
        %v3224 = vmax.f32 %v3223, %v3046
        %v3225 = vmax.f32 %v3224, %v3054
        %v3226 = vmax.f32 %v3225, %v3062
        %v3227 = vmax.f32 %v3226, %v3070
        %v3228 = vmax.f32 %v3227, %v3078
        %v3229 = vmax.f32 %v3228, %v3086
        %v3230 = vmax.f32 %v3229, %v3094
        %v3231 = vmax.f32 %v3230, %v3102
        %v3232 = vmax.f32 %v3231, %v3110
        %v3233 = vmax.f32 %v3232, %v3118
        %v3234 = vmax.f32 %v3233, %v3126
        %v3235 = vmax.f32 %v3234, %v3134
        %v3236 = vmax.f32 %v3235, %v3142
        %v3237 = vmax.f32 %v3236, %v3150
        %v3238 = vmax.f32 %v3237, %v3158
        %v3239 = vmax.f32 %v3238, %v3166
        %v3240 = vmax.f32 %v3239, %v3174
        %v3241 = vmax.f32 %v3240, %v3182
        %v3242 = vmax.f32 %v3241, %v3190
        %v3243 = vmax.f32 %v3242, %v3198
        %v3244 = vmax.f32 %v3243, %v3206
        %v3245 = vrot.slane %v3244, 4
        %v3246 = vmax.f32 %v3244, %v3245
        %v3247 = vrot.slane %v3246, 2
        %v3248 = vmax.f32 %v3246, %v3247
        %v3249 = vrot.slane %v3248, 1
        %v3250 = vmax.f32 %v3248, %v3249
        %v3251 = vmax.f32 %v2959, %v2967
        %v3252 = vmax.f32 %v3251, %v2975
        %v3253 = vmax.f32 %v3252, %v2983
        %v3254 = vmax.f32 %v3253, %v2991
        %v3255 = vmax.f32 %v3254, %v2999
        %v3256 = vmax.f32 %v3255, %v3007
        %v3257 = vmax.f32 %v3256, %v3015
        %v3258 = vmax.f32 %v3257, %v3023
        %v3259 = vmax.f32 %v3258, %v3031
        %v3260 = vmax.f32 %v3259, %v3039
        %v3261 = vmax.f32 %v3260, %v3047
        %v3262 = vmax.f32 %v3261, %v3055
        %v3263 = vmax.f32 %v3262, %v3063
        %v3264 = vmax.f32 %v3263, %v3071
        %v3265 = vmax.f32 %v3264, %v3079
        %v3266 = vmax.f32 %v3265, %v3087
        %v3267 = vmax.f32 %v3266, %v3095
        %v3268 = vmax.f32 %v3267, %v3103
        %v3269 = vmax.f32 %v3268, %v3111
        %v3270 = vmax.f32 %v3269, %v3119
        %v3271 = vmax.f32 %v3270, %v3127
        %v3272 = vmax.f32 %v3271, %v3135
        %v3273 = vmax.f32 %v3272, %v3143
        %v3274 = vmax.f32 %v3273, %v3151
        %v3275 = vmax.f32 %v3274, %v3159
        %v3276 = vmax.f32 %v3275, %v3167
        %v3277 = vmax.f32 %v3276, %v3175
        %v3278 = vmax.f32 %v3277, %v3183
        %v3279 = vmax.f32 %v3278, %v3191
        %v3280 = vmax.f32 %v3279, %v3199
        %v3281 = vmax.f32 %v3280, %v3207
        %v3282 = vrot.slane %v3281, 4
        %v3283 = vmax.f32 %v3281, %v3282
        %v3284 = vrot.slane %v3283, 2
        %v3285 = vmax.f32 %v3283, %v3284
        %v3286 = vrot.slane %v3285, 1
        %v3287 = vmax.f32 %v3285, %v3286
        %v3288 = vmax.f32 %v2960, %v2968
        %v3289 = vmax.f32 %v3288, %v2976
        %v3290 = vmax.f32 %v3289, %v2984
        %v3291 = vmax.f32 %v3290, %v2992
        %v3292 = vmax.f32 %v3291, %v3000
        %v3293 = vmax.f32 %v3292, %v3008
        %v3294 = vmax.f32 %v3293, %v3016
        %v3295 = vmax.f32 %v3294, %v3024
        %v3296 = vmax.f32 %v3295, %v3032
        %v3297 = vmax.f32 %v3296, %v3040
        %v3298 = vmax.f32 %v3297, %v3048
        %v3299 = vmax.f32 %v3298, %v3056
        %v3300 = vmax.f32 %v3299, %v3064
        %v3301 = vmax.f32 %v3300, %v3072
        %v3302 = vmax.f32 %v3301, %v3080
        %v3303 = vmax.f32 %v3302, %v3088
        %v3304 = vmax.f32 %v3303, %v3096
        %v3305 = vmax.f32 %v3304, %v3104
        %v3306 = vmax.f32 %v3305, %v3112
        %v3307 = vmax.f32 %v3306, %v3120
        %v3308 = vmax.f32 %v3307, %v3128
        %v3309 = vmax.f32 %v3308, %v3136
        %v3310 = vmax.f32 %v3309, %v3144
        %v3311 = vmax.f32 %v3310, %v3152
        %v3312 = vmax.f32 %v3311, %v3160
        %v3313 = vmax.f32 %v3312, %v3168
        %v3314 = vmax.f32 %v3313, %v3176
        %v3315 = vmax.f32 %v3314, %v3184
        %v3316 = vmax.f32 %v3315, %v3192
        %v3317 = vmax.f32 %v3316, %v3200
        %v3318 = vmax.f32 %v3317, %v3208
        %v3319 = vrot.slane %v3318, 4
        %v3320 = vmax.f32 %v3318, %v3319
        %v3321 = vrot.slane %v3320, 2
        %v3322 = vmax.f32 %v3320, %v3321
        %v3323 = vrot.slane %v3322, 1
        %v3324 = vmax.f32 %v3322, %v3323
        %v3325 = vmax.f32 %v2961, %v2969
        %v3326 = vmax.f32 %v3325, %v2977
        %v3327 = vmax.f32 %v3326, %v2985
        %v3328 = vmax.f32 %v3327, %v2993
        %v3329 = vmax.f32 %v3328, %v3001
        %v3330 = vmax.f32 %v3329, %v3009
        %v3331 = vmax.f32 %v3330, %v3017
        %v3332 = vmax.f32 %v3331, %v3025
        %v3333 = vmax.f32 %v3332, %v3033
        %v3334 = vmax.f32 %v3333, %v3041
        %v3335 = vmax.f32 %v3334, %v3049
        %v3336 = vmax.f32 %v3335, %v3057
        %v3337 = vmax.f32 %v3336, %v3065
        %v3338 = vmax.f32 %v3337, %v3073
        %v3339 = vmax.f32 %v3338, %v3081
        %v3340 = vmax.f32 %v3339, %v3089
        %v3341 = vmax.f32 %v3340, %v3097
        %v3342 = vmax.f32 %v3341, %v3105
        %v3343 = vmax.f32 %v3342, %v3113
        %v3344 = vmax.f32 %v3343, %v3121
        %v3345 = vmax.f32 %v3344, %v3129
        %v3346 = vmax.f32 %v3345, %v3137
        %v3347 = vmax.f32 %v3346, %v3145
        %v3348 = vmax.f32 %v3347, %v3153
        %v3349 = vmax.f32 %v3348, %v3161
        %v3350 = vmax.f32 %v3349, %v3169
        %v3351 = vmax.f32 %v3350, %v3177
        %v3352 = vmax.f32 %v3351, %v3185
        %v3353 = vmax.f32 %v3352, %v3193
        %v3354 = vmax.f32 %v3353, %v3201
        %v3355 = vmax.f32 %v3354, %v3209
        %v3356 = vrot.slane %v3355, 4
        %v3357 = vmax.f32 %v3355, %v3356
        %v3358 = vrot.slane %v3357, 2
        %v3359 = vmax.f32 %v3357, %v3358
        %v3360 = vrot.slane %v3359, 1
        %v3361 = vmax.f32 %v3359, %v3360
        %v3362 = vmax.f32 %v2962, %v2970
        %v3363 = vmax.f32 %v3362, %v2978
        %v3364 = vmax.f32 %v3363, %v2986
        %v3365 = vmax.f32 %v3364, %v2994
        %v3366 = vmax.f32 %v3365, %v3002
        %v3367 = vmax.f32 %v3366, %v3010
        %v3368 = vmax.f32 %v3367, %v3018
        %v3369 = vmax.f32 %v3368, %v3026
        %v3370 = vmax.f32 %v3369, %v3034
        %v3371 = vmax.f32 %v3370, %v3042
        %v3372 = vmax.f32 %v3371, %v3050
        %v3373 = vmax.f32 %v3372, %v3058
        %v3374 = vmax.f32 %v3373, %v3066
        %v3375 = vmax.f32 %v3374, %v3074
        %v3376 = vmax.f32 %v3375, %v3082
        %v3377 = vmax.f32 %v3376, %v3090
        %v3378 = vmax.f32 %v3377, %v3098
        %v3379 = vmax.f32 %v3378, %v3106
        %v3380 = vmax.f32 %v3379, %v3114
        %v3381 = vmax.f32 %v3380, %v3122
        %v3382 = vmax.f32 %v3381, %v3130
        %v3383 = vmax.f32 %v3382, %v3138
        %v3384 = vmax.f32 %v3383, %v3146
        %v3385 = vmax.f32 %v3384, %v3154
        %v3386 = vmax.f32 %v3385, %v3162
        %v3387 = vmax.f32 %v3386, %v3170
        %v3388 = vmax.f32 %v3387, %v3178
        %v3389 = vmax.f32 %v3388, %v3186
        %v3390 = vmax.f32 %v3389, %v3194
        %v3391 = vmax.f32 %v3390, %v3202
        %v3392 = vmax.f32 %v3391, %v3210
        %v3393 = vrot.slane %v3392, 4
        %v3394 = vmax.f32 %v3392, %v3393
        %v3395 = vrot.slane %v3394, 2
        %v3396 = vmax.f32 %v3394, %v3395
        %v3397 = vrot.slane %v3396, 1
        %v3398 = vmax.f32 %v3396, %v3397
        %v3399 = vmax.f32 %v2963, %v2971
        %v3400 = vmax.f32 %v3399, %v2979
        %v3401 = vmax.f32 %v3400, %v2987
        %v3402 = vmax.f32 %v3401, %v2995
        %v3403 = vmax.f32 %v3402, %v3003
        %v3404 = vmax.f32 %v3403, %v3011
        %v3405 = vmax.f32 %v3404, %v3019
        %v3406 = vmax.f32 %v3405, %v3027
        %v3407 = vmax.f32 %v3406, %v3035
        %v3408 = vmax.f32 %v3407, %v3043
        %v3409 = vmax.f32 %v3408, %v3051
        %v3410 = vmax.f32 %v3409, %v3059
        %v3411 = vmax.f32 %v3410, %v3067
        %v3412 = vmax.f32 %v3411, %v3075
        %v3413 = vmax.f32 %v3412, %v3083
        %v3414 = vmax.f32 %v3413, %v3091
        %v3415 = vmax.f32 %v3414, %v3099
        %v3416 = vmax.f32 %v3415, %v3107
        %v3417 = vmax.f32 %v3416, %v3115
        %v3418 = vmax.f32 %v3417, %v3123
        %v3419 = vmax.f32 %v3418, %v3131
        %v3420 = vmax.f32 %v3419, %v3139
        %v3421 = vmax.f32 %v3420, %v3147
        %v3422 = vmax.f32 %v3421, %v3155
        %v3423 = vmax.f32 %v3422, %v3163
        %v3424 = vmax.f32 %v3423, %v3171
        %v3425 = vmax.f32 %v3424, %v3179
        %v3426 = vmax.f32 %v3425, %v3187
        %v3427 = vmax.f32 %v3426, %v3195
        %v3428 = vmax.f32 %v3427, %v3203
        %v3429 = vmax.f32 %v3428, %v3211
        %v3430 = vrot.slane %v3429, 4
        %v3431 = vmax.f32 %v3429, %v3430
        %v3432 = vrot.slane %v3431, 2
        %v3433 = vmax.f32 %v3431, %v3432
        %v3434 = vrot.slane %v3433, 1
        %v3435 = vmax.f32 %v3433, %v3434
        %v3436 = vmax.f32 %v2964, %v2972
        %v3437 = vmax.f32 %v3436, %v2980
        %v3438 = vmax.f32 %v3437, %v2988
        %v3439 = vmax.f32 %v3438, %v2996
        %v3440 = vmax.f32 %v3439, %v3004
        %v3441 = vmax.f32 %v3440, %v3012
        %v3442 = vmax.f32 %v3441, %v3020
        %v3443 = vmax.f32 %v3442, %v3028
        %v3444 = vmax.f32 %v3443, %v3036
        %v3445 = vmax.f32 %v3444, %v3044
        %v3446 = vmax.f32 %v3445, %v3052
        %v3447 = vmax.f32 %v3446, %v3060
        %v3448 = vmax.f32 %v3447, %v3068
        %v3449 = vmax.f32 %v3448, %v3076
        %v3450 = vmax.f32 %v3449, %v3084
        %v3451 = vmax.f32 %v3450, %v3092
        %v3452 = vmax.f32 %v3451, %v3100
        %v3453 = vmax.f32 %v3452, %v3108
        %v3454 = vmax.f32 %v3453, %v3116
        %v3455 = vmax.f32 %v3454, %v3124
        %v3456 = vmax.f32 %v3455, %v3132
        %v3457 = vmax.f32 %v3456, %v3140
        %v3458 = vmax.f32 %v3457, %v3148
        %v3459 = vmax.f32 %v3458, %v3156
        %v3460 = vmax.f32 %v3459, %v3164
        %v3461 = vmax.f32 %v3460, %v3172
        %v3462 = vmax.f32 %v3461, %v3180
        %v3463 = vmax.f32 %v3462, %v3188
        %v3464 = vmax.f32 %v3463, %v3196
        %v3465 = vmax.f32 %v3464, %v3204
        %v3466 = vmax.f32 %v3465, %v3212
        %v3467 = vrot.slane %v3466, 4
        %v3468 = vmax.f32 %v3466, %v3467
        %v3469 = vrot.slane %v3468, 2
        %v3470 = vmax.f32 %v3468, %v3469
        %v3471 = vrot.slane %v3470, 1
        %v3472 = vmax.f32 %v3470, %v3471
        %v3473 = vmax.f32 %v2965, %v2973
        %v3474 = vmax.f32 %v3473, %v2981
        %v3475 = vmax.f32 %v3474, %v2989
        %v3476 = vmax.f32 %v3475, %v2997
        %v3477 = vmax.f32 %v3476, %v3005
        %v3478 = vmax.f32 %v3477, %v3013
        %v3479 = vmax.f32 %v3478, %v3021
        %v3480 = vmax.f32 %v3479, %v3029
        %v3481 = vmax.f32 %v3480, %v3037
        %v3482 = vmax.f32 %v3481, %v3045
        %v3483 = vmax.f32 %v3482, %v3053
        %v3484 = vmax.f32 %v3483, %v3061
        %v3485 = vmax.f32 %v3484, %v3069
        %v3486 = vmax.f32 %v3485, %v3077
        %v3487 = vmax.f32 %v3486, %v3085
        %v3488 = vmax.f32 %v3487, %v3093
        %v3489 = vmax.f32 %v3488, %v3101
        %v3490 = vmax.f32 %v3489, %v3109
        %v3491 = vmax.f32 %v3490, %v3117
        %v3492 = vmax.f32 %v3491, %v3125
        %v3493 = vmax.f32 %v3492, %v3133
        %v3494 = vmax.f32 %v3493, %v3141
        %v3495 = vmax.f32 %v3494, %v3149
        %v3496 = vmax.f32 %v3495, %v3157
        %v3497 = vmax.f32 %v3496, %v3165
        %v3498 = vmax.f32 %v3497, %v3173
        %v3499 = vmax.f32 %v3498, %v3181
        %v3500 = vmax.f32 %v3499, %v3189
        %v3501 = vmax.f32 %v3500, %v3197
        %v3502 = vmax.f32 %v3501, %v3205
        %v3503 = vmax.f32 %v3502, %v3213
        %v3504 = vrot.slane %v3503, 4
        %v3505 = vmax.f32 %v3503, %v3504
        %v3506 = vrot.slane %v3505, 2
        %v3507 = vmax.f32 %v3505, %v3506
        %v3508 = vrot.slane %v3507, 1
        %v3509 = vmax.f32 %v3507, %v3508
        %v3510 = vld [vmem:[%s546] sm:$0xff]
        %v3519 = vcombine.low %v3250, %v3287
        %v3520 = vcombine.low %v3324, %v3361
        %v3521 = vcombine.low %v3398, %v3435
        %v3522 = vcombine.low %v3472, %v3509
        %v3524 = vunpack.c.l.s4 1966171168
        %v3525 = vunpack.c.0.s8 %v3524
        %v3526 = vlaneseq
        %v3527 = vshrl.u32 %v3526, 7
        %v3528 = vsub.s32 %v3525, %v3527
        %v3529 = vrot.slane %v3519, %v3528
        %v3531 = vunpack.c.l.s4 1966171168
        %v3532 = vunpack.c.0.s8 %v3531
        %v3533 = vlaneseq
        %v3534 = vshrl.u32 %v3533, 7
        %v3535 = vsub.s32 %v3532, %v3534
        %v3536 = vrot.slane %v3520, %v3535
        %v3538 = vunpack.c.l.s4 1966171168
        %v3539 = vunpack.c.0.s8 %v3538
        %v3540 = vlaneseq
        %v3541 = vshrl.u32 %v3540, 7
        %v3542 = vsub.s32 %v3539, %v3541
        %v3543 = vrot.slane %v3521, %v3542
        %v3545 = vunpack.c.l.s4 1966171168
        %v3546 = vunpack.c.0.s8 %v3545
        %v3547 = vlaneseq
        %v3548 = vshrl.u32 %v3547, 7
        %v3549 = vsub.s32 %v3546, %v3548
        %v3550 = vrot.slane %v3522, %v3549
        %v3551 = vcombine.low %v3529, %v3536
        %v3552 = vcombine.low %v3543, %v3550
        %v3554 = vunpack.c.l.s4 1966171168
        %v3555 = vunpack.c.0.s8 %v3554
        %v3556 = vlaneseq
        %v3557 = vshrl.u32 %v3556, 7
        %v3558 = vsub.s32 %v3555, %v3557
        %v3559 = vrot.slane %v3551, %v3558
        %v3561 = vunpack.c.l.s4 1966171168
        %v3562 = vunpack.c.0.s8 %v3561
        %v3563 = vlaneseq
        %v3564 = vshrl.u32 %v3563, 7
        %v3565 = vsub.s32 %v3562, %v3564
        %v3566 = vrot.slane %v3552, %v3565
        %v3567 = vcombine.low %v3559, %v3566
        %v3569 = vmax.f32 %v3510, %v3567
        %3570 = vst [vmem:[%s546] sm:$0xff] %v3569
        %p3571 = scmp.lt.s32.totalorder %s32, 1
        %s3572 = scalar_select %p3571, %s32, 1
        %s3573 = smul.addr %s3572, 8
        %s3574 = scalar_lea.vmem %s11, %s3573
        // Predicated region
        $region109: #{pointnet_autoencoder.3} parent=63 // pred_check
          %p3575 = pneg %p296
        $region110: #{pointnet_autoencoder.3} parent=63 // pred_check_branch
          %3577 = sbr.rel (%p3575) target = $region112
        $region111: #{pointnet_autoencoder.3} parent=63 // pred_region
          _
        $region112: #{pointnet_autoencoder.3} parent=63 // pred_fallthru
          _
      $region64: #{pointnet_autoencoder.3} parent=5 // pred_fallthru
        _
      %p3578 = scmp.le.s32.totalorder 2, %s23
      // Predicated region
      $region113: #{pointnet_autoencoder.3} parent=5 // pred_check
        %p3579 = pneg %p3578
      $region114: #{pointnet_autoencoder.3} parent=5 // pred_check_branch
        %3581 = sbr.rel (%p3579) target = $region116
      $region115: #{pointnet_autoencoder.3} parent=5 // pred_region
        %s3582 = ssub.s32 %s23, 2
        // Predicated region
        $region117: #{pointnet_autoencoder.3} parent=115 // pred_check
          %p3583 = pneg %p302
        $region118: #{pointnet_autoencoder.3} parent=115 // pred_check_branch
          %3585 = sbr.rel (%p3583) target = $region120
        $region119: #{pointnet_autoencoder.3} parent=115 // pred_region
          %p3586 = scmp.lt.s32.totalorder %s34, 1
          %s3587 = scalar_select %p3586, %s34, 1
          %s3588 = smul.addr %s3587, 8
          %s3589 = scalar_lea.vmem %s11, %s3588
        $region120: #{pointnet_autoencoder.3} parent=115 // pred_fallthru
          _
      $region116: #{pointnet_autoencoder.3} parent=5 // pred_fallthru
        _
    $region6: #{pointnet_autoencoder.3} parent=1 // loop_footer
      %s27 = sadd.s32 1, %s23
    $region7: #{pointnet_autoencoder.3} parent=1 // loop_footer_branch
      %22 = sbr.rel target = $region3
    $region8: #{pointnet_autoencoder.3} parent=1 // loop_exit
      _
    %3590 = vsyncpa [#allocation3], 1
    %s3591 = scalar_lea.sflag [#allocation3], 1
    %3592 = vsyncpa %s3591, 1
    %3593 = vsyncpa [#allocation5], 1
    %3594 = vsyncpa [#allocation8], 1
    %3595 = vsyncpa [#allocation11], 1
    %3596 = vsyncpa [#allocation14], 1
    %3597 = vsyncpa [#allocation17], 1

</llo_original>
